<compile_context>
chip_gen: v7x
topology: tpu7x:2x2x1
jax: 0.10.0
libtpu: 0.0.40
codegen_flags: <defaults>
</compile_context>

<pallas_src>
import functools
import math

import jax
import jax.numpy as jnp
from jax.experimental import pallas as pl
from jax.experimental.pallas import tpu as pltpu


# ----------------------------- patch-embed / head kernels -----------------------------

def _linear_kernel(x_ref, w_ref, b_ref, o_ref):
    # (tm, K) @ (K, N) + (1, N); bf16 matmul, f32 accumulate.
    o_ref[...] = (jnp.dot(x_ref[...].astype(jnp.bfloat16), w_ref[...],
                          preferred_element_type=jnp.float32) + b_ref[...])


def linear_pallas(x, w, b, *, tile_m=512):
    M, K = x.shape
    N = w.shape[1]
    tm = min(tile_m, M)
    Mp = -(-M // tm) * tm
    if Mp != M:
        x = jnp.pad(x, ((0, Mp - M), (0, 0)))
    out = pl.pallas_call(
        _linear_kernel,
        grid=(Mp // tm,),
        in_specs=[pl.BlockSpec((tm, K), lambda i: (i, 0)),
                  pl.BlockSpec((K, N), lambda i: (0, 0)),
                  pl.BlockSpec((1, N), lambda i: (0, 0))],
        out_specs=pl.BlockSpec((tm, N), lambda i: (i, 0)),
        out_shape=jax.ShapeDtypeStruct((Mp, N), jnp.float32),
        compiler_params=pltpu.CompilerParams(dimension_semantics=("parallel",)),
    )(x, w, b)
    return out[:M] if Mp != M else out


def _head_kernel(x_ref, w_ref, b_ref, o_ref):
    logits = (jnp.dot(x_ref[...].astype(jnp.bfloat16), w_ref[...],
                      preferred_element_type=jnp.float32) + b_ref[...])
    m = jnp.max(logits, axis=-1, keepdims=True)
    z = logits - m
    lse = jnp.log(jnp.sum(jnp.exp(z), axis=-1, keepdims=True))
    o_ref[...] = z - lse                     # LogSoftmax(dim=1)


def head_pallas(x, w, b):
    B = x.shape[0]
    n = w.shape[1]
    return pl.pallas_call(
        _head_kernel,
        out_shape=jax.ShapeDtypeStruct((B, n), jnp.float32),
    )(x, w, b)


# ----------------------------- fused transformer-stack kernel -----------------------------
#
# grid = (depth,). Per grid step one layer's weights are streamed; the whole
# (B, Np, C) residual stream lives in the output VMEM buffer across layers.
# Packed small-parameter rows in sp_ref (f32, (1, 8, W)):
#   row 0: ln1_w   row 1: ln1_b   row 2: qkv bias (3C)   row 3: proj bias
#   row 4: ln2_w   row 5: ln2_b   row 6: fc1 bias (hid)  row 7: fc2 bias

def _blocks_kernel(x_ref, wqkv_ref, wproj_ref, w1_ref, w2_ref, sp_ref, o_ref, *,
                   num_heads, head_dim, n_valid, scale, eps, hidden):
    layer = pl.program_id(0)

    # Load the residual stream once (layer 0); it stays resident in the output
    # VMEM buffer across the depth axis (no HBM round trip between layers).
    @pl.when(layer == 0)
    def _():
        o_ref[...] = x_ref[...]

    x = o_ref[...]                               # (B, Np, C) f32
    Bt, Np, C = x.shape
    H, d = num_heads, head_dim

    sp = sp_ref[0]                               # (8, W) packed small params
    ln1_w, ln1_b = sp[0:1, :C], sp[1:2, :C]
    bqkv = sp[2:3, :3 * C]
    bproj = sp[3:4, :C]
    ln2_w, ln2_b = sp[4:5, :C], sp[5:6, :C]
    b1 = sp[6:7, :hidden]
    b2 = sp[7:8, :C]

    def layernorm(v, w, b):
        mu = jnp.mean(v, axis=-1, keepdims=True)
        var = jnp.mean((v - mu) ** 2, axis=-1, keepdims=True)
        return (v - mu) * jax.lax.rsqrt(var + eps) * w + b

    # ---------------- attention branch: x + proj(attn(norm1(x))) ----------------
    xn = layernorm(x, ln1_w, ln1_b).reshape(Bt * Np, C)
    # ONE fused, lane-dense QKV matmul: (B*Np, C) @ (C, 3C), bf16 in / f32 acc.
    qkv = jnp.dot(xn.astype(jnp.bfloat16), wqkv_ref[0],
                  preferred_element_type=jnp.float32) + bqkv          # (B*Np, 3C)

    # mask padded key positions (tokens >= n_valid) to -inf before softmax
    kmask = jax.lax.broadcasted_iota(jnp.int32, (1, 1, Np), 2) < n_valid

    head_out = []
    for h in range(H):                           # static unroll over heads
        qh = qkv[:, h * d:(h + 1) * d].reshape(Bt, Np, d)
        kh = qkv[:, C + h * d:C + (h + 1) * d].reshape(Bt, Np, d)
        vh = qkv[:, 2 * C + h * d:2 * C + (h + 1) * d].reshape(Bt, Np, d)

        s = jnp.einsum('bqd,bkd->bqk', qh.astype(jnp.bfloat16),
                       kh.astype(jnp.bfloat16),
                       preferred_element_type=jnp.float32) * scale    # (B, Np, Np)
        s = jnp.where(kmask, s, -1e30)
        s = s - jnp.max(s, axis=-1, keepdims=True)
        e = jnp.exp(s)
        p = e * pl.reciprocal(jnp.sum(e, axis=-1, keepdims=True), approx=True)

        head_out.append(jnp.einsum('bqk,bkd->bqd', p.astype(jnp.bfloat16),
                                   vh.astype(jnp.bfloat16),
                                   preferred_element_type=jnp.float32))

    # concat heads along lanes -> single full-width output projection matmul.
    o = jnp.concatenate(head_out, axis=-1).reshape(Bt * Np, C)
    proj = jnp.dot(o.astype(jnp.bfloat16), wproj_ref[0],
                   preferred_element_type=jnp.float32) + bproj        # (B*Np, C)
    x = x + proj.reshape(Bt, Np, C)

    # ---------------- MLP branch: x + fc2(gelu(fc1(norm2(x)))) ----------------
    xn2 = layernorm(x, ln2_w, ln2_b).reshape(Bt * Np, C)
    h1 = jnp.dot(xn2.astype(jnp.bfloat16), w1_ref[0],
                 preferred_element_type=jnp.float32) + b1
    # exact (erf-based) GELU, matching torch.nn.GELU() default
    h1 = 0.5 * h1 * (1.0 + jax.lax.erf(h1 * (1.0 / math.sqrt(2.0))))
    h2 = jnp.dot(h1.astype(jnp.bfloat16), w2_ref[0],
                 preferred_element_type=jnp.float32) + b2

    o_ref[...] = x + h2.reshape(Bt, Np, C)


def blocks_pallas(x, blk, *, num_heads, n_valid):
    B, Np, C = x.shape
    L = blk['wqkv'].shape[0]
    hidden = blk['w1'].shape[-1]
    Wcol = blk['small'].shape[-1]
    d = C // num_heads
    scale = d ** (-0.5)

    kernel = functools.partial(_blocks_kernel, num_heads=num_heads, head_dim=d,
                               n_valid=n_valid, scale=scale, eps=1e-5,
                               hidden=hidden)

    return pl.pallas_call(
        kernel,
        grid=(L,),
        in_specs=[
            pl.BlockSpec((B, Np, C), lambda l: (0, 0, 0)),         # tokens (fetched once)
            pl.BlockSpec((1, C, 3 * C), lambda l: (l, 0, 0)),      # fused qkv weight
            pl.BlockSpec((1, C, C), lambda l: (l, 0, 0)),          # proj weight
            pl.BlockSpec((1, C, hidden), lambda l: (l, 0, 0)),     # mlp fc1 weight
            pl.BlockSpec((1, hidden, C), lambda l: (l, 0, 0)),     # mlp fc2 weight
            pl.BlockSpec((1, 8, Wcol), lambda l: (l, 0, 0)),       # packed small params
        ],
        out_specs=pl.BlockSpec((B, Np, C), lambda l: (0, 0, 0)),
        out_shape=jax.ShapeDtypeStruct((B, Np, C), jnp.float32),
        input_output_aliases={0: 0},
        compiler_params=pltpu.CompilerParams(
            dimension_semantics=("arbitrary",),           # depth is a sequential carry
            vmem_limit_bytes=48 * 1024 * 1024),
    )(x, blk['wqkv'], blk['wproj'], blk['w1'], blk['w2'], blk['small'])


# ----------------------------- parameters -----------------------------

def init_params(key, *, in_chans, patch_size, embed_dim, depths, num_heads,
                mlp_ratio, num_patches, num_frames, n_classes):
    E = embed_dim
    hidden = int(E * mlp_ratio)
    patch_dim = in_chans * patch_size * patch_size
    Wcol = max(hidden, 3 * E)

    keys = list(jax.random.split(key, 8 + 6 * depths))
    it = iter(keys)

    def tn(shape, std=0.02):
        return (std * jax.random.truncated_normal(next(it), -2.0, 2.0, shape)
                ).astype(jnp.float32)

    params = {
        # conv weight stored flattened (c, kh, kw) and transposed -> (patch_dim, E)
        'patch_w': tn((patch_dim, E)).astype(jnp.bfloat16),
        'patch_b': jnp.zeros((1, E), jnp.float32),
        'cls_token': tn((1, 1, E)),
        'pos_embed': tn((1, num_patches + 1, E)),
        'time_embed': jnp.zeros((1, num_frames, E), jnp.float32),
        'head_w': tn((E, n_classes)).astype(jnp.bfloat16),
        'head_b': jnp.zeros((1, n_classes), jnp.float32),
    }

    # Per-block weights, stacked along a leading depth axis.
    wqkv, wproj, w1, w2 = [], [], [], []
    for _ in range(depths):
        # fused QKV weight: columns ordered [q | k | v], heads contiguous within each.
        wqkv.append(jnp.concatenate([tn((E, E)), tn((E, E)), tn((E, E))], axis=1))
        wproj.append(tn((E, E)))
        w1.append(tn((E, hidden)))
        w2.append(tn((hidden, E)))

    # Packed small params (LayerNorm scales/biases and all biases): (L, 8, Wcol).
    small = jnp.zeros((depths, 8, Wcol), jnp.float32)
    small = small.at[:, 0, :E].set(1.0)   # ln1 weight = 1
    small = small.at[:, 4, :E].set(1.0)   # ln2 weight = 1
    # all biases (rows 1,2,3,5,6,7) are zero, matching the PyTorch init.

    params['blocks'] = {
        'wqkv': jnp.stack(wqkv).astype(jnp.bfloat16),    # (L, E, 3E)
        'wproj': jnp.stack(wproj).astype(jnp.bfloat16),  # (L, E, E)
        'w1': jnp.stack(w1).astype(jnp.bfloat16),        # (L, E, hidden)
        'w2': jnp.stack(w2).astype(jnp.bfloat16),        # (L, hidden, E)
        'small': small,                                  # (L, 8, max(hidden, 3E))
    }
    return params


# ----------------------------- forward -----------------------------

def timesformer_forward(params, x_s, x_c, x_d, *, patch_size, num_heads, T):
    B = x_s.shape[0]
    # forward(): cat channels, repeat static frames over time, cat dynamic frames
    xs = jnp.concatenate([x_s, x_c], axis=1)                 # (B, Cs+Cc, H, W)
    xs = jnp.repeat(xs[:, :, None, :, :], T, axis=2)         # (B, Cs+Cc, T, H, W)
    x = jnp.concatenate([xs, x_d], axis=1)                   # (B, Cin, T, H, W)

    _, Cin, Tt, Hh, Ww = x.shape
    p = patch_size
    Hp, Wp = Hh // p, Ww // p
    np_ = Hp * Wp

    # PatchEmbed: 'b c t h w -> (b t) c h w', Conv2d(k=p, s=p) as a patch matmul
    xp = jnp.transpose(x, (0, 2, 1, 3, 4)).reshape(B * Tt, Cin, Hh, Ww)
    xp = xp.reshape(B * Tt, Cin, Hp, p, Wp, p)
    xp = jnp.transpose(xp, (0, 2, 4, 1, 3, 5)).reshape(B * Tt * np_, Cin * p * p)
    tokens = linear_pallas(xp, params['patch_w'], params['patch_b'])  # (B*T*np, E)
    E = tokens.shape[-1]

    # joint_space_time token order: [cls, (patch p, frame t) with p major, t minor]
    tok = tokens.reshape(B, Tt, np_, E).transpose(0, 2, 1, 3).reshape(B, np_ * Tt, E)

    # pos_embed + time_embed folded into ONE combined embedding add
    # (sizes match -> no interpolation branch is taken in the reference).
    pos = params['pos_embed']                                # (1, np+1, E)
    te = params['time_embed']                                # (1, T, E)
    emb = (pos[:, 1:, :][:, :, None, :] + te[:, None, :, :]).reshape(1, np_ * Tt, E)
    cls = jnp.broadcast_to(params['cls_token'] + pos[:, 0:1, :], (B, 1, E))
    x_tok = jnp.concatenate([cls, tok + emb], axis=1)        # (B, 1 + np*T, E)

    # pad token count to a multiple of 8 (sublane alignment); padded keys are
    # masked to -inf inside the attention kernel.
    N = x_tok.shape[1]
    Np = ((N + 7) // 8) * 8
    if Np != N:
        x_tok = jnp.pad(x_tok, ((0, 0), (0, Np - N), (0, 0)))

    x_out = blocks_pallas(x_tok, params['blocks'], num_heads=num_heads, n_valid=N)
    return head_pallas(x_out[:, 0, :], params['head_w'], params['head_b'])


# ----------------------------- main -----------------------------

if __name__ == "__main__":
    key = jax.random.PRNGKey(0)

    # small shapes consistent with the module's forward()
    B, Hh, Ww = 2, 8, 8
    Cs, Cc, Cd = 2, 1, 2
    T = 10                      # forward() hard-codes repeat(1,1,10,1,1)
    patch_size = 4
    embed_dim = 32
    num_heads = 4
    depths = 2
    n_classes = 2
    in_chans = Cs + Cc + Cd
    num_patches = (Hh // patch_size) * (Ww // patch_size)

    kp, k1, k2, k3 = jax.random.split(key, 4)
    params = init_params(kp, in_chans=in_chans, patch_size=patch_size,
                         embed_dim=embed_dim, depths=depths, num_heads=num_heads,
                         mlp_ratio=4.0, num_patches=num_patches, num_frames=T,
                         n_classes=n_classes)

    x_s = jax.random.normal(k1, (B, Cs, Hh, Ww), jnp.float32)
    x_c = jax.random.normal(k2, (B, Cc, Hh, Ww), jnp.float32)
    x_d = jax.random.normal(k3, (B, Cd, T, Hh, Ww), jnp.float32)

    fwd = jax.jit(functools.partial(timesformer_forward, patch_size=patch_size,
                                    num_heads=num_heads, T=T))
    out = fwd(params, x_s, x_c, x_d)
    jax.block_until_ready(out)
    assert out.shape == (B, n_classes), out.shape
    # log-softmax rows must (log-)sum to 1
    assert bool(jnp.all(jnp.abs(jnp.sum(jnp.exp(out), axis=1) - 1.0) < 1e-3))
    print("KERNEL_OK")
</pallas_src>

<mosaic_0001>
module attributes {stable_mosaic.version = 11 : i64} {
  func.func @_linear_kernel(%arg0: i32, %arg1: memref<80x80xf32, #tpu.memory_space<vmem>>, %arg2: memref<80x32xbf16, #tpu.memory_space<vmem>>, %arg3: memref<1x32xf32, #tpu.memory_space<vmem>>, %arg4: memref<80x32xf32, #tpu.memory_space<vmem>>) attributes {dimension_semantics = [#tpu.dimension_semantics<parallel>], iteration_bounds = array<i64: 1>, scalar_prefetch = 0 : i64, scratch_operands = 0 : i64, tpu.core_type = #tpu.core_type<tc>, window_params = [{transform_indices = @transform_0, window_bounds = array<i64: 80, 80>}, {pipeline_mode = #tpu.pipeline_mode<synchronous>, transform_indices = @transform_1, window_bounds = array<i64: 80, 32>}, {pipeline_mode = #tpu.pipeline_mode<synchronous>, transform_indices = @transform_2, window_bounds = array<i64: 1, 32>}, {transform_indices = @transform_3, window_bounds = array<i64: 80, 32>}]} {
    %c0 = arith.constant 0 : index
    %c0_0 = arith.constant 0 : index
    %0 = vector.load %arg1[%c0, %c0_0] : memref<80x80xf32, #tpu.memory_space<vmem>>, vector<80x80xf32>
    %1 = arith.truncf %0 : vector<80x80xf32> to vector<80x80xbf16>
    %c0_1 = arith.constant 0 : index
    %c0_2 = arith.constant 0 : index
    %2 = vector.load %arg2[%c0_1, %c0_2] : memref<80x32xbf16, #tpu.memory_space<vmem>>, vector<80x32xbf16>
    %cst = arith.constant dense<0.000000e+00> : vector<80x32xf32>
    %3 = tpu.matmul %1, %2, %cst {dimension_numbers = #tpu.dot_dimension_numbers<[1], [0], [0], [1], [0, 0, 1, 1], [], []>} : vector<80x80xbf16>, vector<80x32xbf16>, vector<80x32xf32> -> vector<80x32xf32>
    %c0_3 = arith.constant 0 : index
    %c0_4 = arith.constant 0 : index
    %4 = vector.load %arg3[%c0_3, %c0_4] : memref<1x32xf32, #tpu.memory_space<vmem>>, vector<1x32xf32>
    %5 = vector.broadcast %4 : vector<1x32xf32> to vector<80x32xf32>
    %6 = arith.addf %3, %5 : vector<80x32xf32>
    %c0_5 = arith.constant 0 : index
    %c0_6 = arith.constant 0 : index
    %7 = vector.load %arg4[%c0_5, %c0_6] : memref<80x32xf32, #tpu.memory_space<vmem>>, vector<80x32xf32>
    tpu.vector_store %arg4[%c0_5, %c0_6], %6 {strides = array<i32>} : memref<80x32xf32, #tpu.memory_space<vmem>>, vector<80x32xf32>,
    return
  }
  func.func @transform_0(%arg0: i32) -> (i32, i32) {
    %c0_i32 = arith.constant 0 : i32
    %c0_i32_0 = arith.constant 0 : i32
    return %arg0, %c0_i32 : i32, i32
  }
  func.func @transform_1(%arg0: i32) -> (i32, i32) {
    %c0_i32 = arith.constant 0 : i32
    %c0_i32_0 = arith.constant 0 : i32
    %c0_i32_1 = arith.constant 0 : i32
    return %c0_i32, %c0_i32_0 : i32, i32
  }
  func.func @transform_2(%arg0: i32) -> (i32, i32) {
    %c0_i32 = arith.constant 0 : i32
    %c0_i32_0 = arith.constant 0 : i32
    %c0_i32_1 = arith.constant 0 : i32
    return %c0_i32, %c0_i32_0 : i32, i32
  }
  func.func @transform_3(%arg0: i32) -> (i32, i32) {
    %c0_i32 = arith.constant 0 : i32
    %c0_i32_0 = arith.constant 0 : i32
    return %arg0, %c0_i32 : i32, i32
  }
}

module attributes {stable_mosaic.version = 11 : i64} {
  func.func @_blocks_kernel(%arg0: i32, %arg1: memref<2x48x32xf32, #tpu.memory_space<vmem>>, %arg2: memref<1x32x96xbf16, #tpu.memory_space<vmem>>, %arg3: memref<1x32x32xbf16, #tpu.memory_space<vmem>>, %arg4: memref<1x32x128xbf16, #tpu.memory_space<vmem>>, %arg5: memref<1x128x32xbf16, #tpu.memory_space<vmem>>, %arg6: memref<1x8x128xf32, #tpu.memory_space<vmem>>, %arg7: memref<2x48x32xf32, #tpu.memory_space<vmem>>) attributes {dimension_semantics = [#tpu.dimension_semantics<arbitrary>], iteration_bounds = array<i64: 2>, scalar_prefetch = 0 : i64, scratch_operands = 0 : i64, tpu.core_type = #tpu.core_type<tc>, window_params = [{pipeline_mode = #tpu.pipeline_mode<synchronous>, transform_indices = @transform_0, window_bounds = array<i64: 2, 48, 32>}, {transform_indices = @transform_1, window_bounds = array<i64: 1, 32, 96>}, {transform_indices = @transform_2, window_bounds = array<i64: 1, 32, 32>}, {transform_indices = @transform_3, window_bounds = array<i64: 1, 32, 128>}, {transform_indices = @transform_4, window_bounds = array<i64: 1, 128, 32>}, {transform_indices = @transform_5, window_bounds = array<i64: 1, 8, 128>}, {pipeline_mode = #tpu.pipeline_mode<synchronous>, transform_indices = @transform_6, window_bounds = array<i64: 2, 48, 32>}]} {
    %c0_i32 = arith.constant 0 : i32
    %0 = arith.cmpi eq, %arg0, %c0_i32 : i32
    %1 = arith.extui %0 : i1 to i32
    %c0_i32_0 = arith.constant 0 : i32
    %2 = arith.cmpi ne, %1, %c0_i32_0 : i32
    scf.if %2 {
      %c0_61 = arith.constant 0 : index
      %c0_62 = arith.constant 0 : index
      %c0_63 = arith.constant 0 : index
      %218 = vector.load %arg1[%c0_61, %c0_62, %c0_63] : memref<2x48x32xf32, #tpu.memory_space<vmem>>, vector<2x48x32xf32>
      %c0_64 = arith.constant 0 : index
      %c0_65 = arith.constant 0 : index
      %c0_66 = arith.constant 0 : index
      %219 = vector.load %arg7[%c0_64, %c0_65, %c0_66] : memref<2x48x32xf32, #tpu.memory_space<vmem>>, vector<2x48x32xf32>
      tpu.vector_store %arg7[%c0_64, %c0_65, %c0_66], %218 {strides = array<i32>} : memref<2x48x32xf32, #tpu.memory_space<vmem>>, vector<2x48x32xf32>,
    } else {
    }
    %c0 = arith.constant 0 : index
    %c0_1 = arith.constant 0 : index
    %c0_2 = arith.constant 0 : index
    %3 = vector.load %arg7[%c0, %c0_1, %c0_2] : memref<2x48x32xf32, #tpu.memory_space<vmem>>, vector<2x48x32xf32>
    %c0_3 = arith.constant 0 : index
    %c0_4 = arith.constant 0 : index
    %c0_5 = arith.constant 0 : index
    %4 = vector.load %arg6[%c0_3, %c0_4, %c0_5] : memref<1x8x128xf32, #tpu.memory_space<vmem>>, vector<1x8x128xf32>
    %5 = vector.shape_cast %4 : vector<1x8x128xf32> to vector<8x128xf32>
    %6 = vector.extract_strided_slice %5 {offsets = [0, 0], sizes = [1, 32], strides = [1, 1]} : vector<8x128xf32> to vector<1x32xf32>
    %7 = vector.extract_strided_slice %5 {offsets = [1, 0], sizes = [1, 32], strides = [1, 1]} : vector<8x128xf32> to vector<1x32xf32>
    %8 = vector.extract_strided_slice %5 {offsets = [2, 0], sizes = [1, 96], strides = [1, 1]} : vector<8x128xf32> to vector<1x96xf32>
    %9 = vector.extract_strided_slice %5 {offsets = [3, 0], sizes = [1, 32], strides = [1, 1]} : vector<8x128xf32> to vector<1x32xf32>
    %10 = vector.extract_strided_slice %5 {offsets = [4, 0], sizes = [1, 32], strides = [1, 1]} : vector<8x128xf32> to vector<1x32xf32>
    %11 = vector.extract_strided_slice %5 {offsets = [5, 0], sizes = [1, 32], strides = [1, 1]} : vector<8x128xf32> to vector<1x32xf32>
    %12 = vector.extract_strided_slice %5 {offsets = [6, 0], sizes = [1, 128], strides = [1, 1]} : vector<8x128xf32> to vector<1x128xf32>
    %13 = vector.extract_strided_slice %5 {offsets = [7, 0], sizes = [1, 32], strides = [1, 1]} : vector<8x128xf32> to vector<1x32xf32>
    %cst = arith.constant dense<0.000000e+00> : vector<2x48xf32>
    %14 = vector.multi_reduction <add>, %3, %cst [2] : vector<2x48x32xf32> to vector<2x48xf32>
    %15 = vector.shape_cast %14 : vector<2x48xf32> to vector<2x48x1xf32>
    %cst_6 = arith.constant 3.200000e+01 : f32
    %16 = vector.broadcast %cst_6 : f32 to vector<2x48x1xf32>
    %17 = arith.divf %15, %16 : vector<2x48x1xf32>
    %18 = vector.broadcast %17 : vector<2x48x1xf32> to vector<2x48x32xf32>
    %19 = arith.subf %3, %18 : vector<2x48x32xf32>
    %20 = arith.mulf %19, %19 : vector<2x48x32xf32>
    %cst_7 = arith.constant dense<0.000000e+00> : vector<2x48xf32>
    %21 = vector.multi_reduction <add>, %20, %cst_7 [2] : vector<2x48x32xf32> to vector<2x48xf32>
    %22 = vector.shape_cast %21 : vector<2x48xf32> to vector<2x48x1xf32>
    %cst_8 = arith.constant 3.200000e+01 : f32
    %23 = vector.broadcast %cst_8 : f32 to vector<2x48x1xf32>
    %24 = arith.divf %22, %23 : vector<2x48x1xf32>
    %25 = vector.broadcast %17 : vector<2x48x1xf32> to vector<2x48x32xf32>
    %26 = arith.subf %3, %25 : vector<2x48x32xf32>
    %cst_9 = arith.constant 9.99999974E-6 : f32
    %27 = vector.broadcast %cst_9 : f32 to vector<2x48x1xf32>
    %28 = arith.addf %24, %27 : vector<2x48x1xf32>
    %29 = math.rsqrt %28 : vector<2x48x1xf32>
    %30 = vector.broadcast %29 : vector<2x48x1xf32> to vector<2x48x32xf32>
    %31 = arith.mulf %26, %30 : vector<2x48x32xf32>
    %32 = vector.shape_cast %6 : vector<1x32xf32> to vector<1x1x32xf32>
    %33 = vector.broadcast %32 : vector<1x1x32xf32> to vector<2x48x32xf32>
    %34 = arith.mulf %31, %33 : vector<2x48x32xf32>
    %35 = vector.shape_cast %7 : vector<1x32xf32> to vector<1x1x32xf32>
    %36 = vector.broadcast %35 : vector<1x1x32xf32> to vector<2x48x32xf32>
    %37 = arith.addf %34, %36 : vector<2x48x32xf32>
    %38 = vector.shape_cast %37 : vector<2x48x32xf32> to vector<96x32xf32>
    %39 = arith.truncf %38 : vector<96x32xf32> to vector<96x32xbf16>
    %c0_10 = arith.constant 0 : index
    %c0_11 = arith.constant 0 : index
    %c0_12 = arith.constant 0 : index
    %40 = vector.load %arg2[%c0_10, %c0_11, %c0_12] : memref<1x32x96xbf16, #tpu.memory_space<vmem>>, vector<1x32x96xbf16>
    %41 = vector.shape_cast %40 : vector<1x32x96xbf16> to vector<32x96xbf16>
    %cst_13 = arith.constant dense<0.000000e+00> : vector<96x96xf32>
    %42 = tpu.matmul %39, %41, %cst_13 {dimension_numbers = #tpu.dot_dimension_numbers<[1], [0], [0], [1], [0, 0, 1, 1], [], []>} : vector<96x32xbf16>, vector<32x96xbf16>, vector<96x96xf32> -> vector<96x96xf32>
    %43 = vector.broadcast %8 : vector<1x96xf32> to vector<96x96xf32>
    %44 = arith.addf %42, %43 : vector<96x96xf32>
    %45 = tpu.iota {dimensions = array<i32: 2>} : vector<1x1x48xi32>
    %c41_i32 = arith.constant 41 : i32
    %46 = vector.broadcast %c41_i32 : i32 to vector<1x1x48xi32>
    %47 = arith.cmpi slt, %45, %46 : vector<1x1x48xi32>
    %48 = vector.extract_strided_slice %44 {offsets = [0, 0], sizes = [96, 8], strides = [1, 1]} : vector<96x96xf32> to vector<96x8xf32>
    %49 = vector.shape_cast %48 : vector<96x8xf32> to vector<2x48x8xf32>
    %50 = vector.extract_strided_slice %44 {offsets = [0, 32], sizes = [96, 8], strides = [1, 1]} : vector<96x96xf32> to vector<96x8xf32>
    %51 = vector.shape_cast %50 : vector<96x8xf32> to vector<2x48x8xf32>
    %52 = vector.extract_strided_slice %44 {offsets = [0, 64], sizes = [96, 8], strides = [1, 1]} : vector<96x96xf32> to vector<96x8xf32>
    %53 = vector.shape_cast %52 : vector<96x8xf32> to vector<2x48x8xf32>
    %54 = arith.truncf %49 : vector<2x48x8xf32> to vector<2x48x8xbf16>
    %55 = arith.truncf %51 : vector<2x48x8xf32> to vector<2x48x8xbf16>
    "tpu.trace_start"() <{level = 10 : i32, message = "bqd,bkd->bqk"}> : () -> ()
    %cst_14 = arith.constant dense<0.000000e+00> : vector<2x48x48xf32>
    %56 = tpu.matmul %54, %55, %cst_14 {dimension_numbers = #tpu.dot_dimension_numbers<[2], [2], [1], [1], [0, 0, 0, 1, 1, 1], [0], [0]>} : vector<2x48x8xbf16>, vector<2x48x8xbf16>, vector<2x48x48xf32> -> vector<2x48x48xf32>
    "tpu.trace_stop"() : () -> ()
    %cst_15 = arith.constant 0.353553385 : f32
    %57 = vector.broadcast %cst_15 : f32 to vector<2x48x48xf32>
    %58 = arith.mulf %56, %57 : vector<2x48x48xf32>
    %cst_16 = arith.constant -1.000000e+30 : f32
    %59 = vector.shape_cast %47 : vector<1x1x48xi1> to vector<1x1x48xi1>
    %60 = vector.broadcast %59 : vector<1x1x48xi1> to vector<2x48x48xi1>
    %61 = vector.broadcast %cst_16 : f32 to vector<2x48x48xf32>
    %62 = arith.select %60, %58, %61 : vector<2x48x48xi1>, vector<2x48x48xf32>
    %cst_17 = arith.constant dense<0xFF800000> : vector<2x48xf32>
    %63 = vector.multi_reduction <maximumf>, %62, %cst_17 [2] : vector<2x48x48xf32> to vector<2x48xf32>
    %64 = vector.shape_cast %63 : vector<2x48xf32> to vector<2x48x1xf32>
    %65 = vector.broadcast %64 : vector<2x48x1xf32> to vector<2x48x48xf32>
    %66 = arith.subf %62, %65 : vector<2x48x48xf32>
    %67 = math.exp %66 : vector<2x48x48xf32>
    %cst_18 = arith.constant dense<0.000000e+00> : vector<2x48xf32>
    %68 = vector.multi_reduction <add>, %67, %cst_18 [2] : vector<2x48x48xf32> to vector<2x48xf32>
    %69 = vector.shape_cast %68 : vector<2x48xf32> to vector<2x48x1xf32>
    %70 = tpu.reciprocal %69 {approx = true} : vector<2x48x1xf32> -> vector<2x48x1xf32>
    %71 = vector.broadcast %70 : vector<2x48x1xf32> to vector<2x48x48xf32>
    %72 = arith.mulf %67, %71 : vector<2x48x48xf32>
    %73 = arith.truncf %72 : vector<2x48x48xf32> to vector<2x48x48xbf16>
    %74 = arith.truncf %53 : vector<2x48x8xf32> to vector<2x48x8xbf16>
    "tpu.trace_start"() <{level = 10 : i32, message = "bqk,bkd->bqd"}> : () -> ()
    %cst_19 = arith.constant dense<0.000000e+00> : vector<2x48x8xf32>
    %75 = tpu.matmul %73, %74, %cst_19 {dimension_numbers = #tpu.dot_dimension_numbers<[2], [1], [1], [2], [0, 0, 0, 1, 1, 2], [0], [0]>} : vector<2x48x48xbf16>, vector<2x48x8xbf16>, vector<2x48x8xf32> -> vector<2x48x8xf32>
    "tpu.trace_stop"() : () -> ()
    %76 = vector.extract_strided_slice %44 {offsets = [0, 8], sizes = [96, 8], strides = [1, 1]} : vector<96x96xf32> to vector<96x8xf32>
    %77 = vector.shape_cast %76 : vector<96x8xf32> to vector<2x48x8xf32>
    %78 = vector.extract_strided_slice %44 {offsets = [0, 40], sizes = [96, 8], strides = [1, 1]} : vector<96x96xf32> to vector<96x8xf32>
    %79 = vector.shape_cast %78 : vector<96x8xf32> to vector<2x48x8xf32>
    %80 = vector.extract_strided_slice %44 {offsets = [0, 72], sizes = [96, 8], strides = [1, 1]} : vector<96x96xf32> to vector<96x8xf32>
    %81 = vector.shape_cast %80 : vector<96x8xf32> to vector<2x48x8xf32>
    %82 = arith.truncf %77 : vector<2x48x8xf32> to vector<2x48x8xbf16>
    %83 = arith.truncf %79 : vector<2x48x8xf32> to vector<2x48x8xbf16>
    "tpu.trace_start"() <{level = 10 : i32, message = "bqd,bkd->bqk"}> : () -> ()
    %cst_20 = arith.constant dense<0.000000e+00> : vector<2x48x48xf32>
    %84 = tpu.matmul %82, %83, %cst_20 {dimension_numbers = #tpu.dot_dimension_numbers<[2], [2], [1], [1], [0, 0, 0, 1, 1, 1], [0], [0]>} : vector<2x48x8xbf16>, vector<2x48x8xbf16>, vector<2x48x48xf32> -> vector<2x48x48xf32>
    "tpu.trace_stop"() : () -> ()
    %cst_21 = arith.constant 0.353553385 : f32
    %85 = vector.broadcast %cst_21 : f32 to vector<2x48x48xf32>
    %86 = arith.mulf %84, %85 : vector<2x48x48xf32>
    %cst_22 = arith.constant -1.000000e+30 : f32
    %87 = vector.shape_cast %47 : vector<1x1x48xi1> to vector<1x1x48xi1>
    %88 = vector.broadcast %87 : vector<1x1x48xi1> to vector<2x48x48xi1>
    %89 = vector.broadcast %cst_22 : f32 to vector<2x48x48xf32>
    %90 = arith.select %88, %86, %89 : vector<2x48x48xi1>, vector<2x48x48xf32>
    %cst_23 = arith.constant dense<0xFF800000> : vector<2x48xf32>
    %91 = vector.multi_reduction <maximumf>, %90, %cst_23 [2] : vector<2x48x48xf32> to vector<2x48xf32>
    %92 = vector.shape_cast %91 : vector<2x48xf32> to vector<2x48x1xf32>
    %93 = vector.broadcast %92 : vector<2x48x1xf32> to vector<2x48x48xf32>
    %94 = arith.subf %90, %93 : vector<2x48x48xf32>
    %95 = math.exp %94 : vector<2x48x48xf32>
    %cst_24 = arith.constant dense<0.000000e+00> : vector<2x48xf32>
    %96 = vector.multi_reduction <add>, %95, %cst_24 [2] : vector<2x48x48xf32> to vector<2x48xf32>
    %97 = vector.shape_cast %96 : vector<2x48xf32> to vector<2x48x1xf32>
    %98 = tpu.reciprocal %97 {approx = true} : vector<2x48x1xf32> -> vector<2x48x1xf32>
    %99 = vector.broadcast %98 : vector<2x48x1xf32> to vector<2x48x48xf32>
    %100 = arith.mulf %95, %99 : vector<2x48x48xf32>
    %101 = arith.truncf %100 : vector<2x48x48xf32> to vector<2x48x48xbf16>
    %102 = arith.truncf %81 : vector<2x48x8xf32> to vector<2x48x8xbf16>
    "tpu.trace_start"() <{level = 10 : i32, message = "bqk,bkd->bqd"}> : () -> ()
    %cst_25 = arith.constant dense<0.000000e+00> : vector<2x48x8xf32>
    %103 = tpu.matmul %101, %102, %cst_25 {dimension_numbers = #tpu.dot_dimension_numbers<[2], [1], [1], [2], [0, 0, 0, 1, 1, 2], [0], [0]>} : vector<2x48x48xbf16>, vector<2x48x8xbf16>, vector<2x48x8xf32> -> vector<2x48x8xf32>
    "tpu.trace_stop"() : () -> ()
    %104 = vector.extract_strided_slice %44 {offsets = [0, 16], sizes = [96, 8], strides = [1, 1]} : vector<96x96xf32> to vector<96x8xf32>
    %105 = vector.shape_cast %104 : vector<96x8xf32> to vector<2x48x8xf32>
    %106 = vector.extract_strided_slice %44 {offsets = [0, 48], sizes = [96, 8], strides = [1, 1]} : vector<96x96xf32> to vector<96x8xf32>
    %107 = vector.shape_cast %106 : vector<96x8xf32> to vector<2x48x8xf32>
    %108 = vector.extract_strided_slice %44 {offsets = [0, 80], sizes = [96, 8], strides = [1, 1]} : vector<96x96xf32> to vector<96x8xf32>
    %109 = vector.shape_cast %108 : vector<96x8xf32> to vector<2x48x8xf32>
    %110 = arith.truncf %105 : vector<2x48x8xf32> to vector<2x48x8xbf16>
    %111 = arith.truncf %107 : vector<2x48x8xf32> to vector<2x48x8xbf16>
    "tpu.trace_start"() <{level = 10 : i32, message = "bqd,bkd->bqk"}> : () -> ()
    %cst_26 = arith.constant dense<0.000000e+00> : vector<2x48x48xf32>
    %112 = tpu.matmul %110, %111, %cst_26 {dimension_numbers = #tpu.dot_dimension_numbers<[2], [2], [1], [1], [0, 0, 0, 1, 1, 1], [0], [0]>} : vector<2x48x8xbf16>, vector<2x48x8xbf16>, vector<2x48x48xf32> -> vector<2x48x48xf32>
    "tpu.trace_stop"() : () -> ()
    %cst_27 = arith.constant 0.353553385 : f32
    %113 = vector.broadcast %cst_27 : f32 to vector<2x48x48xf32>
    %114 = arith.mulf %112, %113 : vector<2x48x48xf32>
    %cst_28 = arith.constant -1.000000e+30 : f32
    %115 = vector.shape_cast %47 : vector<1x1x48xi1> to vector<1x1x48xi1>
    %116 = vector.broadcast %115 : vector<1x1x48xi1> to vector<2x48x48xi1>
    %117 = vector.broadcast %cst_28 : f32 to vector<2x48x48xf32>
    %118 = arith.select %116, %114, %117 : vector<2x48x48xi1>, vector<2x48x48xf32>
    %cst_29 = arith.constant dense<0xFF800000> : vector<2x48xf32>
    %119 = vector.multi_reduction <maximumf>, %118, %cst_29 [2] : vector<2x48x48xf32> to vector<2x48xf32>
    %120 = vector.shape_cast %119 : vector<2x48xf32> to vector<2x48x1xf32>
    %121 = vector.broadcast %120 : vector<2x48x1xf32> to vector<2x48x48xf32>
    %122 = arith.subf %118, %121 : vector<2x48x48xf32>
    %123 = math.exp %122 : vector<2x48x48xf32>
    %cst_30 = arith.constant dense<0.000000e+00> : vector<2x48xf32>
    %124 = vector.multi_reduction <add>, %123, %cst_30 [2] : vector<2x48x48xf32> to vector<2x48xf32>
    %125 = vector.shape_cast %124 : vector<2x48xf32> to vector<2x48x1xf32>
    %126 = tpu.reciprocal %125 {approx = true} : vector<2x48x1xf32> -> vector<2x48x1xf32>
    %127 = vector.broadcast %126 : vector<2x48x1xf32> to vector<2x48x48xf32>
    %128 = arith.mulf %123, %127 : vector<2x48x48xf32>
    %129 = arith.truncf %128 : vector<2x48x48xf32> to vector<2x48x48xbf16>
    %130 = arith.truncf %109 : vector<2x48x8xf32> to vector<2x48x8xbf16>
    "tpu.trace_start"() <{level = 10 : i32, message = "bqk,bkd->bqd"}> : () -> ()
    %cst_31 = arith.constant dense<0.000000e+00> : vector<2x48x8xf32>
    %131 = tpu.matmul %129, %130, %cst_31 {dimension_numbers = #tpu.dot_dimension_numbers<[2], [1], [1], [2], [0, 0, 0, 1, 1, 2], [0], [0]>} : vector<2x48x48xbf16>, vector<2x48x8xbf16>, vector<2x48x8xf32> -> vector<2x48x8xf32>
    "tpu.trace_stop"() : () -> ()
    %132 = vector.extract_strided_slice %44 {offsets = [0, 24], sizes = [96, 8], strides = [1, 1]} : vector<96x96xf32> to vector<96x8xf32>
    %133 = vector.shape_cast %132 : vector<96x8xf32> to vector<2x48x8xf32>
    %134 = vector.extract_strided_slice %44 {offsets = [0, 56], sizes = [96, 8], strides = [1, 1]} : vector<96x96xf32> to vector<96x8xf32>
    %135 = vector.shape_cast %134 : vector<96x8xf32> to vector<2x48x8xf32>
    %136 = vector.extract_strided_slice %44 {offsets = [0, 88], sizes = [96, 8], strides = [1, 1]} : vector<96x96xf32> to vector<96x8xf32>
    %137 = vector.shape_cast %136 : vector<96x8xf32> to vector<2x48x8xf32>
    %138 = arith.truncf %133 : vector<2x48x8xf32> to vector<2x48x8xbf16>
    %139 = arith.truncf %135 : vector<2x48x8xf32> to vector<2x48x8xbf16>
    "tpu.trace_start"() <{level = 10 : i32, message = "bqd,bkd->bqk"}> : () -> ()
    %cst_32 = arith.constant dense<0.000000e+00> : vector<2x48x48xf32>
    %140 = tpu.matmul %138, %139, %cst_32 {dimension_numbers = #tpu.dot_dimension_numbers<[2], [2], [1], [1], [0, 0, 0, 1, 1, 1], [0], [0]>} : vector<2x48x8xbf16>, vector<2x48x8xbf16>, vector<2x48x48xf32> -> vector<2x48x48xf32>
    "tpu.trace_stop"() : () -> ()
    %cst_33 = arith.constant 0.353553385 : f32
    %141 = vector.broadcast %cst_33 : f32 to vector<2x48x48xf32>
    %142 = arith.mulf %140, %141 : vector<2x48x48xf32>
    %cst_34 = arith.constant -1.000000e+30 : f32
    %143 = vector.shape_cast %47 : vector<1x1x48xi1> to vector<1x1x48xi1>
    %144 = vector.broadcast %143 : vector<1x1x48xi1> to vector<2x48x48xi1>
    %145 = vector.broadcast %cst_34 : f32 to vector<2x48x48xf32>
    %146 = arith.select %144, %142, %145 : vector<2x48x48xi1>, vector<2x48x48xf32>
    %cst_35 = arith.constant dense<0xFF800000> : vector<2x48xf32>
    %147 = vector.multi_reduction <maximumf>, %146, %cst_35 [2] : vector<2x48x48xf32> to vector<2x48xf32>
    %148 = vector.shape_cast %147 : vector<2x48xf32> to vector<2x48x1xf32>
    %149 = vector.broadcast %148 : vector<2x48x1xf32> to vector<2x48x48xf32>
    %150 = arith.subf %146, %149 : vector<2x48x48xf32>
    %151 = math.exp %150 : vector<2x48x48xf32>
    %cst_36 = arith.constant dense<0.000000e+00> : vector<2x48xf32>
    %152 = vector.multi_reduction <add>, %151, %cst_36 [2] : vector<2x48x48xf32> to vector<2x48xf32>
    %153 = vector.shape_cast %152 : vector<2x48xf32> to vector<2x48x1xf32>
    %154 = tpu.reciprocal %153 {approx = true} : vector<2x48x1xf32> -> vector<2x48x1xf32>
    %155 = vector.broadcast %154 : vector<2x48x1xf32> to vector<2x48x48xf32>
    %156 = arith.mulf %151, %155 : vector<2x48x48xf32>
    %157 = arith.truncf %156 : vector<2x48x48xf32> to vector<2x48x48xbf16>
    %158 = arith.truncf %137 : vector<2x48x8xf32> to vector<2x48x8xbf16>
    "tpu.trace_start"() <{level = 10 : i32, message = "bqk,bkd->bqd"}> : () -> ()
    %cst_37 = arith.constant dense<0.000000e+00> : vector<2x48x8xf32>
    %159 = tpu.matmul %157, %158, %cst_37 {dimension_numbers = #tpu.dot_dimension_numbers<[2], [1], [1], [2], [0, 0, 0, 1, 1, 2], [0], [0]>} : vector<2x48x48xbf16>, vector<2x48x8xbf16>, vector<2x48x8xf32> -> vector<2x48x8xf32>
    "tpu.trace_stop"() : () -> ()
    %160 = tpu.concatenate %75, %103, %131, %159 in 2 : vector<2x48x8xf32>, vector<2x48x8xf32>, vector<2x48x8xf32>, vector<2x48x8xf32> -> vector<2x48x32xf32>
    %161 = vector.shape_cast %160 : vector<2x48x32xf32> to vector<96x32xf32>
    %162 = arith.truncf %161 : vector<96x32xf32> to vector<96x32xbf16>
    %c0_38 = arith.constant 0 : index
    %c0_39 = arith.constant 0 : index
    %c0_40 = arith.constant 0 : index
    %163 = vector.load %arg3[%c0_38, %c0_39, %c0_40] : memref<1x32x32xbf16, #tpu.memory_space<vmem>>, vector<1x32x32xbf16>
    %164 = vector.shape_cast %163 : vector<1x32x32xbf16> to vector<32x32xbf16>
    %cst_41 = arith.constant dense<0.000000e+00> : vector<96x32xf32>
    %165 = tpu.matmul %162, %164, %cst_41 {dimension_numbers = #tpu.dot_dimension_numbers<[1], [0], [0], [1], [0, 0, 1, 1], [], []>} : vector<96x32xbf16>, vector<32x32xbf16>, vector<96x32xf32> -> vector<96x32xf32>
    %166 = vector.broadcast %9 : vector<1x32xf32> to vector<96x32xf32>
    %167 = arith.addf %165, %166 : vector<96x32xf32>
    %168 = vector.shape_cast %167 : vector<96x32xf32> to vector<2x48x32xf32>
    %169 = arith.addf %3, %168 : vector<2x48x32xf32>
    %cst_42 = arith.constant dense<0.000000e+00> : vector<2x48xf32>
    %170 = vector.multi_reduction <add>, %169, %cst_42 [2] : vector<2x48x32xf32> to vector<2x48xf32>
    %171 = vector.shape_cast %170 : vector<2x48xf32> to vector<2x48x1xf32>
    %cst_43 = arith.constant 3.200000e+01 : f32
    %172 = vector.broadcast %cst_43 : f32 to vector<2x48x1xf32>
    %173 = arith.divf %171, %172 : vector<2x48x1xf32>
    %174 = vector.broadcast %173 : vector<2x48x1xf32> to vector<2x48x32xf32>
    %175 = arith.subf %169, %174 : vector<2x48x32xf32>
    %176 = arith.mulf %175, %175 : vector<2x48x32xf32>
    %cst_44 = arith.constant dense<0.000000e+00> : vector<2x48xf32>
    %177 = vector.multi_reduction <add>, %176, %cst_44 [2] : vector<2x48x32xf32> to vector<2x48xf32>
    %178 = vector.shape_cast %177 : vector<2x48xf32> to vector<2x48x1xf32>
    %cst_45 = arith.constant 3.200000e+01 : f32
    %179 = vector.broadcast %cst_45 : f32 to vector<2x48x1xf32>
    %180 = arith.divf %178, %179 : vector<2x48x1xf32>
    %181 = vector.broadcast %173 : vector<2x48x1xf32> to vector<2x48x32xf32>
    %182 = arith.subf %169, %181 : vector<2x48x32xf32>
    %cst_46 = arith.constant 9.99999974E-6 : f32
    %183 = vector.broadcast %cst_46 : f32 to vector<2x48x1xf32>
    %184 = arith.addf %180, %183 : vector<2x48x1xf32>
    %185 = math.rsqrt %184 : vector<2x48x1xf32>
    %186 = vector.broadcast %185 : vector<2x48x1xf32> to vector<2x48x32xf32>
    %187 = arith.mulf %182, %186 : vector<2x48x32xf32>
    %188 = vector.shape_cast %10 : vector<1x32xf32> to vector<1x1x32xf32>
    %189 = vector.broadcast %188 : vector<1x1x32xf32> to vector<2x48x32xf32>
    %190 = arith.mulf %187, %189 : vector<2x48x32xf32>
    %191 = vector.shape_cast %11 : vector<1x32xf32> to vector<1x1x32xf32>
    %192 = vector.broadcast %191 : vector<1x1x32xf32> to vector<2x48x32xf32>
    %193 = arith.addf %190, %192 : vector<2x48x32xf32>
    %194 = vector.shape_cast %193 : vector<2x48x32xf32> to vector<96x32xf32>
    %195 = arith.truncf %194 : vector<96x32xf32> to vector<96x32xbf16>
    %c0_47 = arith.constant 0 : index
    %c0_48 = arith.constant 0 : index
    %c0_49 = arith.constant 0 : index
    %196 = vector.load %arg4[%c0_47, %c0_48, %c0_49] : memref<1x32x128xbf16, #tpu.memory_space<vmem>>, vector<1x32x128xbf16>
    %197 = vector.shape_cast %196 : vector<1x32x128xbf16> to vector<32x128xbf16>
    %cst_50 = arith.constant dense<0.000000e+00> : vector<96x128xf32>
    %198 = tpu.matmul %195, %197, %cst_50 {dimension_numbers = #tpu.dot_dimension_numbers<[1], [0], [0], [1], [0, 0, 1, 1], [], []>} : vector<96x32xbf16>, vector<32x128xbf16>, vector<96x128xf32> -> vector<96x128xf32>
    %199 = vector.broadcast %12 : vector<1x128xf32> to vector<96x128xf32>
    %200 = arith.addf %198, %199 : vector<96x128xf32>
    %cst_51 = arith.constant 5.000000e-01 : f32
    %201 = vector.broadcast %cst_51 : f32 to vector<96x128xf32>
    %202 = arith.mulf %201, %200 : vector<96x128xf32>
    %cst_52 = arith.constant 0.707106769 : f32
    %203 = vector.broadcast %cst_52 : f32 to vector<96x128xf32>
    %204 = arith.mulf %200, %203 : vector<96x128xf32>
    %205 = math.erf %204 : vector<96x128xf32>
    %cst_53 = arith.constant 1.000000e+00 : f32
    %206 = vector.broadcast %cst_53 : f32 to vector<96x128xf32>
    %207 = arith.addf %206, %205 : vector<96x128xf32>
    %208 = arith.mulf %202, %207 : vector<96x128xf32>
    %209 = arith.truncf %208 : vector<96x128xf32> to vector<96x128xbf16>
    %c0_54 = arith.constant 0 : index
    %c0_55 = arith.constant 0 : index
    %c0_56 = arith.constant 0 : index
    %210 = vector.load %arg5[%c0_54, %c0_55, %c0_56] : memref<1x128x32xbf16, #tpu.memory_space<vmem>>, vector<1x128x32xbf16>
    %211 = vector.shape_cast %210 : vector<1x128x32xbf16> to vector<128x32xbf16>
    %cst_57 = arith.constant dense<0.000000e+00> : vector<96x32xf32>
    %212 = tpu.matmul %209, %211, %cst_57 {dimension_numbers = #tpu.dot_dimension_numbers<[1], [0], [0], [1], [0, 0, 1, 1], [], []>} : vector<96x128xbf16>, vector<128x32xbf16>, vector<96x32xf32> -> vector<96x32xf32>
    %213 = vector.broadcast %13 : vector<1x32xf32> to vector<96x32xf32>
    %214 = arith.addf %212, %213 : vector<96x32xf32>
    %215 = vector.shape_cast %214 : vector<96x32xf32> to vector<2x48x32xf32>
    %216 = arith.addf %169, %215 : vector<2x48x32xf32>
    %c0_58 = arith.constant 0 : index
    %c0_59 = arith.constant 0 : index
    %c0_60 = arith.constant 0 : index
    %217 = vector.load %arg7[%c0_58, %c0_59, %c0_60] : memref<2x48x32xf32, #tpu.memory_space<vmem>>, vector<2x48x32xf32>
    tpu.vector_store %arg7[%c0_58, %c0_59, %c0_60], %216 {strides = array<i32>} : memref<2x48x32xf32, #tpu.memory_space<vmem>>, vector<2x48x32xf32>,
    return
  }
  func.func @transform_0(%arg0: i32) -> (i32, i32, i32) {
    %c0_i32 = arith.constant 0 : i32
    %c0_i32_0 = arith.constant 0 : i32
    %c0_i32_1 = arith.constant 0 : i32
    %c0_i32_2 = arith.constant 0 : i32
    return %c0_i32, %c0_i32_0, %c0_i32_1 : i32, i32, i32
  }
  func.func @transform_1(%arg0: i32) -> (i32, i32, i32) {
    %c0_i32 = arith.constant 0 : i32
    %c0_i32_0 = arith.constant 0 : i32
    %c0_i32_1 = arith.constant 0 : i32
    return %arg0, %c0_i32, %c0_i32_0 : i32, i32, i32
  }
  func.func @transform_2(%arg0: i32) -> (i32, i32, i32) {
    %c0_i32 = arith.constant 0 : i32
    %c0_i32_0 = arith.constant 0 : i32
    %c0_i32_1 = arith.constant 0 : i32
    return %arg0, %c0_i32, %c0_i32_0 : i32, i32, i32
  }
  func.func @transform_3(%arg0: i32) -> (i32, i32, i32) {
    %c0_i32 = arith.constant 0 : i32
    %c0_i32_0 = arith.constant 0 : i32
    %c0_i32_1 = arith.constant 0 : i32
    return %arg0, %c0_i32, %c0_i32_0 : i32, i32, i32
  }
  func.func @transform_4(%arg0: i32) -> (i32, i32, i32) {
    %c0_i32 = arith.constant 0 : i32
    %c0_i32_0 = arith.constant 0 : i32
    %c0_i32_1 = arith.constant 0 : i32
    return %arg0, %c0_i32, %c0_i32_0 : i32, i32, i32
  }
  func.func @transform_5(%arg0: i32) -> (i32, i32, i32) {
    %c0_i32 = arith.constant 0 : i32
    %c0_i32_0 = arith.constant 0 : i32
    %c0_i32_1 = arith.constant 0 : i32
    return %arg0, %c0_i32, %c0_i32_0 : i32, i32, i32
  }
  func.func @transform_6(%arg0: i32) -> (i32, i32, i32) {
    %c0_i32 = arith.constant 0 : i32
    %c0_i32_0 = arith.constant 0 : i32
    %c0_i32_1 = arith.constant 0 : i32
    %c0_i32_2 = arith.constant 0 : i32
    return %c0_i32, %c0_i32_0, %c0_i32_1 : i32, i32, i32
  }
}

module attributes {stable_mosaic.version = 11 : i64} {
  func.func @_head_kernel(%arg0: memref<2x32xf32, #tpu.memory_space<vmem>>, %arg1: memref<32x2xbf16, #tpu.memory_space<vmem>>, %arg2: memref<1x2xf32, #tpu.memory_space<vmem>>, %arg3: memref<2x2xf32, #tpu.memory_space<vmem>>) attributes {dimension_semantics = [], scalar_prefetch = 0 : i64, scratch_operands = 0 : i64, tpu.core_type = #tpu.core_type<tc>} {
    %c0 = arith.constant 0 : index
    %c0_0 = arith.constant 0 : index
    %0 = vector.load %arg0[%c0, %c0_0] : memref<2x32xf32, #tpu.memory_space<vmem>>, vector<2x32xf32>
    %1 = arith.truncf %0 : vector<2x32xf32> to vector<2x32xbf16>
    %c0_1 = arith.constant 0 : index
    %c0_2 = arith.constant 0 : index
    %2 = vector.load %arg1[%c0_1, %c0_2] : memref<32x2xbf16, #tpu.memory_space<vmem>>, vector<32x2xbf16>
    %cst = arith.constant dense<0.000000e+00> : vector<2x2xf32>
    %3 = tpu.matmul %1, %2, %cst {dimension_numbers = #tpu.dot_dimension_numbers<[1], [0], [0], [1], [0, 0, 1, 1], [], []>} : vector<2x32xbf16>, vector<32x2xbf16>, vector<2x2xf32> -> vector<2x2xf32>
    %c0_3 = arith.constant 0 : index
    %c0_4 = arith.constant 0 : index
    %4 = vector.load %arg2[%c0_3, %c0_4] : memref<1x2xf32, #tpu.memory_space<vmem>>, vector<1x2xf32>
    %5 = vector.broadcast %4 : vector<1x2xf32> to vector<2x2xf32>
    %6 = arith.addf %3, %5 : vector<2x2xf32>
    %cst_5 = arith.constant dense<0xFF800000> : vector<2xf32>
    %7 = vector.multi_reduction <maximumf>, %6, %cst_5 [1] : vector<2x2xf32> to vector<2xf32>
    %8 = vector.shape_cast %7 : vector<2xf32> to vector<2x1xf32>
    %9 = vector.broadcast %8 : vector<2x1xf32> to vector<2x2xf32>
    %10 = arith.subf %6, %9 : vector<2x2xf32>
    %11 = math.exp %10 : vector<2x2xf32>
    %cst_6 = arith.constant dense<0.000000e+00> : vector<2xf32>
    %12 = vector.multi_reduction <add>, %11, %cst_6 [1] : vector<2x2xf32> to vector<2xf32>
    %13 = vector.shape_cast %12 : vector<2xf32> to vector<2x1xf32>
    %14 = math.log %13 : vector<2x1xf32>
    %15 = vector.broadcast %14 : vector<2x1xf32> to vector<2x2xf32>
    %16 = arith.subf %10, %15 : vector<2x2xf32>
    %c0_7 = arith.constant 0 : index
    %c0_8 = arith.constant 0 : index
    %17 = vector.load %arg3[%c0_7, %c0_8] : memref<2x2xf32, #tpu.memory_space<vmem>>, vector<2x2xf32>
    tpu.vector_store %arg3[%c0_7, %c0_8], %16 {strides = array<i32>} : memref<2x2xf32, #tpu.memory_space<vmem>>, vector<2x2xf32>,
    return
  }
}

</mosaic_0001>

<llo_original>
// kernel: timesformer_forward.3
$region0: #{timesformer_forward.3}
  #allocation0 [shape = 'u32[]', space=smem, size = 0x4, offset = 0x4, fixed_abs, tag = 'smem constant byte address 0x4 - core index']
  #allocation1 [shape = 'u32[144,128]{1,0:T(1,128)}', space=vmem, size = 0x12000, scoped, tag = 'internal scratch']
  %s0 = inlined_call_operand.vmem [shape: f32[80,80], index: 0, kind: input, shape index: {}]
  %s1 = inlined_call_operand.vmem [shape: bf16[80,32], index: 1, kind: input, shape index: {}]
  %s2 = inlined_call_operand.vmem [shape: f32[1,32], index: 2, kind: input, shape index: {}]
  %s3 = inlined_call_operand.vmem [shape: f32[80,32], index: 3, kind: output, shape index: {}]
  %s4 = sld [smem:[#allocation0]]
  $region22: #{timesformer_forward.3} parent=0
    _
  %s6 = ssub.s32 1, %s4
  %s7 = scalar_select 0, %s6, %s4
  // Predicated region
  $region2: #{timesformer_forward.3} parent=0 // pred_check
    _
  $region3: #{timesformer_forward.3} parent=0 // pred_check_branch
    %9 = sbr.rel (0) target = $region5
  $region4: #{timesformer_forward.3} parent=0 // pred_region
    _
  $region5: #{timesformer_forward.3} parent=0 // pred_fallthru
    _
  // Predicated region
  $region6: #{timesformer_forward.3} parent=0 // pred_check
    _
  $region7: #{timesformer_forward.3} parent=0 // pred_check_branch
    %11 = sbr.rel (0) target = $region9
  $region8: #{timesformer_forward.3} parent=0 // pred_region
    _
  $region9: #{timesformer_forward.3} parent=0 // pred_fallthru
    _
  // Predicated region
  $region10: #{timesformer_forward.3} parent=0 // pred_check
    _
  $region11: #{timesformer_forward.3} parent=0 // pred_check_branch
    %13 = sbr.rel (0) target = $region13
  $region12: #{timesformer_forward.3} parent=0 // pred_region
    _
  $region13: #{timesformer_forward.3} parent=0 // pred_fallthru
    _
  %v15 = vld [vmem:[%s0] sm:$0xff]
  %v16 = vld [vmem:[%s0 + $0x8] sm:$0xff]
  %v17 = vld [vmem:[%s0 + $0x10] sm:$0xff]
  %v18 = vld [vmem:[%s0 + $0x18] sm:$0xff]
  %v19 = vld [vmem:[%s0 + $0x20] sm:$0xff]
  %v20 = vld [vmem:[%s0 + $0x28] sm:$0xff]
  %v21 = vld [vmem:[%s0 + $0x30] sm:$0xff]
  %v22 = vld [vmem:[%s0 + $0x38] sm:$0xff]
  %v23 = vld [vmem:[%s0 + $0x40] sm:$0xff]
  %v24 = vld [vmem:[%s0 + $0x48] sm:$0xff]
  %v25 = vpack.c.bf16 %v16, %v15
  %v26 = vpack.c.bf16 %v18, %v17
  %v27 = vpack.c.bf16 %v20, %v19
  %v28 = vpack.c.bf16 %v22, %v21
  %v29 = vpack.c.bf16 %v24, %v23
  %v30 = vld [vmem:[%s1] sm:$0xf]
  %v31 = vld [vmem:[%s1 + $0x4] sm:$0xf]
  %v32 = vld [vmem:[%s1 + $0x8] sm:$0xf]
  %v33 = vld [vmem:[%s1 + $0xc] sm:$0xf]
  %v34 = vld [vmem:[%s1 + $0x10] sm:$0xf]
  %v35 = vld [vmem:[%s1 + $0x14] sm:$0xf]
  %v36 = vld [vmem:[%s1 + $0x18] sm:$0xf]
  %v37 = vld [vmem:[%s1 + $0x1c] sm:$0xf]
  %v38 = vld [vmem:[%s1 + $0x20] sm:$0xf]
  %v39 = vld [vmem:[%s1 + $0x24] sm:$0xf]
  %v40 = vld [vmem:[%s2] sm:$0x1]
  %v42 = vlaneseq
  %v43 = vshrl.u32 %v42, 7
  %v44 = vsub.s32 0, %v43
  %v45 = vrot.slane %v40, %v44
  %v57 = vunpack.c.l.b16 %v30
  %v58 = vunpack.c.l.b16 %v31
  %v59 = vunpack.c.l.b16 %v32
  %v60 = vunpack.c.l.b16 %v33
  %v61 = vunpack.c.l.b16 %v34
  %v62 = vunpack.c.l.b16 %v35
  %v63 = vunpack.c.l.b16 %v36
  %v64 = vunpack.c.l.b16 %v37
  %v65 = vunpack.c.l.b16 %v38
  %v66 = vunpack.c.l.b16 %v39
  %v67 = vpack.c.b16 %v58, %v57
  %v68 = vpack.c.b16 %v60, %v59
  %v69 = vpack.c.b16 %v62, %v61
  %v70 = vpack.c.b16 %v64, %v63
  %v71 = vpack.c.b16 %v66, %v65
  %vm77 = vcmask 654336
  %v79 = vsel %vm77, %v25, 0
  %v82 = vsel %vm77, %v26, 0
  %v85 = vsel %vm77, %v27, 0
  %v88 = vsel %vm77, %v28, 0
  %v91 = vsel %vm77, %v29, 0
  %93 = vmatprep.subr.bf16.mxu0 0
  %94 = vmatpush1.bf16.msra.mxu0 %v67
  %95 = vmatprep.subr.bf16.mxu0 0
  %96 = vmatpush1.bf16.msra.mxu0 %v68
  %97 = vmatprep.subr.bf16.mxu0 0
  %98 = vmatpush1.bf16.msra.mxu0 %v69
  %99 = vmatprep.subr.bf16.mxu0 0
  %100 = vmatpush1.bf16.msra.mxu0 %v70
  %101 = vmatprep.subr.bf16.mxu0 0
  %102 = vmatpush1.bf16.msra.mxu0 %v71
  %103 = vmatprep.subr.bf16.mxu0 0
  %104 = vmatpush1.bf16.msra.mxu0 0
  %105 = vmatprep.subr.bf16.mxu0 0
  %106 = vmatpush1.bf16.msra.mxu0 0
  %107 = vmatprep.subr.bf16.mxu0 0
  %108 = vmatpush1.bf16.msra.mxu0 0
  %109 = vmatprep.subr.bf16.mxu0 0
  %110 = vmatpush1.bf16.msra.mxu0 0
  %111 = vmatprep.subr.bf16.mxu0 0
  %112 = vmatpush1.bf16.msra.mxu0 0
  %113 = vmatprep.subr.bf16.mxu0 0
  %114 = vmatpush1.bf16.msra.mxu0 0
  %115 = vmatprep.subr.bf16.mxu0 0
  %116 = vmatpush1.bf16.msra.mxu0 0
  %117 = vmatprep.subr.bf16.mxu0 0
  %118 = vmatpush1.bf16.msra.mxu0 0
  %119 = vmatprep.subr.bf16.mxu0 0
  %120 = vmatpush1.bf16.msra.mxu0 0
  %121 = vmatprep.subr.bf16.mxu0 0
  %122 = vmatpush1.bf16.msra.mxu0 0
  %123 = vmatprep.subr.bf16.mxu0 0
  %124 = vmatpush1.bf16.msra.mxu0 0
  %125 = vmatprep.mubr.bf16.mxu0 0
  %126 = vmatmul.mubr.bf16.gmra.mrb[0].mxu0 %v79
  %v127 = vpop.f32.mrb[0].mxu0
  %v128 = vadd.f32 %v45, %v127
  %v129 = vpop.f32.mrb[0].mxu0
  %v130 = vpop.f32.mrb[0].mxu0
  %v131 = vadd.f32 %v45, %v130
  %v132 = vpop.f32.mrb[0].mxu0
  %133 = vmatprep.mubr.bf16.mxu0 0
  %134 = vmatmul.mubr.bf16.gmra.mrb[0].mxu0 %v82
  %v135 = vpop.f32.mrb[0].mxu0
  %v136 = vadd.f32 %v45, %v135
  %v137 = vpop.f32.mrb[0].mxu0
  %v138 = vpop.f32.mrb[0].mxu0
  %v139 = vadd.f32 %v45, %v138
  %v140 = vpop.f32.mrb[0].mxu0
  %141 = vmatprep.mubr.bf16.mxu0 0
  %142 = vmatmul.mubr.bf16.gmra.mrb[0].mxu0 %v85
  %v143 = vpop.f32.mrb[0].mxu0
  %v144 = vadd.f32 %v45, %v143
  %v145 = vpop.f32.mrb[0].mxu0
  %v146 = vpop.f32.mrb[0].mxu0
  %v147 = vadd.f32 %v45, %v146
  %v148 = vpop.f32.mrb[0].mxu0
  %149 = vmatprep.mubr.bf16.mxu0 0
  %150 = vmatmul.mubr.bf16.gmra.mrb[0].mxu0 %v88
  %v151 = vpop.f32.mrb[0].mxu0
  %v152 = vadd.f32 %v45, %v151
  %v153 = vpop.f32.mrb[0].mxu0
  %v154 = vpop.f32.mrb[0].mxu0
  %v155 = vadd.f32 %v45, %v154
  %v156 = vpop.f32.mrb[0].mxu0
  %157 = vmatprep.mubr.bf16.mxu0 0
  %158 = vmatmul.mubr.bf16.gmra.mrb[0].mxu0 %v91
  %v159 = vpop.f32.mrb[0].mxu0
  %v160 = vadd.f32 %v45, %v159
  %v161 = vpop.f32.mrb[0].mxu0
  %v162 = vpop.f32.mrb[0].mxu0
  %v163 = vadd.f32 %v45, %v162
  %v164 = vpop.f32.mrb[0].mxu0
  %165 = vdwg.mxu0
  %vm166 = vcmask 261120
  %167 = vst.msk [vmem:[%s3] sm:$0xff] %vm166, %v128
  %168 = vst.msk [vmem:[%s3 + $0x8] sm:$0xff] %vm166, %v131
  %169 = vst.msk [vmem:[%s3 + $0x10] sm:$0xff] %vm166, %v136
  %170 = vst.msk [vmem:[%s3 + $0x18] sm:$0xff] %vm166, %v139
  %171 = vst.msk [vmem:[%s3 + $0x20] sm:$0xff] %vm166, %v144
  %172 = vst.msk [vmem:[%s3 + $0x28] sm:$0xff] %vm166, %v147
  %173 = vst.msk [vmem:[%s3 + $0x30] sm:$0xff] %vm166, %v152
  %174 = vst.msk [vmem:[%s3 + $0x38] sm:$0xff] %vm166, %v155
  %175 = vst.msk [vmem:[%s3 + $0x40] sm:$0xff] %vm166, %v160
  %176 = vst.msk [vmem:[%s3 + $0x48] sm:$0xff] %vm166, %v163
  // Predicated region
  $region14: #{timesformer_forward.3} parent=0 // pred_check
    _
  $region15: #{timesformer_forward.3} parent=0 // pred_check_branch
    %178 = sbr.rel (0) target = $region17
  $region16: #{timesformer_forward.3} parent=0 // pred_region
    _
  $region17: #{timesformer_forward.3} parent=0 // pred_fallthru
    _
  // Predicated region
  $region18: #{timesformer_forward.3} parent=0 // pred_check
    _
  $region19: #{timesformer_forward.3} parent=0 // pred_check_branch
    %180 = sbr.rel (0) target = $region21
  $region20: #{timesformer_forward.3} parent=0 // pred_region
    _
  $region21: #{timesformer_forward.3} parent=0 // pred_fallthru
    _

// kernel: timesformer_forward.5
$region0: #{timesformer_forward.5}
  #allocation0 [shape = 'u32[]', space=smem, size = 0x4, offset = 0x4, fixed_abs, tag = 'smem constant byte address 0x4 - core index']
  #allocation1 [shape = 'u32[144,128]{1,0:T(1,128)}', space=vmem, size = 0x12000, scoped, tag = 'internal scratch']
  %s0 = inlined_call_operand.vmem [shape: f32[2,32], index: 0, kind: input, shape index: {}]
  %s1 = inlined_call_operand.vmem [shape: bf16[32,2], index: 1, kind: input, shape index: {}]
  %s2 = inlined_call_operand.vmem [shape: f32[1,2], index: 2, kind: input, shape index: {}]
  %s3 = inlined_call_operand.hbm [shape: f32[2,2], index: 3, kind: output, shape index: {}]
  %s4 = sld [smem:[#allocation0]]
  $region22: #{timesformer_forward.5} parent=0
    _
  %s6 = ssub.s32 1, %s4
  %s7 = scalar_select 0, %s6, %s4
  $region1: #{timesformer_forward.5} parent=0
    #allocation2 [shape = 'u8[1024]{0}', space=vmem, size = 0x400, scoped, tag = 'output window, operand 0, single buffered']
    #allocation3 [shape = 's32[1]{0}', space=sflag, size = 0x4, scoped, tag = 'scoped memory for timesformer_forward.5']
    %8 = vsyncpa [#allocation3], 0
    // Predicated region
    $region2: #{timesformer_forward.5} parent=1 // pred_check
      _
    $region3: #{timesformer_forward.5} parent=1 // pred_check_branch
      %10 = sbr.rel (0) target = $region5
    $region4: #{timesformer_forward.5} parent=1 // pred_region
      _
    $region5: #{timesformer_forward.5} parent=1 // pred_fallthru
      _
    // Predicated region
    $region6: #{timesformer_forward.5} parent=1 // pred_check
      _
    $region7: #{timesformer_forward.5} parent=1 // pred_check_branch
      %12 = sbr.rel (0) target = $region9
    $region8: #{timesformer_forward.5} parent=1 // pred_region
      _
    $region9: #{timesformer_forward.5} parent=1 // pred_fallthru
      _
    // Predicated region
    $region10: #{timesformer_forward.5} parent=1 // pred_check
      _
    $region11: #{timesformer_forward.5} parent=1 // pred_check_branch
      %14 = sbr.rel (0) target = $region13
    $region12: #{timesformer_forward.5} parent=1 // pred_region
      _
    $region13: #{timesformer_forward.5} parent=1 // pred_fallthru
      _
    %v16 = vld [vmem:[%s0] sm:$0x3]
    %v17 = vpack.c.bf16 %v16, %v16
    %v18 = vld [vmem:[%s1] sm:$0xf]
    %v19 = vld [vmem:[%s1 + $0x4] sm:$0xf]
    %v20 = vld [vmem:[%s1 + $0x8] sm:$0xf]
    %v21 = vld [vmem:[%s1 + $0xc] sm:$0xf]
    %v22 = vld [vmem:[%s2] sm:$0x1]
    %v24 = vlaneseq
    %v25 = vshrl.u32 %v24, 7
    %v26 = vsub.s32 0, %v25
    %v27 = vrot.slane %v22, %v26
    %v33 = vunpack.c.l.b16 %v18
    %v34 = vunpack.c.l.b16 %v19
    %v35 = vunpack.c.l.b16 %v20
    %v36 = vunpack.c.l.b16 %v21
    %v37 = vpack.c.b16 %v34, %v33
    %v38 = vpack.c.b16 %v36, %v35
    %vm41 = vcmask 261120
    %v43 = vsel %vm41, %v17, 0
    %45 = vmatprep.subr.bf16.mxu0 0
    %46 = vmatpush1.bf16.msra.mxu0 %v37
    %47 = vmatprep.subr.bf16.mxu0 0
    %48 = vmatpush1.bf16.msra.mxu0 %v38
    %49 = vmatprep.subr.bf16.mxu0 0
    %50 = vmatpush1.bf16.msra.mxu0 0
    %51 = vmatprep.subr.bf16.mxu0 0
    %52 = vmatpush1.bf16.msra.mxu0 0
    %53 = vmatprep.subr.bf16.mxu0 0
    %54 = vmatpush1.bf16.msra.mxu0 0
    %55 = vmatprep.subr.bf16.mxu0 0
    %56 = vmatpush1.bf16.msra.mxu0 0
    %57 = vmatprep.subr.bf16.mxu0 0
    %58 = vmatpush1.bf16.msra.mxu0 0
    %59 = vmatprep.subr.bf16.mxu0 0
    %60 = vmatpush1.bf16.msra.mxu0 0
    %61 = vmatprep.subr.bf16.mxu0 0
    %62 = vmatpush1.bf16.msra.mxu0 0
    %63 = vmatprep.subr.bf16.mxu0 0
    %64 = vmatpush1.bf16.msra.mxu0 0
    %65 = vmatprep.subr.bf16.mxu0 0
    %66 = vmatpush1.bf16.msra.mxu0 0
    %67 = vmatprep.subr.bf16.mxu0 0
    %68 = vmatpush1.bf16.msra.mxu0 0
    %69 = vmatprep.subr.bf16.mxu0 0
    %70 = vmatpush1.bf16.msra.mxu0 0
    %71 = vmatprep.subr.bf16.mxu0 0
    %72 = vmatpush1.bf16.msra.mxu0 0
    %73 = vmatprep.subr.bf16.mxu0 0
    %74 = vmatpush1.bf16.msra.mxu0 0
    %75 = vmatprep.subr.bf16.mxu0 0
    %76 = vmatpush1.bf16.msra.mxu0 0
    %77 = vmatprep.mubr.bf16.mxu0 0
    %78 = vmatmul.mubr.bf16.gmra.mrb[0].mxu0 %v43
    %v79 = vpop.f32.mrb[0].mxu0
    %v80 = vadd.f32 %v27, %v79
    %v81 = vpop.f32.mrb[0].mxu0
    %v82 = vpop.f32.mrb[0].mxu0
    %v83 = vpop.f32.mrb[0].mxu0
    %84 = vdwg.mxu0
    %vm85 = vcmask 9216
    %v86 = vsel %vm85, %v80, -inf
    %87 = vmax.xlane.f32.xlu0 %v86
    %v88 = vpop.xlane.xlu0 %87
    %v89 = vsub.f32 %v80, %v88
    %v90 = vmul.f32 %v89, 1.442695
    %v91 = vpow.pop %v90
    %v92 = vsel %vm85, %v91, 0.0
    %93 = vadd.xlane.f32.xlu0 %v92
    %v94 = vpop.xlane.xlu0 %93
    %v95 = vlog2.pop %v94
    %v96 = vmul.f32 %v95, 0.6931472
    %v97 = vsub.f32 %v89, %v96
    %98 = vst.msk [vmem:[#allocation2] sm:$0x3] %vm85, %v97
    // Predicated region
    $region14: #{timesformer_forward.5} parent=1 // pred_check
      _
    $region15: #{timesformer_forward.5} parent=1 // pred_check_branch
      %100 = sbr.rel (0) target = $region17
    $region16: #{timesformer_forward.5} parent=1 // pred_region
      %s102 = ssub.s32 32, 32
      %103 = vsyncadd [#allocation3], %s102
      %s105 = sshll.u32 [#allocation2], 4
      %s106 = int_to_ptr.vmem [resolvable:$true] %s105
      %108 = dma.vmem_to_hbm [thread:$0]  %s106, 32, %s3, [#allocation3]
    $region17: #{timesformer_forward.5} parent=1 // pred_fallthru
      _
    // Predicated region
    $region18: #{timesformer_forward.5} parent=1 // pred_check
      _
    $region19: #{timesformer_forward.5} parent=1 // pred_check_branch
      %110 = sbr.rel (0) target = $region21
    $region20: #{timesformer_forward.5} parent=1 // pred_region
      %111 = dma.done [#allocation3], 32
    $region21: #{timesformer_forward.5} parent=1 // pred_fallthru
      _
    %112 = vsyncpa [#allocation3], 1

// kernel: timesformer_forward.4
$region0: #{timesformer_forward.4}
  #allocation0 [shape = 'u32[]', space=smem, size = 0x4, offset = 0x4, fixed_abs, tag = 'smem constant byte address 0x4 - core index']
  #allocation1 [shape = 'u32[144,128]{1,0:T(1,128)}', space=vmem, size = 0x12000, scoped, tag = 'internal scratch']
  %s0 = inlined_call_operand.vmem [shape: f32[2,48,32], index: 0, kind: input, shape index: {}, may-alias: {0,6}]
  %s1 = inlined_call_operand.vmem [shape: bf16[2,32,96], index: 1, kind: input, shape index: {}]
  %s2 = inlined_call_operand.vmem [shape: bf16[2,32,32], index: 2, kind: input, shape index: {}]
  %s3 = inlined_call_operand.vmem [shape: bf16[2,32,128], index: 3, kind: input, shape index: {}]
  %s4 = inlined_call_operand.vmem [shape: bf16[2,128,32], index: 4, kind: input, shape index: {}]
  %s5 = inlined_call_operand.vmem [shape: f32[2,8,128], index: 5, kind: input, shape index: {}]
  %s6 = inlined_call_operand.vmem [shape: f32[2,48,32], index: 6, kind: output, shape index: {}, may-alias: {0,6}]
  %s7 = sld [smem:[#allocation0]]
  $region61: #{timesformer_forward.4} parent=0
    _
  %s9 = ssub.s32 1, %s7
  %s10 = scalar_select 0, %s9, %s7
  loop: start=0, step=1, limit=4
  $region2: #{timesformer_forward.4} parent=0 // loop_pre_header
    _
  $region3: #{timesformer_forward.4} parent=0 // loop_header
    %s12 = sphi 0, %s16
    %p13 = scmp.ge.s32.totalorder %s12, 4
    %s20 = sphi 0, %s20
    %s22 = sphi 0, %s20
    %s23 = sphi 0, %s22
    %s37 = sphi 0, %s23
    %s43 = sphi 0, %s45
    %s46 = sphi 0, %s43
    %s47 = sphi 0, %s46
    %s63 = sphi 0, %s47
    %s69 = sphi 0, %s71
    %s72 = sphi 0, %s69
    %s73 = sphi 0, %s72
    %s89 = sphi 0, %s73
    %s95 = sphi 0, %s97
    %s98 = sphi 0, %s95
    %s99 = sphi 0, %s98
    %s115 = sphi 0, %s99
    %s121 = sphi 0, %s123
    %s124 = sphi 0, %s121
    %s125 = sphi 0, %s124
    %s141 = sphi 0, %s125
    %s147 = sphi 0, %s149
    %s150 = sphi 0, %s147
    %s151 = sphi 0, %s150
    %s167 = sphi 0, %s151
    %s171 = sphi 0, %s171
    %s173 = sphi 0, %s171
    %s174 = sphi 0, %s173
    %s188 = sphi 0, %s174
  $region4: #{timesformer_forward.4} parent=0 // loop_header_branch
    %15 = sbr.rel (%p13) target = $region8
  $region5: #{timesformer_forward.4} parent=0 // loop_body
    %s17 = ssub.s32 %s12, 1
    %s18 = ssub.s32 %s12, 2
    %s19 = sadd.s32 %s12, 1
    %s21 = sadd.s32 %s20, 1
    %p24 = scmp.eq.s32.totalorder %s12, 1
    %p25 = scmp.ne.s32.totalorder %s20, %s22
    %p26 = scmp.eq.s32.totalorder %s12, 0
    %p27 = por %p25, %p26
    %p28 = scmp.ne.s32.totalorder %s20, %s22
    %p29 = scmp.eq.s32.totalorder %s17, 1
    %p30 = por %p28, %p29
    %p31 = scmp.ne.s32.totalorder %s22, %s23
    %p32 = scmp.eq.s32.totalorder %s17, 0
    %p33 = por %p31, %p32
    %p34 = scmp.ne.s32.totalorder %s22, %s23
    %p35 = scmp.eq.s32.totalorder %s18, 1
    %p36 = por %p34, %p35
    %p38 = scmp.ne.s32.totalorder %s23, %s37
    %p39 = scmp.eq.s32.totalorder %s18, 0
    %p40 = por %p38, %p39
    %s41 = ssub.s32 %s12, %s19
    %p42 = scmp.eq.s32.totalorder %s41, 0
    %s44 = sadd.s32 %s43, 1
    %s45 = scalar_select %p42, %s43, %s44
    %p48 = pneg %p42
    %p49 = scmp.eq.s32.totalorder %s12, 1
    %p50 = por %p48, %p49
    %p51 = scmp.ne.s32.totalorder %s43, %s46
    %p52 = scmp.eq.s32.totalorder %s12, 0
    %p53 = por %p51, %p52
    %p54 = scmp.ne.s32.totalorder %s43, %s46
    %p55 = scmp.eq.s32.totalorder %s17, 1
    %p56 = por %p54, %p55
    %p57 = scmp.ne.s32.totalorder %s46, %s47
    %p58 = scmp.eq.s32.totalorder %s17, 0
    %p59 = por %p57, %p58
    %p60 = scmp.ne.s32.totalorder %s46, %s47
    %p61 = scmp.eq.s32.totalorder %s18, 1
    %p62 = por %p60, %p61
    %p64 = scmp.ne.s32.totalorder %s47, %s63
    %p65 = scmp.eq.s32.totalorder %s18, 0
    %p66 = por %p64, %p65
    %s67 = ssub.s32 %s12, %s19
    %p68 = scmp.eq.s32.totalorder %s67, 0
    %s70 = sadd.s32 %s69, 1
    %s71 = scalar_select %p68, %s69, %s70
    %p74 = pneg %p68
    %p75 = scmp.eq.s32.totalorder %s12, 1
    %p76 = por %p74, %p75
    %p77 = scmp.ne.s32.totalorder %s69, %s72
    %p78 = scmp.eq.s32.totalorder %s12, 0
    %p79 = por %p77, %p78
    %p80 = scmp.ne.s32.totalorder %s69, %s72
    %p81 = scmp.eq.s32.totalorder %s17, 1
    %p82 = por %p80, %p81
    %p83 = scmp.ne.s32.totalorder %s72, %s73
    %p84 = scmp.eq.s32.totalorder %s17, 0
    %p85 = por %p83, %p84
    %p86 = scmp.ne.s32.totalorder %s72, %s73
    %p87 = scmp.eq.s32.totalorder %s18, 1
    %p88 = por %p86, %p87
    %p90 = scmp.ne.s32.totalorder %s73, %s89
    %p91 = scmp.eq.s32.totalorder %s18, 0
    %p92 = por %p90, %p91
    %s93 = ssub.s32 %s12, %s19
    %p94 = scmp.eq.s32.totalorder %s93, 0
    %s96 = sadd.s32 %s95, 1
    %s97 = scalar_select %p94, %s95, %s96
    %p100 = pneg %p94
    %p101 = scmp.eq.s32.totalorder %s12, 1
    %p102 = por %p100, %p101
    %p103 = scmp.ne.s32.totalorder %s95, %s98
    %p104 = scmp.eq.s32.totalorder %s12, 0
    %p105 = por %p103, %p104
    %p106 = scmp.ne.s32.totalorder %s95, %s98
    %p107 = scmp.eq.s32.totalorder %s17, 1
    %p108 = por %p106, %p107
    %p109 = scmp.ne.s32.totalorder %s98, %s99
    %p110 = scmp.eq.s32.totalorder %s17, 0
    %p111 = por %p109, %p110
    %p112 = scmp.ne.s32.totalorder %s98, %s99
    %p113 = scmp.eq.s32.totalorder %s18, 1
    %p114 = por %p112, %p113
    %p116 = scmp.ne.s32.totalorder %s99, %s115
    %p117 = scmp.eq.s32.totalorder %s18, 0
    %p118 = por %p116, %p117
    %s119 = ssub.s32 %s12, %s19
    %p120 = scmp.eq.s32.totalorder %s119, 0
    %s122 = sadd.s32 %s121, 1
    %s123 = scalar_select %p120, %s121, %s122
    %p126 = pneg %p120
    %p127 = scmp.eq.s32.totalorder %s12, 1
    %p128 = por %p126, %p127
    %p129 = scmp.ne.s32.totalorder %s121, %s124
    %p130 = scmp.eq.s32.totalorder %s12, 0
    %p131 = por %p129, %p130
    %p132 = scmp.ne.s32.totalorder %s121, %s124
    %p133 = scmp.eq.s32.totalorder %s17, 1
    %p134 = por %p132, %p133
    %p135 = scmp.ne.s32.totalorder %s124, %s125
    %p136 = scmp.eq.s32.totalorder %s17, 0
    %p137 = por %p135, %p136
    %p138 = scmp.ne.s32.totalorder %s124, %s125
    %p139 = scmp.eq.s32.totalorder %s18, 1
    %p140 = por %p138, %p139
    %p142 = scmp.ne.s32.totalorder %s125, %s141
    %p143 = scmp.eq.s32.totalorder %s18, 0
    %p144 = por %p142, %p143
    %s145 = ssub.s32 %s12, %s19
    %p146 = scmp.eq.s32.totalorder %s145, 0
    %s148 = sadd.s32 %s147, 1
    %s149 = scalar_select %p146, %s147, %s148
    %p152 = pneg %p146
    %p153 = scmp.eq.s32.totalorder %s12, 1
    %p154 = por %p152, %p153
    %p155 = scmp.ne.s32.totalorder %s147, %s150
    %p156 = scmp.eq.s32.totalorder %s12, 0
    %p157 = por %p155, %p156
    %p158 = scmp.ne.s32.totalorder %s147, %s150
    %p159 = scmp.eq.s32.totalorder %s17, 1
    %p160 = por %p158, %p159
    %p161 = scmp.ne.s32.totalorder %s150, %s151
    %p162 = scmp.eq.s32.totalorder %s17, 0
    %p163 = por %p161, %p162
    %p164 = scmp.ne.s32.totalorder %s150, %s151
    %p165 = scmp.eq.s32.totalorder %s18, 1
    %p166 = por %p164, %p165
    %p168 = scmp.ne.s32.totalorder %s151, %s167
    %p169 = scmp.eq.s32.totalorder %s18, 0
    %p170 = por %p168, %p169
    %s172 = sadd.s32 %s171, 1
    %p175 = scmp.eq.s32.totalorder %s12, 1
    %p176 = scmp.ne.s32.totalorder %s171, %s173
    %p177 = scmp.eq.s32.totalorder %s12, 0
    %p178 = por %p176, %p177
    %p179 = scmp.ne.s32.totalorder %s171, %s173
    %p180 = scmp.eq.s32.totalorder %s17, 1
    %p181 = por %p179, %p180
    %p182 = scmp.ne.s32.totalorder %s173, %s174
    %p183 = scmp.eq.s32.totalorder %s17, 0
    %p184 = por %p182, %p183
    %p185 = scmp.ne.s32.totalorder %s173, %s174
    %p186 = scmp.eq.s32.totalorder %s18, 1
    %p187 = por %p185, %p186
    %p189 = scmp.ne.s32.totalorder %s174, %s188
    %p190 = scmp.eq.s32.totalorder %s18, 0
    %p191 = por %p189, %p190
    %p192 = scmp.le.s32.totalorder 1, %s12
    %p193 = scmp.lt.s32.totalorder %s12, 3
    %p194 = pnand %p192, %p193
    %p195 = pneg %p194
    // Predicated region
    $region9: #{timesformer_forward.4} parent=5 // pred_check
      _
    $region10: #{timesformer_forward.4} parent=5 // pred_check_branch
      %197 = sbr.rel (%p194) target = $region12
    $region11: #{timesformer_forward.4} parent=5 // pred_region
      %s198 = ssub.s32 %s12, 1
      // Predicated region
      $region13: #{timesformer_forward.4} parent=11 // pred_check
        %p199 = pneg %p33
      $region14: #{timesformer_forward.4} parent=11 // pred_check_branch
        %201 = sbr.rel (%p199) target = $region16
      $region15: #{timesformer_forward.4} parent=11 // pred_region
        _
      $region16: #{timesformer_forward.4} parent=11 // pred_fallthru
        _
    $region12: #{timesformer_forward.4} parent=5 // pred_fallthru
      _
    %p202 = scmp.lt.s32.totalorder %s12, 2
    // Predicated region
    $region17: #{timesformer_forward.4} parent=5 // pred_check
      %p203 = pneg %p202
    $region18: #{timesformer_forward.4} parent=5 // pred_check_branch
      %205 = sbr.rel (%p203) target = $region20
    $region19: #{timesformer_forward.4} parent=5 // pred_region
      // Predicated region
      $region21: #{timesformer_forward.4} parent=19 // pred_check
        %p206 = pneg %p53
      $region22: #{timesformer_forward.4} parent=19 // pred_check_branch
        %208 = sbr.rel (%p206) target = $region24
      $region23: #{timesformer_forward.4} parent=19 // pred_region
        %p209 = scmp.lt.s32.totalorder %s12, 1
        %s210 = scalar_select %p209, %s12, 1
        %s211 = smul.addr %s210, 4
        %s212 = smul.addr %s211, 4
        %s213 = scalar_lea.vmem %s1, %s212
      $region24: #{timesformer_forward.4} parent=19 // pred_fallthru
        _
      // Predicated region
      $region25: #{timesformer_forward.4} parent=19 // pred_check
        %p214 = pneg %p79
      $region26: #{timesformer_forward.4} parent=19 // pred_check_branch
        %216 = sbr.rel (%p214) target = $region28
      $region27: #{timesformer_forward.4} parent=19 // pred_region
        %p217 = scmp.lt.s32.totalorder %s12, 1
        %s218 = scalar_select %p217, %s12, 1
        %s219 = smul.addr %s218, 4
        %s220 = smul.addr %s219, 4
        %s221 = scalar_lea.vmem %s2, %s220
      $region28: #{timesformer_forward.4} parent=19 // pred_fallthru
        _
      // Predicated region
      $region29: #{timesformer_forward.4} parent=19 // pred_check
        %p222 = pneg %p105
      $region30: #{timesformer_forward.4} parent=19 // pred_check_branch
        %224 = sbr.rel (%p222) target = $region32
      $region31: #{timesformer_forward.4} parent=19 // pred_region
        %p225 = scmp.lt.s32.totalorder %s12, 1
        %s226 = scalar_select %p225, %s12, 1
        %s227 = smul.addr %s226, 4
        %s228 = smul.addr %s227, 4
        %s229 = scalar_lea.vmem %s3, %s228
      $region32: #{timesformer_forward.4} parent=19 // pred_fallthru
        _
      // Predicated region
      $region33: #{timesformer_forward.4} parent=19 // pred_check
        %p230 = pneg %p131
      $region34: #{timesformer_forward.4} parent=19 // pred_check_branch
        %232 = sbr.rel (%p230) target = $region36
      $region35: #{timesformer_forward.4} parent=19 // pred_region
        %p233 = scmp.lt.s32.totalorder %s12, 1
        %s234 = scalar_select %p233, %s12, 1
        %s235 = smul.addr %s234, 16
        %s236 = smul.addr %s235, 4
        %s237 = scalar_lea.vmem %s4, %s236
      $region36: #{timesformer_forward.4} parent=19 // pred_fallthru
        _
      // Predicated region
      $region37: #{timesformer_forward.4} parent=19 // pred_check
        %p238 = pneg %p157
      $region38: #{timesformer_forward.4} parent=19 // pred_check_branch
        %240 = sbr.rel (%p238) target = $region40
      $region39: #{timesformer_forward.4} parent=19 // pred_region
        %p241 = scmp.lt.s32.totalorder %s12, 1
        %s242 = scalar_select %p241, %s12, 1
        %s243 = smul.addr %s242, 8
        %s244 = scalar_lea.vmem %s5, %s243
      $region40: #{timesformer_forward.4} parent=19 // pred_fallthru
        _
    $region20: #{timesformer_forward.4} parent=5 // pred_fallthru
      _
    %p245 = scmp.le.s32.totalorder 1, %s12
    %p246 = scmp.lt.s32.totalorder %s12, 3
    %p247 = pnand %p245, %p246
    %p248 = pneg %p247
    // Predicated region
    $region41: #{timesformer_forward.4} parent=5 // pred_check
      _
    $region42: #{timesformer_forward.4} parent=5 // pred_check_branch
      %250 = sbr.rel (%p247) target = $region44
    $region43: #{timesformer_forward.4} parent=5 // pred_region
      %s251 = ssub.s32 %s12, 1
      %p252 = pneg %p33
      %p253 = pneg %p30
      %p254 = scmp.lt.s32.totalorder %s17, 1
      %s255 = scalar_select %p254, %s17, 1
      %s256 = smul.addr %s255, 4
      %s257 = smul.addr %s256, 4
      %s258 = scalar_lea.vmem %s1, %s257
      %p259 = pneg %p59
      %p260 = pneg %p56
      %p261 = scmp.lt.s32.totalorder %s17, 1
      %s262 = scalar_select %p261, %s17, 1
      %s263 = smul.addr %s262, 4
      %s264 = smul.addr %s263, 4
      %s265 = scalar_lea.vmem %s2, %s264
      %p266 = pneg %p85
      %p267 = pneg %p82
      %p268 = scmp.lt.s32.totalorder %s17, 1
      %s269 = scalar_select %p268, %s17, 1
      %s270 = smul.addr %s269, 4
      %s271 = smul.addr %s270, 4
      %s272 = scalar_lea.vmem %s3, %s271
      %p273 = pneg %p111
      %p274 = pneg %p108
      %p275 = scmp.lt.s32.totalorder %s17, 1
      %s276 = scalar_select %p275, %s17, 1
      %s277 = smul.addr %s276, 16
      %s278 = smul.addr %s277, 4
      %s279 = scalar_lea.vmem %s4, %s278
      %p280 = pneg %p137
      %p281 = pneg %p134
      %p282 = scmp.lt.s32.totalorder %s17, 1
      %s283 = scalar_select %p282, %s17, 1
      %s284 = smul.addr %s283, 8
      %s285 = scalar_lea.vmem %s5, %s284
      %p286 = pneg %p163
      %p287 = pneg %p160
      %p288 = pneg %p184
      %p289 = pneg %p181
      %p290 = scmp.lt.s32.totalorder %s17, 1
      %s291 = scalar_select %p290, %s17, 1
      %s292 = smul.addr %s291, 4
      %s293 = smul.addr %s292, 4
      %s294 = scalar_lea.vmem %s1, %s293
      %p295 = scmp.lt.s32.totalorder %s17, 1
      %s296 = scalar_select %p295, %s17, 1
      %s297 = smul.addr %s296, 4
      %s298 = smul.addr %s297, 4
      %s299 = scalar_lea.vmem %s2, %s298
      %p300 = scmp.lt.s32.totalorder %s17, 1
      %s301 = scalar_select %p300, %s17, 1
      %s302 = smul.addr %s301, 4
      %s303 = smul.addr %s302, 4
      %s304 = scalar_lea.vmem %s3, %s303
      %p305 = scmp.lt.s32.totalorder %s17, 1
      %s306 = scalar_select %p305, %s17, 1
      %s307 = smul.addr %s306, 16
      %s308 = smul.addr %s307, 4
      %s309 = scalar_lea.vmem %s4, %s308
      %p310 = scmp.lt.s32.totalorder %s17, 1
      %s311 = scalar_select %p310, %s17, 1
      %s312 = smul.addr %s311, 8
      %s313 = scalar_lea.vmem %s5, %s312
      %p315 = scmp.eq.s32.totalorder %s17, 0
      // Predicated region
      $region45: #{timesformer_forward.4} parent=43 // pred_check
        %p316 = pneg %p315
      $region46: #{timesformer_forward.4} parent=43 // pred_check_branch
        %318 = sbr.rel (%p316) target = $region48
      $region47: #{timesformer_forward.4} parent=43 // pred_region
        %v319 = vld [vmem:[%s0] sm:$0xff]
        %v320 = vld [vmem:[%s0 + $0x8] sm:$0xff]
        %v321 = vld [vmem:[%s0 + $0x10] sm:$0xff]
        %v322 = vld [vmem:[%s0 + $0x18] sm:$0xff]
        %v323 = vld [vmem:[%s0 + $0x20] sm:$0xff]
        %v324 = vld [vmem:[%s0 + $0x28] sm:$0xff]
        %v325 = vld [vmem:[%s0 + $0x30] sm:$0xff]
        %v326 = vld [vmem:[%s0 + $0x38] sm:$0xff]
        %v327 = vld [vmem:[%s0 + $0x40] sm:$0xff]
        %v328 = vld [vmem:[%s0 + $0x48] sm:$0xff]
        %v329 = vld [vmem:[%s0 + $0x50] sm:$0xff]
        %v330 = vld [vmem:[%s0 + $0x58] sm:$0xff]
        %vm331 = vcmask 261120
        %332 = vst.msk [vmem:[%s6] sm:$0xff] %vm331, %v319
        %333 = vst.msk [vmem:[%s6 + $0x8] sm:$0xff] %vm331, %v320
        %334 = vst.msk [vmem:[%s6 + $0x10] sm:$0xff] %vm331, %v321
        %335 = vst.msk [vmem:[%s6 + $0x18] sm:$0xff] %vm331, %v322
        %336 = vst.msk [vmem:[%s6 + $0x20] sm:$0xff] %vm331, %v323
        %337 = vst.msk [vmem:[%s6 + $0x28] sm:$0xff] %vm331, %v324
        %338 = vst.msk [vmem:[%s6 + $0x30] sm:$0xff] %vm331, %v325
        %339 = vst.msk [vmem:[%s6 + $0x38] sm:$0xff] %vm331, %v326
        %340 = vst.msk [vmem:[%s6 + $0x40] sm:$0xff] %vm331, %v327
        %341 = vst.msk [vmem:[%s6 + $0x48] sm:$0xff] %vm331, %v328
        %342 = vst.msk [vmem:[%s6 + $0x50] sm:$0xff] %vm331, %v329
        %343 = vst.msk [vmem:[%s6 + $0x58] sm:$0xff] %vm331, %v330
      $region48: #{timesformer_forward.4} parent=43 // pred_fallthru
        _
      %v344 = vld [vmem:[%s6] sm:$0xff]
      %v345 = vld [vmem:[%s6 + $0x8] sm:$0xff]
      %v346 = vld [vmem:[%s6 + $0x10] sm:$0xff]
      %v347 = vld [vmem:[%s6 + $0x18] sm:$0xff]
      %v348 = vld [vmem:[%s6 + $0x20] sm:$0xff]
      %v349 = vld [vmem:[%s6 + $0x28] sm:$0xff]
      %v350 = vld [vmem:[%s6 + $0x30] sm:$0xff]
      %v351 = vld [vmem:[%s6 + $0x38] sm:$0xff]
      %v352 = vld [vmem:[%s6 + $0x40] sm:$0xff]
      %v353 = vld [vmem:[%s6 + $0x48] sm:$0xff]
      %v354 = vld [vmem:[%s6 + $0x50] sm:$0xff]
      %v355 = vld [vmem:[%s6 + $0x58] sm:$0xff]
      %v356 = vld [vmem:[%s313] sm:$0xff]
      %vm357 = vcmask 261120
      %v358 = vsel %vm357, %v344, 0.0
      %359 = vadd.xlane.f32.xlu0 %v358
      %v360 = vpop.xlane.xlu0 %359
      %v361 = vsel %vm357, %v345, 0.0
      %362 = vadd.xlane.f32.xlu0 %v361
      %v363 = vpop.xlane.xlu0 %362
      %v364 = vsel %vm357, %v346, 0.0
      %365 = vadd.xlane.f32.xlu0 %v364
      %v366 = vpop.xlane.xlu0 %365
      %v367 = vsel %vm357, %v347, 0.0
      %368 = vadd.xlane.f32.xlu0 %v367
      %v369 = vpop.xlane.xlu0 %368
      %v370 = vsel %vm357, %v348, 0.0
      %371 = vadd.xlane.f32.xlu0 %v370
      %v372 = vpop.xlane.xlu0 %371
      %v373 = vsel %vm357, %v349, 0.0
      %374 = vadd.xlane.f32.xlu0 %v373
      %v375 = vpop.xlane.xlu0 %374
      %v376 = vsel %vm357, %v350, 0.0
      %377 = vadd.xlane.f32.xlu0 %v376
      %v378 = vpop.xlane.xlu0 %377
      %v379 = vsel %vm357, %v351, 0.0
      %380 = vadd.xlane.f32.xlu0 %v379
      %v381 = vpop.xlane.xlu0 %380
      %v382 = vsel %vm357, %v352, 0.0
      %383 = vadd.xlane.f32.xlu0 %v382
      %v384 = vpop.xlane.xlu0 %383
      %v385 = vsel %vm357, %v353, 0.0
      %386 = vadd.xlane.f32.xlu0 %v385
      %v387 = vpop.xlane.xlu0 %386
      %v388 = vsel %vm357, %v354, 0.0
      %389 = vadd.xlane.f32.xlu0 %v388
      %v390 = vpop.xlane.xlu0 %389
      %v391 = vsel %vm357, %v355, 0.0
      %392 = vadd.xlane.f32.xlu0 %v391
      %v393 = vpop.xlane.xlu0 %392
      %v394 = vrcp.pop 32.0
      %v395 = vmul.f32 %v360, %v394
      %v396 = vmul.f32 %v363, %v394
      %v397 = vmul.f32 %v366, %v394
      %v398 = vmul.f32 %v369, %v394
      %v399 = vmul.f32 %v372, %v394
      %v400 = vmul.f32 %v375, %v394
      %v401 = vmul.f32 %v378, %v394
      %v402 = vmul.f32 %v381, %v394
      %v403 = vmul.f32 %v384, %v394
      %v404 = vmul.f32 %v387, %v394
      %v405 = vmul.f32 %v390, %v394
      %v406 = vmul.f32 %v393, %v394
      %v407 = vsub.f32 %v344, %v395
      %v408 = vsub.f32 %v345, %v396
      %v409 = vsub.f32 %v346, %v397
      %v410 = vsub.f32 %v347, %v398
      %v411 = vsub.f32 %v348, %v399
      %v412 = vsub.f32 %v349, %v400
      %v413 = vsub.f32 %v350, %v401
      %v414 = vsub.f32 %v351, %v402
      %v415 = vsub.f32 %v352, %v403
      %v416 = vsub.f32 %v353, %v404
      %v417 = vsub.f32 %v354, %v405
      %v418 = vsub.f32 %v355, %v406
      %v419 = vmul.f32 %v407, %v407
      %v420 = vmul.f32 %v408, %v408
      %v421 = vmul.f32 %v409, %v409
      %v422 = vmul.f32 %v410, %v410
      %v423 = vmul.f32 %v411, %v411
      %v424 = vmul.f32 %v412, %v412
      %v425 = vmul.f32 %v413, %v413
      %v426 = vmul.f32 %v414, %v414
      %v427 = vmul.f32 %v415, %v415
      %v428 = vmul.f32 %v416, %v416
      %v429 = vmul.f32 %v417, %v417
      %v430 = vmul.f32 %v418, %v418
      %v431 = vsel %vm357, %v419, 0.0
      %432 = vadd.xlane.f32.xlu0 %v431
      %v433 = vpop.xlane.xlu0 %432
      %v434 = vsel %vm357, %v420, 0.0
      %435 = vadd.xlane.f32.xlu0 %v434
      %v436 = vpop.xlane.xlu0 %435
      %v437 = vsel %vm357, %v421, 0.0
      %438 = vadd.xlane.f32.xlu0 %v437
      %v439 = vpop.xlane.xlu0 %438
      %v440 = vsel %vm357, %v422, 0.0
      %441 = vadd.xlane.f32.xlu0 %v440
      %v442 = vpop.xlane.xlu0 %441
      %v443 = vsel %vm357, %v423, 0.0
      %444 = vadd.xlane.f32.xlu0 %v443
      %v445 = vpop.xlane.xlu0 %444
      %v446 = vsel %vm357, %v424, 0.0
      %447 = vadd.xlane.f32.xlu0 %v446
      %v448 = vpop.xlane.xlu0 %447
      %v449 = vsel %vm357, %v425, 0.0
      %450 = vadd.xlane.f32.xlu0 %v449
      %v451 = vpop.xlane.xlu0 %450
      %v452 = vsel %vm357, %v426, 0.0
      %453 = vadd.xlane.f32.xlu0 %v452
      %v454 = vpop.xlane.xlu0 %453
      %v455 = vsel %vm357, %v427, 0.0
      %456 = vadd.xlane.f32.xlu0 %v455
      %v457 = vpop.xlane.xlu0 %456
      %v458 = vsel %vm357, %v428, 0.0
      %459 = vadd.xlane.f32.xlu0 %v458
      %v460 = vpop.xlane.xlu0 %459
      %v461 = vsel %vm357, %v429, 0.0
      %462 = vadd.xlane.f32.xlu0 %v461
      %v463 = vpop.xlane.xlu0 %462
      %v464 = vsel %vm357, %v430, 0.0
      %465 = vadd.xlane.f32.xlu0 %v464
      %v466 = vpop.xlane.xlu0 %465
      %v467 = vmul.f32 %v433, %v394
      %v468 = vmul.f32 %v436, %v394
      %v469 = vmul.f32 %v439, %v394
      %v470 = vmul.f32 %v442, %v394
      %v471 = vmul.f32 %v445, %v394
      %v472 = vmul.f32 %v448, %v394
      %v473 = vmul.f32 %v451, %v394
      %v474 = vmul.f32 %v454, %v394
      %v475 = vmul.f32 %v457, %v394
      %v476 = vmul.f32 %v460, %v394
      %v477 = vmul.f32 %v463, %v394
      %v478 = vmul.f32 %v466, %v394
      %v479 = vadd.f32 %v467, 1e-05
      %v480 = vadd.f32 %v468, 1e-05
      %v481 = vadd.f32 %v469, 1e-05
      %v482 = vadd.f32 %v470, 1e-05
      %v483 = vadd.f32 %v471, 1e-05
      %v484 = vadd.f32 %v472, 1e-05
      %v485 = vadd.f32 %v473, 1e-05
      %v486 = vadd.f32 %v474, 1e-05
      %v487 = vadd.f32 %v475, 1e-05
      %v488 = vadd.f32 %v476, 1e-05
      %v489 = vadd.f32 %v477, 1e-05
      %v490 = vadd.f32 %v478, 1e-05
      %v491 = vrsqrt.pop %v479
      %v492 = vrsqrt.pop %v480
      %v493 = vrsqrt.pop %v481
      %v494 = vrsqrt.pop %v482
      %v495 = vrsqrt.pop %v483
      %v496 = vrsqrt.pop %v484
      %v497 = vrsqrt.pop %v485
      %v498 = vrsqrt.pop %v486
      %v499 = vrsqrt.pop %v487
      %v500 = vrsqrt.pop %v488
      %v501 = vrsqrt.pop %v489
      %v502 = vrsqrt.pop %v490
      %v503 = vmul.f32 %v407, %v491
      %v504 = vmul.f32 %v408, %v492
      %v505 = vmul.f32 %v409, %v493
      %v506 = vmul.f32 %v410, %v494
      %v507 = vmul.f32 %v411, %v495
      %v508 = vmul.f32 %v412, %v496
      %v509 = vmul.f32 %v413, %v497
      %v510 = vmul.f32 %v414, %v498
      %v511 = vmul.f32 %v415, %v499
      %v512 = vmul.f32 %v416, %v500
      %v513 = vmul.f32 %v417, %v501
      %v514 = vmul.f32 %v418, %v502
      %v515 = vlaneseq
      %v516 = vshrl.u32 %v515, 7
      %v517 = vsub.s32 0, %v516
      %v518 = vrot.slane %v356, %v517
      %v519 = vmul.f32 %v503, %v518
      %v520 = vmul.f32 %v504, %v518
      %v521 = vmul.f32 %v505, %v518
      %v522 = vmul.f32 %v506, %v518
      %v523 = vmul.f32 %v507, %v518
      %v524 = vmul.f32 %v508, %v518
      %v525 = vmul.f32 %v509, %v518
      %v526 = vmul.f32 %v510, %v518
      %v527 = vmul.f32 %v511, %v518
      %v528 = vmul.f32 %v512, %v518
      %v529 = vmul.f32 %v513, %v518
      %v530 = vmul.f32 %v514, %v518
      %v531 = vlaneseq
      %v532 = vshrl.u32 %v531, 7
      %v533 = vsub.s32 1, %v532
      %v534 = vrot.slane %v356, %v533
      %v535 = vadd.f32 %v519, %v534
      %v536 = vadd.f32 %v520, %v534
      %v537 = vadd.f32 %v521, %v534
      %v538 = vadd.f32 %v522, %v534
      %v539 = vadd.f32 %v523, %v534
      %v540 = vadd.f32 %v524, %v534
      %v541 = vadd.f32 %v525, %v534
      %v542 = vadd.f32 %v526, %v534
      %v543 = vadd.f32 %v527, %v534
      %v544 = vadd.f32 %v528, %v534
      %v545 = vadd.f32 %v529, %v534
      %v546 = vadd.f32 %v530, %v534
      %v547 = vpack.c.bf16 %v536, %v535
      %v548 = vpack.c.bf16 %v538, %v537
      %v549 = vpack.c.bf16 %v540, %v539
      %v550 = vpack.c.bf16 %v542, %v541
      %v551 = vpack.c.bf16 %v544, %v543
      %v552 = vpack.c.bf16 %v546, %v545
      %v553 = vld [vmem:[%s294] sm:$0xf]
      %v554 = vld [vmem:[%s294 + $0x4] sm:$0xf]
      %v555 = vld [vmem:[%s294 + $0x8] sm:$0xf]
      %v556 = vld [vmem:[%s294 + $0xc] sm:$0xf]
      %v557 = vlaneseq
      %v558 = vshrl.u32 %v557, 7
      %v559 = vsub.s32 2, %v558
      %v560 = vrot.slane %v356, %v559
      %v565 = vunpack.c.l.b16 %v553
      %v566 = vunpack.c.l.b16 %v554
      %v567 = vunpack.c.l.b16 %v555
      %v568 = vunpack.c.l.b16 %v556
      %v569 = vpack.c.b16 %v566, %v565
      %v570 = vpack.c.b16 %v568, %v567
      %v574 = vsel %vm357, %v547, 0
      %v577 = vsel %vm357, %v548, 0
      %v580 = vsel %vm357, %v549, 0
      %v583 = vsel %vm357, %v550, 0
      %v586 = vsel %vm357, %v551, 0
      %v589 = vsel %vm357, %v552, 0
      %591 = vmatprep.subr.bf16.mxu0 0
      %592 = vmatpush1.bf16.msra.mxu0 %v569
      %593 = vmatprep.subr.bf16.mxu0 0
      %594 = vmatpush1.bf16.msra.mxu0 %v570
      %595 = vmatprep.subr.bf16.mxu0 0
      %596 = vmatpush1.bf16.msra.mxu0 0
      %597 = vmatprep.subr.bf16.mxu0 0
      %598 = vmatpush1.bf16.msra.mxu0 0
      %599 = vmatprep.subr.bf16.mxu0 0
      %600 = vmatpush1.bf16.msra.mxu0 0
      %601 = vmatprep.subr.bf16.mxu0 0
      %602 = vmatpush1.bf16.msra.mxu0 0
      %603 = vmatprep.subr.bf16.mxu0 0
      %604 = vmatpush1.bf16.msra.mxu0 0
      %605 = vmatprep.subr.bf16.mxu0 0
      %606 = vmatpush1.bf16.msra.mxu0 0
      %607 = vmatprep.subr.bf16.mxu0 0
      %608 = vmatpush1.bf16.msra.mxu0 0
      %609 = vmatprep.subr.bf16.mxu0 0
      %610 = vmatpush1.bf16.msra.mxu0 0
      %611 = vmatprep.subr.bf16.mxu0 0
      %612 = vmatpush1.bf16.msra.mxu0 0
      %613 = vmatprep.subr.bf16.mxu0 0
      %614 = vmatpush1.bf16.msra.mxu0 0
      %615 = vmatprep.subr.bf16.mxu0 0
      %616 = vmatpush1.bf16.msra.mxu0 0
      %617 = vmatprep.subr.bf16.mxu0 0
      %618 = vmatpush1.bf16.msra.mxu0 0
      %619 = vmatprep.subr.bf16.mxu0 0
      %620 = vmatpush1.bf16.msra.mxu0 0
      %621 = vmatprep.subr.bf16.mxu0 0
      %622 = vmatpush1.bf16.msra.mxu0 0
      %623 = vmatprep.mubr.bf16.mxu0 0
      %624 = vmatmul.mubr.bf16.gmra.mrb[0].mxu0 %v574
      %v625 = vpop.f32.mrb[0].mxu0
      %v626 = vadd.f32 %v560, %v625
      %v627 = vpop.f32.mrb[0].mxu0
      %v628 = vpop.f32.mrb[0].mxu0
      %v629 = vadd.f32 %v560, %v628
      %v630 = vpop.f32.mrb[0].mxu0
      %631 = vmatprep.mubr.bf16.mxu0 0
      %632 = vmatmul.mubr.bf16.gmra.mrb[0].mxu0 %v577
      %v633 = vpop.f32.mrb[0].mxu0
      %v634 = vadd.f32 %v560, %v633
      %v635 = vpop.f32.mrb[0].mxu0
      %v636 = vpop.f32.mrb[0].mxu0
      %v637 = vadd.f32 %v560, %v636
      %v638 = vpop.f32.mrb[0].mxu0
      %639 = vmatprep.mubr.bf16.mxu0 0
      %640 = vmatmul.mubr.bf16.gmra.mrb[0].mxu0 %v580
      %v641 = vpop.f32.mrb[0].mxu0
      %v642 = vadd.f32 %v560, %v641
      %v643 = vpop.f32.mrb[0].mxu0
      %v644 = vpop.f32.mrb[0].mxu0
      %v645 = vadd.f32 %v560, %v644
      %v646 = vpop.f32.mrb[0].mxu0
      %647 = vmatprep.mubr.bf16.mxu0 0
      %648 = vmatmul.mubr.bf16.gmra.mrb[0].mxu0 %v583
      %v649 = vpop.f32.mrb[0].mxu0
      %v650 = vadd.f32 %v560, %v649
      %v651 = vpop.f32.mrb[0].mxu0
      %v652 = vpop.f32.mrb[0].mxu0
      %v653 = vadd.f32 %v560, %v652
      %v654 = vpop.f32.mrb[0].mxu0
      %655 = vmatprep.mubr.bf16.mxu0 0
      %656 = vmatmul.mubr.bf16.gmra.mrb[0].mxu0 %v586
      %v657 = vpop.f32.mrb[0].mxu0
      %v658 = vadd.f32 %v560, %v657
      %v659 = vpop.f32.mrb[0].mxu0
      %v660 = vpop.f32.mrb[0].mxu0
      %v661 = vadd.f32 %v560, %v660
      %v662 = vpop.f32.mrb[0].mxu0
      %663 = vmatprep.mubr.bf16.mxu0 0
      %664 = vmatmul.mubr.bf16.gmra.mrb[0].mxu0 %v589
      %v665 = vpop.f32.mrb[0].mxu0
      %v666 = vadd.f32 %v560, %v665
      %v667 = vpop.f32.mrb[0].mxu0
      %v668 = vpop.f32.mrb[0].mxu0
      %v669 = vadd.f32 %v560, %v668
      %v670 = vpop.f32.mrb[0].mxu0
      %671 = vdwg.mxu0
      %v672 = vlaneseq
      %v673 = vand.u32 %v672, 127
      %vm674 = vcmp.lt.s32.totalorder %v673, 41
      %v675 = vpack.c.bf16 %v629, %v626
      %v676 = vpack.c.bf16 %v637, %v634
      %v677 = vpack.c.bf16 %v645, %v642
      %v678 = vpack.c.bf16 %v653, %v650
      %v679 = vpack.c.bf16 %v661, %v658
      %v680 = vpack.c.bf16 %v669, %v666
      %684 = vrot.lane.b32.xlu0 %v675, 96
      %v685 = vpop.permute.xlu0 %684
      %686 = vrot.lane.b32.xlu0 %v676, 96
      %v687 = vpop.permute.xlu0 %686
      %688 = vrot.lane.b32.xlu0 %v677, 96
      %v689 = vpop.permute.xlu0 %688
      %vm690 = vcmask 64512
      %v692 = vsel %vm690, %v675, 0
      %v695 = vsel %vm690, %v676, 0
      %v698 = vsel %vm690, %v677, 0
      %v701 = vsel %vm690, %v685, 0
      %v704 = vsel %vm690, %v687, 0
      %v707 = vsel %vm690, %v689, 0
      %709 = vmatprep.subr.bf16.mxu0 0
      %710 = vmatpush1.bf16.xpose.msra.mxu0 %v701
      %711 = vmatprep.subr.bf16.mxu0 0
      %712 = vmatpush1.bf16.xpose.msra.mxu0 %v704
      %713 = vmatprep.subr.bf16.mxu0 0
      %714 = vmatpush1.bf16.xpose.msra.mxu0 %v707
      %715 = vmatprep.subr.bf16.mxu0 0
      %716 = vmatpush1.bf16.xpose.msra.mxu0 0
      %717 = vmatprep.subr.bf16.mxu0 0
      %718 = vmatpush1.bf16.xpose.msra.mxu0 0
      %719 = vmatprep.subr.bf16.mxu0 0
      %720 = vmatpush1.bf16.xpose.msra.mxu0 0
      %721 = vmatprep.subr.bf16.mxu0 0
      %722 = vmatpush1.bf16.xpose.msra.mxu0 0
      %723 = vmatprep.subr.bf16.mxu0 0
      %724 = vmatpush1.bf16.xpose.msra.mxu0 0
      %725 = vmatprep.subr.bf16.mxu0 0
      %726 = vmatpush1.bf16.xpose.msra.mxu0 0
      %727 = vmatprep.subr.bf16.mxu0 0
      %728 = vmatpush1.bf16.xpose.msra.mxu0 0
      %729 = vmatprep.subr.bf16.mxu0 0
      %730 = vmatpush1.bf16.xpose.msra.mxu0 0
      %731 = vmatprep.subr.bf16.mxu0 0
      %732 = vmatpush1.bf16.xpose.msra.mxu0 0
      %733 = vmatprep.subr.bf16.mxu0 0
      %734 = vmatpush1.bf16.xpose.msra.mxu0 0
      %735 = vmatprep.subr.bf16.mxu0 0
      %736 = vmatpush1.bf16.xpose.msra.mxu0 0
      %737 = vmatprep.subr.bf16.mxu0 0
      %738 = vmatpush1.bf16.xpose.msra.mxu0 0
      %739 = vmatprep.subr.bf16.mxu0 0
      %740 = vmatpush1.bf16.xpose.msra.mxu0 0
      %741 = vmatprep.mubr.bf16.mxu0 0
      %742 = vmatmul.mubr.bf16.gmra.mrb[0].mxu0 %v692
      %v743 = vpop.f32.mrb[0].mxu0
      %v744 = vadd.f32 0.0, %v743
      %v745 = vpop.f32.mrb[0].mxu0
      %v746 = vpop.f32.mrb[0].mxu0
      %v747 = vadd.f32 0.0, %v746
      %v748 = vpop.f32.mrb[0].mxu0
      %749 = vmatprep.mubr.bf16.mxu0 0
      %750 = vmatmul.mubr.bf16.gmra.mrb[0].mxu0 %v695
      %v751 = vpop.f32.mrb[0].mxu0
      %v752 = vadd.f32 0.0, %v751
      %v753 = vpop.f32.mrb[0].mxu0
      %v754 = vpop.f32.mrb[0].mxu0
      %v755 = vadd.f32 0.0, %v754
      %v756 = vpop.f32.mrb[0].mxu0
      %757 = vmatprep.mubr.bf16.mxu0 0
      %758 = vmatmul.mubr.bf16.gmra.mrb[0].mxu0 %v698
      %v759 = vpop.f32.mrb[0].mxu0
      %v760 = vadd.f32 0.0, %v759
      %v761 = vpop.f32.mrb[0].mxu0
      %v762 = vpop.f32.mrb[0].mxu0
      %v763 = vadd.f32 0.0, %v762
      %v764 = vpop.f32.mrb[0].mxu0
      %765 = vdwg.mxu0
      %769 = vrot.lane.b32.xlu0 %v678, 96
      %v770 = vpop.permute.xlu0 %769
      %771 = vrot.lane.b32.xlu0 %v679, 96
      %v772 = vpop.permute.xlu0 %771
      %773 = vrot.lane.b32.xlu0 %v680, 96
      %v774 = vpop.permute.xlu0 %773
      %v776 = vsel %vm690, %v678, 0
      %v779 = vsel %vm690, %v679, 0
      %v782 = vsel %vm690, %v680, 0
      %v785 = vsel %vm690, %v770, 0
      %v788 = vsel %vm690, %v772, 0
      %v791 = vsel %vm690, %v774, 0
      %793 = vmatprep.subr.bf16.mxu0 0
      %794 = vmatpush1.bf16.xpose.msra.mxu0 %v785
      %795 = vmatprep.subr.bf16.mxu0 0
      %796 = vmatpush1.bf16.xpose.msra.mxu0 %v788
      %797 = vmatprep.subr.bf16.mxu0 0
      %798 = vmatpush1.bf16.xpose.msra.mxu0 %v791
      %799 = vmatprep.subr.bf16.mxu0 0
      %800 = vmatpush1.bf16.xpose.msra.mxu0 0
      %801 = vmatprep.subr.bf16.mxu0 0
      %802 = vmatpush1.bf16.xpose.msra.mxu0 0
      %803 = vmatprep.subr.bf16.mxu0 0
      %804 = vmatpush1.bf16.xpose.msra.mxu0 0
      %805 = vmatprep.subr.bf16.mxu0 0
      %806 = vmatpush1.bf16.xpose.msra.mxu0 0
      %807 = vmatprep.subr.bf16.mxu0 0
      %808 = vmatpush1.bf16.xpose.msra.mxu0 0
      %809 = vmatprep.subr.bf16.mxu0 0
      %810 = vmatpush1.bf16.xpose.msra.mxu0 0
      %811 = vmatprep.subr.bf16.mxu0 0
      %812 = vmatpush1.bf16.xpose.msra.mxu0 0
      %813 = vmatprep.subr.bf16.mxu0 0
      %814 = vmatpush1.bf16.xpose.msra.mxu0 0
      %815 = vmatprep.subr.bf16.mxu0 0
      %816 = vmatpush1.bf16.xpose.msra.mxu0 0
      %817 = vmatprep.subr.bf16.mxu0 0
      %818 = vmatpush1.bf16.xpose.msra.mxu0 0
      %819 = vmatprep.subr.bf16.mxu0 0
      %820 = vmatpush1.bf16.xpose.msra.mxu0 0
      %821 = vmatprep.subr.bf16.mxu0 0
      %822 = vmatpush1.bf16.xpose.msra.mxu0 0
      %823 = vmatprep.subr.bf16.mxu0 0
      %824 = vmatpush1.bf16.xpose.msra.mxu0 0
      %825 = vmatprep.mubr.bf16.mxu0 0
      %826 = vmatmul.mubr.bf16.gmra.mrb[0].mxu0 %v776
      %v827 = vpop.f32.mrb[0].mxu0
      %v828 = vadd.f32 0.0, %v827
      %v829 = vpop.f32.mrb[0].mxu0
      %v830 = vpop.f32.mrb[0].mxu0
      %v831 = vadd.f32 0.0, %v830
      %v832 = vpop.f32.mrb[0].mxu0
      %833 = vmatprep.mubr.bf16.mxu0 0
      %834 = vmatmul.mubr.bf16.gmra.mrb[0].mxu0 %v779
      %v835 = vpop.f32.mrb[0].mxu0
      %v836 = vadd.f32 0.0, %v835
      %v837 = vpop.f32.mrb[0].mxu0
      %v838 = vpop.f32.mrb[0].mxu0
      %v839 = vadd.f32 0.0, %v838
      %v840 = vpop.f32.mrb[0].mxu0
      %841 = vmatprep.mubr.bf16.mxu0 0
      %842 = vmatmul.mubr.bf16.gmra.mrb[0].mxu0 %v782
      %v843 = vpop.f32.mrb[0].mxu0
      %v844 = vadd.f32 0.0, %v843
      %v845 = vpop.f32.mrb[0].mxu0
      %v846 = vpop.f32.mrb[0].mxu0
      %v847 = vadd.f32 0.0, %v846
      %v848 = vpop.f32.mrb[0].mxu0
      %849 = vdwg.mxu0
      %v850 = vmul.f32 %v744, 0.35355338
      %v851 = vmul.f32 %v747, 0.35355338
      %v852 = vmul.f32 %v752, 0.35355338
      %v853 = vmul.f32 %v755, 0.35355338
      %v854 = vmul.f32 %v760, 0.35355338
      %v855 = vmul.f32 %v763, 0.35355338
      %v856 = vmul.f32 %v828, 0.35355338
      %v857 = vmul.f32 %v831, 0.35355338
      %v858 = vmul.f32 %v836, 0.35355338
      %v859 = vmul.f32 %v839, 0.35355338
      %v860 = vmul.f32 %v844, 0.35355338
      %v861 = vmul.f32 %v847, 0.35355338
      %v862 = vsel %vm674, 1, 0
      %vm863 = vcmp.eq.s32.totalorder %v862, 1
      %v864 = vsel %vm863, %v850, -1e+30
      %v865 = vsel %vm863, %v851, -1e+30
      %v866 = vsel %vm863, %v852, -1e+30
      %v867 = vsel %vm863, %v853, -1e+30
      %v868 = vsel %vm863, %v854, -1e+30
      %v869 = vsel %vm863, %v855, -1e+30
      %v870 = vsel %vm863, %v856, -1e+30
      %v871 = vsel %vm863, %v857, -1e+30
      %v872 = vsel %vm863, %v858, -1e+30
      %v873 = vsel %vm863, %v859, -1e+30
      %v874 = vsel %vm863, %v860, -1e+30
      %v875 = vsel %vm863, %v861, -1e+30
      %vm876 = vcmask 392192
      %v877 = vsel %vm876, %v864, -inf
      %878 = vmax.xlane.f32.xlu0 %v877
      %v879 = vpop.xlane.xlu0 %878
      %v880 = vsel %vm876, %v865, -inf
      %881 = vmax.xlane.f32.xlu0 %v880
      %v882 = vpop.xlane.xlu0 %881
      %v883 = vsel %vm876, %v866, -inf
      %884 = vmax.xlane.f32.xlu0 %v883
      %v885 = vpop.xlane.xlu0 %884
      %v886 = vsel %vm876, %v867, -inf
      %887 = vmax.xlane.f32.xlu0 %v886
      %v888 = vpop.xlane.xlu0 %887
      %v889 = vsel %vm876, %v868, -inf
      %890 = vmax.xlane.f32.xlu0 %v889
      %v891 = vpop.xlane.xlu0 %890
      %v892 = vsel %vm876, %v869, -inf
      %893 = vmax.xlane.f32.xlu0 %v892
      %v894 = vpop.xlane.xlu0 %893
      %v895 = vsel %vm876, %v870, -inf
      %896 = vmax.xlane.f32.xlu0 %v895
      %v897 = vpop.xlane.xlu0 %896
      %v898 = vsel %vm876, %v871, -inf
      %899 = vmax.xlane.f32.xlu0 %v898
      %v900 = vpop.xlane.xlu0 %899
      %v901 = vsel %vm876, %v872, -inf
      %902 = vmax.xlane.f32.xlu0 %v901
      %v903 = vpop.xlane.xlu0 %902
      %v904 = vsel %vm876, %v873, -inf
      %905 = vmax.xlane.f32.xlu0 %v904
      %v906 = vpop.xlane.xlu0 %905
      %v907 = vsel %vm876, %v874, -inf
      %908 = vmax.xlane.f32.xlu0 %v907
      %v909 = vpop.xlane.xlu0 %908
      %v910 = vsel %vm876, %v875, -inf
      %911 = vmax.xlane.f32.xlu0 %v910
      %v912 = vpop.xlane.xlu0 %911
      %v913 = vsub.f32 %v864, %v879
      %v914 = vsub.f32 %v865, %v882
      %v915 = vsub.f32 %v866, %v885
      %v916 = vsub.f32 %v867, %v888
      %v917 = vsub.f32 %v868, %v891
      %v918 = vsub.f32 %v869, %v894
      %v919 = vsub.f32 %v870, %v897
      %v920 = vsub.f32 %v871, %v900
      %v921 = vsub.f32 %v872, %v903
      %v922 = vsub.f32 %v873, %v906
      %v923 = vsub.f32 %v874, %v909
      %v924 = vsub.f32 %v875, %v912
      %v925 = vmul.f32 %v913, 1.442695
      %v926 = vpow.pop %v925
      %v927 = vmul.f32 %v914, 1.442695
      %v928 = vpow.pop %v927
      %v929 = vmul.f32 %v915, 1.442695
      %v930 = vpow.pop %v929
      %v931 = vmul.f32 %v916, 1.442695
      %v932 = vpow.pop %v931
      %v933 = vmul.f32 %v917, 1.442695
      %v934 = vpow.pop %v933
      %v935 = vmul.f32 %v918, 1.442695
      %v936 = vpow.pop %v935
      %v937 = vmul.f32 %v919, 1.442695
      %v938 = vpow.pop %v937
      %v939 = vmul.f32 %v920, 1.442695
      %v940 = vpow.pop %v939
      %v941 = vmul.f32 %v921, 1.442695
      %v942 = vpow.pop %v941
      %v943 = vmul.f32 %v922, 1.442695
      %v944 = vpow.pop %v943
      %v945 = vmul.f32 %v923, 1.442695
      %v946 = vpow.pop %v945
      %v947 = vmul.f32 %v924, 1.442695
      %v948 = vpow.pop %v947
      %v949 = vsel %vm876, %v926, 0.0
      %950 = vadd.xlane.f32.xlu0 %v949
      %v951 = vpop.xlane.xlu0 %950
      %v952 = vsel %vm876, %v928, 0.0
      %953 = vadd.xlane.f32.xlu0 %v952
      %v954 = vpop.xlane.xlu0 %953
      %v955 = vsel %vm876, %v930, 0.0
      %956 = vadd.xlane.f32.xlu0 %v955
      %v957 = vpop.xlane.xlu0 %956
      %v958 = vsel %vm876, %v932, 0.0
      %959 = vadd.xlane.f32.xlu0 %v958
      %v960 = vpop.xlane.xlu0 %959
      %v961 = vsel %vm876, %v934, 0.0
      %962 = vadd.xlane.f32.xlu0 %v961
      %v963 = vpop.xlane.xlu0 %962
      %v964 = vsel %vm876, %v936, 0.0
      %965 = vadd.xlane.f32.xlu0 %v964
      %v966 = vpop.xlane.xlu0 %965
      %v967 = vsel %vm876, %v938, 0.0
      %968 = vadd.xlane.f32.xlu0 %v967
      %v969 = vpop.xlane.xlu0 %968
      %v970 = vsel %vm876, %v940, 0.0
      %971 = vadd.xlane.f32.xlu0 %v970
      %v972 = vpop.xlane.xlu0 %971
      %v973 = vsel %vm876, %v942, 0.0
      %974 = vadd.xlane.f32.xlu0 %v973
      %v975 = vpop.xlane.xlu0 %974
      %v976 = vsel %vm876, %v944, 0.0
      %977 = vadd.xlane.f32.xlu0 %v976
      %v978 = vpop.xlane.xlu0 %977
      %v979 = vsel %vm876, %v946, 0.0
      %980 = vadd.xlane.f32.xlu0 %v979
      %v981 = vpop.xlane.xlu0 %980
      %v982 = vsel %vm876, %v948, 0.0
      %983 = vadd.xlane.f32.xlu0 %v982
      %v984 = vpop.xlane.xlu0 %983
      %v985 = vrcp.pop %v951
      %v986 = vrcp.pop %v954
      %v987 = vrcp.pop %v957
      %v988 = vrcp.pop %v960
      %v989 = vrcp.pop %v963
      %v990 = vrcp.pop %v966
      %v991 = vrcp.pop %v969
      %v992 = vrcp.pop %v972
      %v993 = vrcp.pop %v975
      %v994 = vrcp.pop %v978
      %v995 = vrcp.pop %v981
      %v996 = vrcp.pop %v984
      %v997 = vmul.f32 %v926, %v985
      %v998 = vmul.f32 %v928, %v986
      %v999 = vmul.f32 %v930, %v987
      %v1000 = vmul.f32 %v932, %v988
      %v1001 = vmul.f32 %v934, %v989
      %v1002 = vmul.f32 %v936, %v990
      %v1003 = vmul.f32 %v938, %v991
      %v1004 = vmul.f32 %v940, %v992
      %v1005 = vmul.f32 %v942, %v993
      %v1006 = vmul.f32 %v944, %v994
      %v1007 = vmul.f32 %v946, %v995
      %v1008 = vmul.f32 %v948, %v996
      %v1009 = vpack.c.bf16 %v998, %v997
      %v1010 = vpack.c.bf16 %v1000, %v999
      %v1011 = vpack.c.bf16 %v1002, %v1001
      %v1012 = vpack.c.bf16 %v1004, %v1003
      %v1013 = vpack.c.bf16 %v1006, %v1005
      %v1014 = vpack.c.bf16 %v1008, %v1007
      %1015 = vrot.lane.b32.xlu0 %v675, 64
      %v1016 = vpop.permute.xlu0 %1015
      %1017 = vrot.lane.b32.xlu0 %v676, 64
      %v1018 = vpop.permute.xlu0 %1017
      %1019 = vrot.lane.b32.xlu0 %v677, 64
      %v1020 = vpop.permute.xlu0 %1019
      %v1025 = vsel %vm876, %v1009, 0
      %v1028 = vsel %vm876, %v1010, 0
      %v1031 = vsel %vm876, %v1011, 0
      %1033 = vmatprep.subr.bf16.mxu0 0
      %1034 = vmatpush1.bf16.msra.mxu0 %v1016
      %1035 = vmatprep.subr.bf16.mxu0 0
      %1036 = vmatpush1.bf16.msra.mxu0 %v1018
      %1037 = vmatprep.subr.bf16.mxu0 0
      %1038 = vmatpush1.bf16.msra.mxu0 %v1020
      %1039 = vmatprep.subr.bf16.mxu0 0
      %1040 = vmatpush1.bf16.msra.mxu0 0
      %1041 = vmatprep.subr.bf16.mxu0 0
      %1042 = vmatpush1.bf16.msra.mxu0 0
      %1043 = vmatprep.subr.bf16.mxu0 0
      %1044 = vmatpush1.bf16.msra.mxu0 0
      %1045 = vmatprep.subr.bf16.mxu0 0
      %1046 = vmatpush1.bf16.msra.mxu0 0
      %1047 = vmatprep.subr.bf16.mxu0 0
      %1048 = vmatpush1.bf16.msra.mxu0 0
      %1049 = vmatprep.subr.bf16.mxu0 0
      %1050 = vmatpush1.bf16.msra.mxu0 0
      %1051 = vmatprep.subr.bf16.mxu0 0
      %1052 = vmatpush1.bf16.msra.mxu0 0
      %1053 = vmatprep.subr.bf16.mxu0 0
      %1054 = vmatpush1.bf16.msra.mxu0 0
      %1055 = vmatprep.subr.bf16.mxu0 0
      %1056 = vmatpush1.bf16.msra.mxu0 0
      %1057 = vmatprep.subr.bf16.mxu0 0
      %1058 = vmatpush1.bf16.msra.mxu0 0
      %1059 = vmatprep.subr.bf16.mxu0 0
      %1060 = vmatpush1.bf16.msra.mxu0 0
      %1061 = vmatprep.subr.bf16.mxu0 0
      %1062 = vmatpush1.bf16.msra.mxu0 0
      %1063 = vmatprep.subr.bf16.mxu0 0
      %1064 = vmatpush1.bf16.msra.mxu0 0
      %1065 = vmatprep.mubr.bf16.mxu0 0
      %1066 = vmatmul.mubr.bf16.gmra.mrb[0].mxu0 %v1025
      %v1067 = vpop.f32.mrb[0].mxu0
      %v1068 = vadd.f32 0.0, %v1067
      %v1069 = vpop.f32.mrb[0].mxu0
      %v1070 = vpop.f32.mrb[0].mxu0
      %v1071 = vadd.f32 0.0, %v1070
      %v1072 = vpop.f32.mrb[0].mxu0
      %1073 = vmatprep.mubr.bf16.mxu0 0
      %1074 = vmatmul.mubr.bf16.gmra.mrb[0].mxu0 %v1028
      %v1075 = vpop.f32.mrb[0].mxu0
      %v1076 = vadd.f32 0.0, %v1075
      %v1077 = vpop.f32.mrb[0].mxu0
      %v1078 = vpop.f32.mrb[0].mxu0
      %v1079 = vadd.f32 0.0, %v1078
      %v1080 = vpop.f32.mrb[0].mxu0
      %1081 = vmatprep.mubr.bf16.mxu0 0
      %1082 = vmatmul.mubr.bf16.gmra.mrb[0].mxu0 %v1031
      %v1083 = vpop.f32.mrb[0].mxu0
      %v1084 = vadd.f32 0.0, %v1083
      %v1085 = vpop.f32.mrb[0].mxu0
      %v1086 = vpop.f32.mrb[0].mxu0
      %v1087 = vadd.f32 0.0, %v1086
      %v1088 = vpop.f32.mrb[0].mxu0
      %1089 = vdwg.mxu0
      %1090 = vrot.lane.b32.xlu0 %v678, 64
      %v1091 = vpop.permute.xlu0 %1090
      %1092 = vrot.lane.b32.xlu0 %v679, 64
      %v1093 = vpop.permute.xlu0 %1092
      %1094 = vrot.lane.b32.xlu0 %v680, 64
      %v1095 = vpop.permute.xlu0 %1094
      %v1100 = vsel %vm876, %v1012, 0
      %v1103 = vsel %vm876, %v1013, 0
      %v1106 = vsel %vm876, %v1014, 0
      %1108 = vmatprep.subr.bf16.mxu0 0
      %1109 = vmatpush1.bf16.msra.mxu0 %v1091
      %1110 = vmatprep.subr.bf16.mxu0 0
      %1111 = vmatpush1.bf16.msra.mxu0 %v1093
      %1112 = vmatprep.subr.bf16.mxu0 0
      %1113 = vmatpush1.bf16.msra.mxu0 %v1095
      %1114 = vmatprep.subr.bf16.mxu0 0
      %1115 = vmatpush1.bf16.msra.mxu0 0
      %1116 = vmatprep.subr.bf16.mxu0 0
      %1117 = vmatpush1.bf16.msra.mxu0 0
      %1118 = vmatprep.subr.bf16.mxu0 0
      %1119 = vmatpush1.bf16.msra.mxu0 0
      %1120 = vmatprep.subr.bf16.mxu0 0
      %1121 = vmatpush1.bf16.msra.mxu0 0
      %1122 = vmatprep.subr.bf16.mxu0 0
      %1123 = vmatpush1.bf16.msra.mxu0 0
      %1124 = vmatprep.subr.bf16.mxu0 0
      %1125 = vmatpush1.bf16.msra.mxu0 0
      %1126 = vmatprep.subr.bf16.mxu0 0
      %1127 = vmatpush1.bf16.msra.mxu0 0
      %1128 = vmatprep.subr.bf16.mxu0 0
      %1129 = vmatpush1.bf16.msra.mxu0 0
      %1130 = vmatprep.subr.bf16.mxu0 0
      %1131 = vmatpush1.bf16.msra.mxu0 0
      %1132 = vmatprep.subr.bf16.mxu0 0
      %1133 = vmatpush1.bf16.msra.mxu0 0
      %1134 = vmatprep.subr.bf16.mxu0 0
      %1135 = vmatpush1.bf16.msra.mxu0 0
      %1136 = vmatprep.subr.bf16.mxu0 0
      %1137 = vmatpush1.bf16.msra.mxu0 0
      %1138 = vmatprep.subr.bf16.mxu0 0
      %1139 = vmatpush1.bf16.msra.mxu0 0
      %1140 = vmatprep.mubr.bf16.mxu0 0
      %1141 = vmatmul.mubr.bf16.gmra.mrb[0].mxu0 %v1100
      %v1142 = vpop.f32.mrb[0].mxu0
      %v1143 = vadd.f32 0.0, %v1142
      %v1144 = vpop.f32.mrb[0].mxu0
      %v1145 = vpop.f32.mrb[0].mxu0
      %v1146 = vadd.f32 0.0, %v1145
      %v1147 = vpop.f32.mrb[0].mxu0
      %1148 = vmatprep.mubr.bf16.mxu0 0
      %1149 = vmatmul.mubr.bf16.gmra.mrb[0].mxu0 %v1103
      %v1150 = vpop.f32.mrb[0].mxu0
      %v1151 = vadd.f32 0.0, %v1150
      %v1152 = vpop.f32.mrb[0].mxu0
      %v1153 = vpop.f32.mrb[0].mxu0
      %v1154 = vadd.f32 0.0, %v1153
      %v1155 = vpop.f32.mrb[0].mxu0
      %1156 = vmatprep.mubr.bf16.mxu0 0
      %1157 = vmatmul.mubr.bf16.gmra.mrb[0].mxu0 %v1106
      %v1158 = vpop.f32.mrb[0].mxu0
      %v1159 = vadd.f32 0.0, %v1158
      %v1160 = vpop.f32.mrb[0].mxu0
      %v1161 = vpop.f32.mrb[0].mxu0
      %v1162 = vadd.f32 0.0, %v1161
      %v1163 = vpop.f32.mrb[0].mxu0
      %1164 = vdwg.mxu0
      %1165 = vrot.lane.b32.xlu0 %v675, 120
      %v1166 = vpop.permute.xlu0 %1165
      %1167 = vrot.lane.b32.xlu0 %v676, 120
      %v1168 = vpop.permute.xlu0 %1167
      %1169 = vrot.lane.b32.xlu0 %v677, 120
      %v1170 = vpop.permute.xlu0 %1169
      %1171 = vrot.lane.b32.xlu0 %v675, 88
      %v1172 = vpop.permute.xlu0 %1171
      %1173 = vrot.lane.b32.xlu0 %v676, 88
      %v1174 = vpop.permute.xlu0 %1173
      %1175 = vrot.lane.b32.xlu0 %v677, 88
      %v1176 = vpop.permute.xlu0 %1175
      %v1178 = vsel %vm690, %v1166, 0
      %v1181 = vsel %vm690, %v1168, 0
      %v1184 = vsel %vm690, %v1170, 0
      %v1187 = vsel %vm690, %v1172, 0
      %v1190 = vsel %vm690, %v1174, 0
      %v1193 = vsel %vm690, %v1176, 0
      %1195 = vmatprep.subr.bf16.mxu0 0
      %1196 = vmatpush1.bf16.xpose.msra.mxu0 %v1187
      %1197 = vmatprep.subr.bf16.mxu0 0
      %1198 = vmatpush1.bf16.xpose.msra.mxu0 %v1190
      %1199 = vmatprep.subr.bf16.mxu0 0
      %1200 = vmatpush1.bf16.xpose.msra.mxu0 %v1193
      %1201 = vmatprep.subr.bf16.mxu0 0
      %1202 = vmatpush1.bf16.xpose.msra.mxu0 0
      %1203 = vmatprep.subr.bf16.mxu0 0
      %1204 = vmatpush1.bf16.xpose.msra.mxu0 0
      %1205 = vmatprep.subr.bf16.mxu0 0
      %1206 = vmatpush1.bf16.xpose.msra.mxu0 0
      %1207 = vmatprep.subr.bf16.mxu0 0
      %1208 = vmatpush1.bf16.xpose.msra.mxu0 0
      %1209 = vmatprep.subr.bf16.mxu0 0
      %1210 = vmatpush1.bf16.xpose.msra.mxu0 0
      %1211 = vmatprep.subr.bf16.mxu0 0
      %1212 = vmatpush1.bf16.xpose.msra.mxu0 0
      %1213 = vmatprep.subr.bf16.mxu0 0
      %1214 = vmatpush1.bf16.xpose.msra.mxu0 0
      %1215 = vmatprep.subr.bf16.mxu0 0
      %1216 = vmatpush1.bf16.xpose.msra.mxu0 0
      %1217 = vmatprep.subr.bf16.mxu0 0
      %1218 = vmatpush1.bf16.xpose.msra.mxu0 0
      %1219 = vmatprep.subr.bf16.mxu0 0
      %1220 = vmatpush1.bf16.xpose.msra.mxu0 0
      %1221 = vmatprep.subr.bf16.mxu0 0
      %1222 = vmatpush1.bf16.xpose.msra.mxu0 0
      %1223 = vmatprep.subr.bf16.mxu0 0
      %1224 = vmatpush1.bf16.xpose.msra.mxu0 0
      %1225 = vmatprep.subr.bf16.mxu0 0
      %1226 = vmatpush1.bf16.xpose.msra.mxu0 0
      %1227 = vmatprep.mubr.bf16.mxu0 0
      %1228 = vmatmul.mubr.bf16.gmra.mrb[0].mxu0 %v1178
      %v1229 = vpop.f32.mrb[0].mxu0
      %v1230 = vadd.f32 0.0, %v1229
      %v1231 = vpop.f32.mrb[0].mxu0
      %v1232 = vpop.f32.mrb[0].mxu0
      %v1233 = vadd.f32 0.0, %v1232
      %v1234 = vpop.f32.mrb[0].mxu0
      %1235 = vmatprep.mubr.bf16.mxu0 0
      %1236 = vmatmul.mubr.bf16.gmra.mrb[0].mxu0 %v1181
      %v1237 = vpop.f32.mrb[0].mxu0
      %v1238 = vadd.f32 0.0, %v1237
      %v1239 = vpop.f32.mrb[0].mxu0
      %v1240 = vpop.f32.mrb[0].mxu0
      %v1241 = vadd.f32 0.0, %v1240
      %v1242 = vpop.f32.mrb[0].mxu0
      %1243 = vmatprep.mubr.bf16.mxu0 0
      %1244 = vmatmul.mubr.bf16.gmra.mrb[0].mxu0 %v1184
      %v1245 = vpop.f32.mrb[0].mxu0
      %v1246 = vadd.f32 0.0, %v1245
      %v1247 = vpop.f32.mrb[0].mxu0
      %v1248 = vpop.f32.mrb[0].mxu0
      %v1249 = vadd.f32 0.0, %v1248
      %v1250 = vpop.f32.mrb[0].mxu0
      %1251 = vdwg.mxu0
      %1252 = vrot.lane.b32.xlu0 %v678, 120
      %v1253 = vpop.permute.xlu0 %1252
      %1254 = vrot.lane.b32.xlu0 %v679, 120
      %v1255 = vpop.permute.xlu0 %1254
      %1256 = vrot.lane.b32.xlu0 %v680, 120
      %v1257 = vpop.permute.xlu0 %1256
      %1258 = vrot.lane.b32.xlu0 %v678, 88
      %v1259 = vpop.permute.xlu0 %1258
      %1260 = vrot.lane.b32.xlu0 %v679, 88
      %v1261 = vpop.permute.xlu0 %1260
      %1262 = vrot.lane.b32.xlu0 %v680, 88
      %v1263 = vpop.permute.xlu0 %1262
      %v1265 = vsel %vm690, %v1253, 0
      %v1268 = vsel %vm690, %v1255, 0
      %v1271 = vsel %vm690, %v1257, 0
      %v1274 = vsel %vm690, %v1259, 0
      %v1277 = vsel %vm690, %v1261, 0
      %v1280 = vsel %vm690, %v1263, 0
      %1282 = vmatprep.subr.bf16.mxu0 0
      %1283 = vmatpush1.bf16.xpose.msra.mxu0 %v1274
      %1284 = vmatprep.subr.bf16.mxu0 0
      %1285 = vmatpush1.bf16.xpose.msra.mxu0 %v1277
      %1286 = vmatprep.subr.bf16.mxu0 0
      %1287 = vmatpush1.bf16.xpose.msra.mxu0 %v1280
      %1288 = vmatprep.subr.bf16.mxu0 0
      %1289 = vmatpush1.bf16.xpose.msra.mxu0 0
      %1290 = vmatprep.subr.bf16.mxu0 0
      %1291 = vmatpush1.bf16.xpose.msra.mxu0 0
      %1292 = vmatprep.subr.bf16.mxu0 0
      %1293 = vmatpush1.bf16.xpose.msra.mxu0 0
      %1294 = vmatprep.subr.bf16.mxu0 0
      %1295 = vmatpush1.bf16.xpose.msra.mxu0 0
      %1296 = vmatprep.subr.bf16.mxu0 0
      %1297 = vmatpush1.bf16.xpose.msra.mxu0 0
      %1298 = vmatprep.subr.bf16.mxu0 0
      %1299 = vmatpush1.bf16.xpose.msra.mxu0 0
      %1300 = vmatprep.subr.bf16.mxu0 0
      %1301 = vmatpush1.bf16.xpose.msra.mxu0 0
      %1302 = vmatprep.subr.bf16.mxu0 0
      %1303 = vmatpush1.bf16.xpose.msra.mxu0 0
      %1304 = vmatprep.subr.bf16.mxu0 0
      %1305 = vmatpush1.bf16.xpose.msra.mxu0 0
      %1306 = vmatprep.subr.bf16.mxu0 0
      %1307 = vmatpush1.bf16.xpose.msra.mxu0 0
      %1308 = vmatprep.subr.bf16.mxu0 0
      %1309 = vmatpush1.bf16.xpose.msra.mxu0 0
      %1310 = vmatprep.subr.bf16.mxu0 0
      %1311 = vmatpush1.bf16.xpose.msra.mxu0 0
      %1312 = vmatprep.subr.bf16.mxu0 0
      %1313 = vmatpush1.bf16.xpose.msra.mxu0 0
      %1314 = vmatprep.mubr.bf16.mxu0 0
      %1315 = vmatmul.mubr.bf16.gmra.mrb[0].mxu0 %v1265
      %v1316 = vpop.f32.mrb[0].mxu0
      %v1317 = vadd.f32 0.0, %v1316
      %v1318 = vpop.f32.mrb[0].mxu0
      %v1319 = vpop.f32.mrb[0].mxu0
      %v1320 = vadd.f32 0.0, %v1319
      %v1321 = vpop.f32.mrb[0].mxu0
      %1322 = vmatprep.mubr.bf16.mxu0 0
      %1323 = vmatmul.mubr.bf16.gmra.mrb[0].mxu0 %v1268
      %v1324 = vpop.f32.mrb[0].mxu0
      %v1325 = vadd.f32 0.0, %v1324
      %v1326 = vpop.f32.mrb[0].mxu0
      %v1327 = vpop.f32.mrb[0].mxu0
      %v1328 = vadd.f32 0.0, %v1327
      %v1329 = vpop.f32.mrb[0].mxu0
      %1330 = vmatprep.mubr.bf16.mxu0 0
      %1331 = vmatmul.mubr.bf16.gmra.mrb[0].mxu0 %v1271
      %v1332 = vpop.f32.mrb[0].mxu0
      %v1333 = vadd.f32 0.0, %v1332
      %v1334 = vpop.f32.mrb[0].mxu0
      %v1335 = vpop.f32.mrb[0].mxu0
      %v1336 = vadd.f32 0.0, %v1335
      %v1337 = vpop.f32.mrb[0].mxu0
      %1338 = vdwg.mxu0
      %v1339 = vmul.f32 %v1230, 0.35355338
      %v1340 = vmul.f32 %v1233, 0.35355338
      %v1341 = vmul.f32 %v1238, 0.35355338
      %v1342 = vmul.f32 %v1241, 0.35355338
      %v1343 = vmul.f32 %v1246, 0.35355338
      %v1344 = vmul.f32 %v1249, 0.35355338
      %v1345 = vmul.f32 %v1317, 0.35355338
      %v1346 = vmul.f32 %v1320, 0.35355338
      %v1347 = vmul.f32 %v1325, 0.35355338
      %v1348 = vmul.f32 %v1328, 0.35355338
      %v1349 = vmul.f32 %v1333, 0.35355338
      %v1350 = vmul.f32 %v1336, 0.35355338
      %v1351 = vsel %vm863, %v1339, -1e+30
      %v1352 = vsel %vm863, %v1340, -1e+30
      %v1353 = vsel %vm863, %v1341, -1e+30
      %v1354 = vsel %vm863, %v1342, -1e+30
      %v1355 = vsel %vm863, %v1343, -1e+30
      %v1356 = vsel %vm863, %v1344, -1e+30
      %v1357 = vsel %vm863, %v1345, -1e+30
      %v1358 = vsel %vm863, %v1346, -1e+30
      %v1359 = vsel %vm863, %v1347, -1e+30
      %v1360 = vsel %vm863, %v1348, -1e+30
      %v1361 = vsel %vm863, %v1349, -1e+30
      %v1362 = vsel %vm863, %v1350, -1e+30
      %v1363 = vsel %vm876, %v1351, -inf
      %1364 = vmax.xlane.f32.xlu0 %v1363
      %v1365 = vpop.xlane.xlu0 %1364
      %v1366 = vsel %vm876, %v1352, -inf
      %1367 = vmax.xlane.f32.xlu0 %v1366
      %v1368 = vpop.xlane.xlu0 %1367
      %v1369 = vsel %vm876, %v1353, -inf
      %1370 = vmax.xlane.f32.xlu0 %v1369
      %v1371 = vpop.xlane.xlu0 %1370
      %v1372 = vsel %vm876, %v1354, -inf
      %1373 = vmax.xlane.f32.xlu0 %v1372
      %v1374 = vpop.xlane.xlu0 %1373
      %v1375 = vsel %vm876, %v1355, -inf
      %1376 = vmax.xlane.f32.xlu0 %v1375
      %v1377 = vpop.xlane.xlu0 %1376
      %v1378 = vsel %vm876, %v1356, -inf
      %1379 = vmax.xlane.f32.xlu0 %v1378
      %v1380 = vpop.xlane.xlu0 %1379
      %v1381 = vsel %vm876, %v1357, -inf
      %1382 = vmax.xlane.f32.xlu0 %v1381
      %v1383 = vpop.xlane.xlu0 %1382
      %v1384 = vsel %vm876, %v1358, -inf
      %1385 = vmax.xlane.f32.xlu0 %v1384
      %v1386 = vpop.xlane.xlu0 %1385
      %v1387 = vsel %vm876, %v1359, -inf
      %1388 = vmax.xlane.f32.xlu0 %v1387
      %v1389 = vpop.xlane.xlu0 %1388
      %v1390 = vsel %vm876, %v1360, -inf
      %1391 = vmax.xlane.f32.xlu0 %v1390
      %v1392 = vpop.xlane.xlu0 %1391
      %v1393 = vsel %vm876, %v1361, -inf
      %1394 = vmax.xlane.f32.xlu0 %v1393
      %v1395 = vpop.xlane.xlu0 %1394
      %v1396 = vsel %vm876, %v1362, -inf
      %1397 = vmax.xlane.f32.xlu0 %v1396
      %v1398 = vpop.xlane.xlu0 %1397
      %v1399 = vsub.f32 %v1351, %v1365
      %v1400 = vsub.f32 %v1352, %v1368
      %v1401 = vsub.f32 %v1353, %v1371
      %v1402 = vsub.f32 %v1354, %v1374
      %v1403 = vsub.f32 %v1355, %v1377
      %v1404 = vsub.f32 %v1356, %v1380
      %v1405 = vsub.f32 %v1357, %v1383
      %v1406 = vsub.f32 %v1358, %v1386
      %v1407 = vsub.f32 %v1359, %v1389
      %v1408 = vsub.f32 %v1360, %v1392
      %v1409 = vsub.f32 %v1361, %v1395
      %v1410 = vsub.f32 %v1362, %v1398
      %v1411 = vmul.f32 %v1399, 1.442695
      %v1412 = vpow.pop %v1411
      %v1413 = vmul.f32 %v1400, 1.442695
      %v1414 = vpow.pop %v1413
      %v1415 = vmul.f32 %v1401, 1.442695
      %v1416 = vpow.pop %v1415
      %v1417 = vmul.f32 %v1402, 1.442695
      %v1418 = vpow.pop %v1417
      %v1419 = vmul.f32 %v1403, 1.442695
      %v1420 = vpow.pop %v1419
      %v1421 = vmul.f32 %v1404, 1.442695
      %v1422 = vpow.pop %v1421
      %v1423 = vmul.f32 %v1405, 1.442695
      %v1424 = vpow.pop %v1423
      %v1425 = vmul.f32 %v1406, 1.442695
      %v1426 = vpow.pop %v1425
      %v1427 = vmul.f32 %v1407, 1.442695
      %v1428 = vpow.pop %v1427
      %v1429 = vmul.f32 %v1408, 1.442695
      %v1430 = vpow.pop %v1429
      %v1431 = vmul.f32 %v1409, 1.442695
      %v1432 = vpow.pop %v1431
      %v1433 = vmul.f32 %v1410, 1.442695
      %v1434 = vpow.pop %v1433
      %v1435 = vsel %vm876, %v1412, 0.0
      %1436 = vadd.xlane.f32.xlu0 %v1435
      %v1437 = vpop.xlane.xlu0 %1436
      %v1438 = vsel %vm876, %v1414, 0.0
      %1439 = vadd.xlane.f32.xlu0 %v1438
      %v1440 = vpop.xlane.xlu0 %1439
      %v1441 = vsel %vm876, %v1416, 0.0
      %1442 = vadd.xlane.f32.xlu0 %v1441
      %v1443 = vpop.xlane.xlu0 %1442
      %v1444 = vsel %vm876, %v1418, 0.0
      %1445 = vadd.xlane.f32.xlu0 %v1444
      %v1446 = vpop.xlane.xlu0 %1445
      %v1447 = vsel %vm876, %v1420, 0.0
      %1448 = vadd.xlane.f32.xlu0 %v1447
      %v1449 = vpop.xlane.xlu0 %1448
      %v1450 = vsel %vm876, %v1422, 0.0
      %1451 = vadd.xlane.f32.xlu0 %v1450
      %v1452 = vpop.xlane.xlu0 %1451
      %v1453 = vsel %vm876, %v1424, 0.0
      %1454 = vadd.xlane.f32.xlu0 %v1453
      %v1455 = vpop.xlane.xlu0 %1454
      %v1456 = vsel %vm876, %v1426, 0.0
      %1457 = vadd.xlane.f32.xlu0 %v1456
      %v1458 = vpop.xlane.xlu0 %1457
      %v1459 = vsel %vm876, %v1428, 0.0
      %1460 = vadd.xlane.f32.xlu0 %v1459
      %v1461 = vpop.xlane.xlu0 %1460
      %v1462 = vsel %vm876, %v1430, 0.0
      %1463 = vadd.xlane.f32.xlu0 %v1462
      %v1464 = vpop.xlane.xlu0 %1463
      %v1465 = vsel %vm876, %v1432, 0.0
      %1466 = vadd.xlane.f32.xlu0 %v1465
      %v1467 = vpop.xlane.xlu0 %1466
      %v1468 = vsel %vm876, %v1434, 0.0
      %1469 = vadd.xlane.f32.xlu0 %v1468
      %v1470 = vpop.xlane.xlu0 %1469
      %v1471 = vrcp.pop %v1437
      %v1472 = vrcp.pop %v1440
      %v1473 = vrcp.pop %v1443
      %v1474 = vrcp.pop %v1446
      %v1475 = vrcp.pop %v1449
      %v1476 = vrcp.pop %v1452
      %v1477 = vrcp.pop %v1455
      %v1478 = vrcp.pop %v1458
      %v1479 = vrcp.pop %v1461
      %v1480 = vrcp.pop %v1464
      %v1481 = vrcp.pop %v1467
      %v1482 = vrcp.pop %v1470
      %v1483 = vmul.f32 %v1412, %v1471
      %v1484 = vmul.f32 %v1414, %v1472
      %v1485 = vmul.f32 %v1416, %v1473
      %v1486 = vmul.f32 %v1418, %v1474
      %v1487 = vmul.f32 %v1420, %v1475
      %v1488 = vmul.f32 %v1422, %v1476
      %v1489 = vmul.f32 %v1424, %v1477
      %v1490 = vmul.f32 %v1426, %v1478
      %v1491 = vmul.f32 %v1428, %v1479
      %v1492 = vmul.f32 %v1430, %v1480
      %v1493 = vmul.f32 %v1432, %v1481
      %v1494 = vmul.f32 %v1434, %v1482
      %v1495 = vpack.c.bf16 %v1484, %v1483
      %v1496 = vpack.c.bf16 %v1486, %v1485
      %v1497 = vpack.c.bf16 %v1488, %v1487
      %v1498 = vpack.c.bf16 %v1490, %v1489
      %v1499 = vpack.c.bf16 %v1492, %v1491
      %v1500 = vpack.c.bf16 %v1494, %v1493
      %1501 = vrot.lane.b32.xlu0 %v675, 56
      %v1502 = vpop.permute.xlu0 %1501
      %1503 = vrot.lane.b32.xlu0 %v676, 56
      %v1504 = vpop.permute.xlu0 %1503
      %1505 = vrot.lane.b32.xlu0 %v677, 56
      %v1506 = vpop.permute.xlu0 %1505
      %v1511 = vsel %vm876, %v1495, 0
      %v1514 = vsel %vm876, %v1496, 0
      %v1517 = vsel %vm876, %v1497, 0
      %1519 = vmatprep.subr.bf16.mxu0 0
      %1520 = vmatpush1.bf16.msra.mxu0 %v1502
      %1521 = vmatprep.subr.bf16.mxu0 0
      %1522 = vmatpush1.bf16.msra.mxu0 %v1504
      %1523 = vmatprep.subr.bf16.mxu0 0
      %1524 = vmatpush1.bf16.msra.mxu0 %v1506
      %1525 = vmatprep.subr.bf16.mxu0 0
      %1526 = vmatpush1.bf16.msra.mxu0 0
      %1527 = vmatprep.subr.bf16.mxu0 0
      %1528 = vmatpush1.bf16.msra.mxu0 0
      %1529 = vmatprep.subr.bf16.mxu0 0
      %1530 = vmatpush1.bf16.msra.mxu0 0
      %1531 = vmatprep.subr.bf16.mxu0 0
      %1532 = vmatpush1.bf16.msra.mxu0 0
      %1533 = vmatprep.subr.bf16.mxu0 0
      %1534 = vmatpush1.bf16.msra.mxu0 0
      %1535 = vmatprep.subr.bf16.mxu0 0
      %1536 = vmatpush1.bf16.msra.mxu0 0
      %1537 = vmatprep.subr.bf16.mxu0 0
      %1538 = vmatpush1.bf16.msra.mxu0 0
      %1539 = vmatprep.subr.bf16.mxu0 0
      %1540 = vmatpush1.bf16.msra.mxu0 0
      %1541 = vmatprep.subr.bf16.mxu0 0
      %1542 = vmatpush1.bf16.msra.mxu0 0
      %1543 = vmatprep.subr.bf16.mxu0 0
      %1544 = vmatpush1.bf16.msra.mxu0 0
      %1545 = vmatprep.subr.bf16.mxu0 0
      %1546 = vmatpush1.bf16.msra.mxu0 0
      %1547 = vmatprep.subr.bf16.mxu0 0
      %1548 = vmatpush1.bf16.msra.mxu0 0
      %1549 = vmatprep.subr.bf16.mxu0 0
      %1550 = vmatpush1.bf16.msra.mxu0 0
      %1551 = vmatprep.mubr.bf16.mxu0 0
      %1552 = vmatmul.mubr.bf16.gmra.mrb[0].mxu0 %v1511
      %v1553 = vpop.f32.mrb[0].mxu0
      %v1554 = vadd.f32 0.0, %v1553
      %v1555 = vpop.f32.mrb[0].mxu0
      %v1556 = vpop.f32.mrb[0].mxu0
      %v1557 = vadd.f32 0.0, %v1556
      %v1558 = vpop.f32.mrb[0].mxu0
      %1559 = vmatprep.mubr.bf16.mxu0 0
      %1560 = vmatmul.mubr.bf16.gmra.mrb[0].mxu0 %v1514
      %v1561 = vpop.f32.mrb[0].mxu0
      %v1562 = vadd.f32 0.0, %v1561
      %v1563 = vpop.f32.mrb[0].mxu0
      %v1564 = vpop.f32.mrb[0].mxu0
      %v1565 = vadd.f32 0.0, %v1564
      %v1566 = vpop.f32.mrb[0].mxu0
      %1567 = vmatprep.mubr.bf16.mxu0 0
      %1568 = vmatmul.mubr.bf16.gmra.mrb[0].mxu0 %v1517
      %v1569 = vpop.f32.mrb[0].mxu0
      %v1570 = vadd.f32 0.0, %v1569
      %v1571 = vpop.f32.mrb[0].mxu0
      %v1572 = vpop.f32.mrb[0].mxu0
      %v1573 = vadd.f32 0.0, %v1572
      %v1574 = vpop.f32.mrb[0].mxu0
      %1575 = vdwg.mxu0
      %1576 = vrot.lane.b32.xlu0 %v678, 56
      %v1577 = vpop.permute.xlu0 %1576
      %1578 = vrot.lane.b32.xlu0 %v679, 56
      %v1579 = vpop.permute.xlu0 %1578
      %1580 = vrot.lane.b32.xlu0 %v680, 56
      %v1581 = vpop.permute.xlu0 %1580
      %v1586 = vsel %vm876, %v1498, 0
      %v1589 = vsel %vm876, %v1499, 0
      %v1592 = vsel %vm876, %v1500, 0
      %1594 = vmatprep.subr.bf16.mxu0 0
      %1595 = vmatpush1.bf16.msra.mxu0 %v1577
      %1596 = vmatprep.subr.bf16.mxu0 0
      %1597 = vmatpush1.bf16.msra.mxu0 %v1579
      %1598 = vmatprep.subr.bf16.mxu0 0
      %1599 = vmatpush1.bf16.msra.mxu0 %v1581
      %1600 = vmatprep.subr.bf16.mxu0 0
      %1601 = vmatpush1.bf16.msra.mxu0 0
      %1602 = vmatprep.subr.bf16.mxu0 0
      %1603 = vmatpush1.bf16.msra.mxu0 0
      %1604 = vmatprep.subr.bf16.mxu0 0
      %1605 = vmatpush1.bf16.msra.mxu0 0
      %1606 = vmatprep.subr.bf16.mxu0 0
      %1607 = vmatpush1.bf16.msra.mxu0 0
      %1608 = vmatprep.subr.bf16.mxu0 0
      %1609 = vmatpush1.bf16.msra.mxu0 0
      %1610 = vmatprep.subr.bf16.mxu0 0
      %1611 = vmatpush1.bf16.msra.mxu0 0
      %1612 = vmatprep.subr.bf16.mxu0 0
      %1613 = vmatpush1.bf16.msra.mxu0 0
      %1614 = vmatprep.subr.bf16.mxu0 0
      %1615 = vmatpush1.bf16.msra.mxu0 0
      %1616 = vmatprep.subr.bf16.mxu0 0
      %1617 = vmatpush1.bf16.msra.mxu0 0
      %1618 = vmatprep.subr.bf16.mxu0 0
      %1619 = vmatpush1.bf16.msra.mxu0 0
      %1620 = vmatprep.subr.bf16.mxu0 0
      %1621 = vmatpush1.bf16.msra.mxu0 0
      %1622 = vmatprep.subr.bf16.mxu0 0
      %1623 = vmatpush1.bf16.msra.mxu0 0
      %1624 = vmatprep.subr.bf16.mxu0 0
      %1625 = vmatpush1.bf16.msra.mxu0 0
      %1626 = vmatprep.mubr.bf16.mxu0 0
      %1627 = vmatmul.mubr.bf16.gmra.mrb[0].mxu0 %v1586
      %v1628 = vpop.f32.mrb[0].mxu0
      %v1629 = vadd.f32 0.0, %v1628
      %v1630 = vpop.f32.mrb[0].mxu0
      %v1631 = vpop.f32.mrb[0].mxu0
      %v1632 = vadd.f32 0.0, %v1631
      %v1633 = vpop.f32.mrb[0].mxu0
      %1634 = vmatprep.mubr.bf16.mxu0 0
      %1635 = vmatmul.mubr.bf16.gmra.mrb[0].mxu0 %v1589
      %v1636 = vpop.f32.mrb[0].mxu0
      %v1637 = vadd.f32 0.0, %v1636
      %v1638 = vpop.f32.mrb[0].mxu0
      %v1639 = vpop.f32.mrb[0].mxu0
      %v1640 = vadd.f32 0.0, %v1639
      %v1641 = vpop.f32.mrb[0].mxu0
      %1642 = vmatprep.mubr.bf16.mxu0 0
      %1643 = vmatmul.mubr.bf16.gmra.mrb[0].mxu0 %v1592
      %v1644 = vpop.f32.mrb[0].mxu0
      %v1645 = vadd.f32 0.0, %v1644
      %v1646 = vpop.f32.mrb[0].mxu0
      %v1647 = vpop.f32.mrb[0].mxu0
      %v1648 = vadd.f32 0.0, %v1647
      %v1649 = vpop.f32.mrb[0].mxu0
      %1650 = vdwg.mxu0
      %1651 = vrot.lane.b32.xlu0 %v675, 112
      %v1652 = vpop.permute.xlu0 %1651
      %1653 = vrot.lane.b32.xlu0 %v676, 112
      %v1654 = vpop.permute.xlu0 %1653
      %1655 = vrot.lane.b32.xlu0 %v677, 112
      %v1656 = vpop.permute.xlu0 %1655
      %1657 = vrot.lane.b32.xlu0 %v675, 80
      %v1658 = vpop.permute.xlu0 %1657
      %1659 = vrot.lane.b32.xlu0 %v676, 80
      %v1660 = vpop.permute.xlu0 %1659
      %1661 = vrot.lane.b32.xlu0 %v677, 80
      %v1662 = vpop.permute.xlu0 %1661
      %v1664 = vsel %vm690, %v1652, 0
      %v1667 = vsel %vm690, %v1654, 0
      %v1670 = vsel %vm690, %v1656, 0
      %v1673 = vsel %vm690, %v1658, 0
      %v1676 = vsel %vm690, %v1660, 0
      %v1679 = vsel %vm690, %v1662, 0
      %1681 = vmatprep.subr.bf16.mxu0 0
      %1682 = vmatpush1.bf16.xpose.msra.mxu0 %v1673
      %1683 = vmatprep.subr.bf16.mxu0 0
      %1684 = vmatpush1.bf16.xpose.msra.mxu0 %v1676
      %1685 = vmatprep.subr.bf16.mxu0 0
      %1686 = vmatpush1.bf16.xpose.msra.mxu0 %v1679
      %1687 = vmatprep.subr.bf16.mxu0 0
      %1688 = vmatpush1.bf16.xpose.msra.mxu0 0
      %1689 = vmatprep.subr.bf16.mxu0 0
      %1690 = vmatpush1.bf16.xpose.msra.mxu0 0
      %1691 = vmatprep.subr.bf16.mxu0 0
      %1692 = vmatpush1.bf16.xpose.msra.mxu0 0
      %1693 = vmatprep.subr.bf16.mxu0 0
      %1694 = vmatpush1.bf16.xpose.msra.mxu0 0
      %1695 = vmatprep.subr.bf16.mxu0 0
      %1696 = vmatpush1.bf16.xpose.msra.mxu0 0
      %1697 = vmatprep.subr.bf16.mxu0 0
      %1698 = vmatpush1.bf16.xpose.msra.mxu0 0
      %1699 = vmatprep.subr.bf16.mxu0 0
      %1700 = vmatpush1.bf16.xpose.msra.mxu0 0
      %1701 = vmatprep.subr.bf16.mxu0 0
      %1702 = vmatpush1.bf16.xpose.msra.mxu0 0
      %1703 = vmatprep.subr.bf16.mxu0 0
      %1704 = vmatpush1.bf16.xpose.msra.mxu0 0
      %1705 = vmatprep.subr.bf16.mxu0 0
      %1706 = vmatpush1.bf16.xpose.msra.mxu0 0
      %1707 = vmatprep.subr.bf16.mxu0 0
      %1708 = vmatpush1.bf16.xpose.msra.mxu0 0
      %1709 = vmatprep.subr.bf16.mxu0 0
      %1710 = vmatpush1.bf16.xpose.msra.mxu0 0
      %1711 = vmatprep.subr.bf16.mxu0 0
      %1712 = vmatpush1.bf16.xpose.msra.mxu0 0
      %1713 = vmatprep.mubr.bf16.mxu0 0
      %1714 = vmatmul.mubr.bf16.gmra.mrb[0].mxu0 %v1664
      %v1715 = vpop.f32.mrb[0].mxu0
      %v1716 = vadd.f32 0.0, %v1715
      %v1717 = vpop.f32.mrb[0].mxu0
      %v1718 = vpop.f32.mrb[0].mxu0
      %v1719 = vadd.f32 0.0, %v1718
      %v1720 = vpop.f32.mrb[0].mxu0
      %1721 = vmatprep.mubr.bf16.mxu0 0
      %1722 = vmatmul.mubr.bf16.gmra.mrb[0].mxu0 %v1667
      %v1723 = vpop.f32.mrb[0].mxu0
      %v1724 = vadd.f32 0.0, %v1723
      %v1725 = vpop.f32.mrb[0].mxu0
      %v1726 = vpop.f32.mrb[0].mxu0
      %v1727 = vadd.f32 0.0, %v1726
      %v1728 = vpop.f32.mrb[0].mxu0
      %1729 = vmatprep.mubr.bf16.mxu0 0
      %1730 = vmatmul.mubr.bf16.gmra.mrb[0].mxu0 %v1670
      %v1731 = vpop.f32.mrb[0].mxu0
      %v1732 = vadd.f32 0.0, %v1731
      %v1733 = vpop.f32.mrb[0].mxu0
      %v1734 = vpop.f32.mrb[0].mxu0
      %v1735 = vadd.f32 0.0, %v1734
      %v1736 = vpop.f32.mrb[0].mxu0
      %1737 = vdwg.mxu0
      %1738 = vrot.lane.b32.xlu0 %v678, 112
      %v1739 = vpop.permute.xlu0 %1738
      %1740 = vrot.lane.b32.xlu0 %v679, 112
      %v1741 = vpop.permute.xlu0 %1740
      %1742 = vrot.lane.b32.xlu0 %v680, 112
      %v1743 = vpop.permute.xlu0 %1742
      %1744 = vrot.lane.b32.xlu0 %v678, 80
      %v1745 = vpop.permute.xlu0 %1744
      %1746 = vrot.lane.b32.xlu0 %v679, 80
      %v1747 = vpop.permute.xlu0 %1746
      %1748 = vrot.lane.b32.xlu0 %v680, 80
      %v1749 = vpop.permute.xlu0 %1748
      %v1751 = vsel %vm690, %v1739, 0
      %v1754 = vsel %vm690, %v1741, 0
      %v1757 = vsel %vm690, %v1743, 0
      %v1760 = vsel %vm690, %v1745, 0
      %v1763 = vsel %vm690, %v1747, 0
      %v1766 = vsel %vm690, %v1749, 0
      %1768 = vmatprep.subr.bf16.mxu0 0
      %1769 = vmatpush1.bf16.xpose.msra.mxu0 %v1760
      %1770 = vmatprep.subr.bf16.mxu0 0
      %1771 = vmatpush1.bf16.xpose.msra.mxu0 %v1763
      %1772 = vmatprep.subr.bf16.mxu0 0
      %1773 = vmatpush1.bf16.xpose.msra.mxu0 %v1766
      %1774 = vmatprep.subr.bf16.mxu0 0
      %1775 = vmatpush1.bf16.xpose.msra.mxu0 0
      %1776 = vmatprep.subr.bf16.mxu0 0
      %1777 = vmatpush1.bf16.xpose.msra.mxu0 0
      %1778 = vmatprep.subr.bf16.mxu0 0
      %1779 = vmatpush1.bf16.xpose.msra.mxu0 0
      %1780 = vmatprep.subr.bf16.mxu0 0
      %1781 = vmatpush1.bf16.xpose.msra.mxu0 0
      %1782 = vmatprep.subr.bf16.mxu0 0
      %1783 = vmatpush1.bf16.xpose.msra.mxu0 0
      %1784 = vmatprep.subr.bf16.mxu0 0
      %1785 = vmatpush1.bf16.xpose.msra.mxu0 0
      %1786 = vmatprep.subr.bf16.mxu0 0
      %1787 = vmatpush1.bf16.xpose.msra.mxu0 0
      %1788 = vmatprep.subr.bf16.mxu0 0
      %1789 = vmatpush1.bf16.xpose.msra.mxu0 0
      %1790 = vmatprep.subr.bf16.mxu0 0
      %1791 = vmatpush1.bf16.xpose.msra.mxu0 0
      %1792 = vmatprep.subr.bf16.mxu0 0
      %1793 = vmatpush1.bf16.xpose.msra.mxu0 0
      %1794 = vmatprep.subr.bf16.mxu0 0
      %1795 = vmatpush1.bf16.xpose.msra.mxu0 0
      %1796 = vmatprep.subr.bf16.mxu0 0
      %1797 = vmatpush1.bf16.xpose.msra.mxu0 0
      %1798 = vmatprep.subr.bf16.mxu0 0
      %1799 = vmatpush1.bf16.xpose.msra.mxu0 0
      %1800 = vmatprep.mubr.bf16.mxu0 0
      %1801 = vmatmul.mubr.bf16.gmra.mrb[0].mxu0 %v1751
      %v1802 = vpop.f32.mrb[0].mxu0
      %v1803 = vadd.f32 0.0, %v1802
      %v1804 = vpop.f32.mrb[0].mxu0
      %v1805 = vpop.f32.mrb[0].mxu0
      %v1806 = vadd.f32 0.0, %v1805
      %v1807 = vpop.f32.mrb[0].mxu0
      %1808 = vmatprep.mubr.bf16.mxu0 0
      %1809 = vmatmul.mubr.bf16.gmra.mrb[0].mxu0 %v1754
      %v1810 = vpop.f32.mrb[0].mxu0
      %v1811 = vadd.f32 0.0, %v1810
      %v1812 = vpop.f32.mrb[0].mxu0
      %v1813 = vpop.f32.mrb[0].mxu0
      %v1814 = vadd.f32 0.0, %v1813
      %v1815 = vpop.f32.mrb[0].mxu0
      %1816 = vmatprep.mubr.bf16.mxu0 0
      %1817 = vmatmul.mubr.bf16.gmra.mrb[0].mxu0 %v1757
      %v1818 = vpop.f32.mrb[0].mxu0
      %v1819 = vadd.f32 0.0, %v1818
      %v1820 = vpop.f32.mrb[0].mxu0
      %v1821 = vpop.f32.mrb[0].mxu0
      %v1822 = vadd.f32 0.0, %v1821
      %v1823 = vpop.f32.mrb[0].mxu0
      %1824 = vdwg.mxu0
      %v1825 = vmul.f32 %v1716, 0.35355338
      %v1826 = vmul.f32 %v1719, 0.35355338
      %v1827 = vmul.f32 %v1724, 0.35355338
      %v1828 = vmul.f32 %v1727, 0.35355338
      %v1829 = vmul.f32 %v1732, 0.35355338
      %v1830 = vmul.f32 %v1735, 0.35355338
      %v1831 = vmul.f32 %v1803, 0.35355338
      %v1832 = vmul.f32 %v1806, 0.35355338
      %v1833 = vmul.f32 %v1811, 0.35355338
      %v1834 = vmul.f32 %v1814, 0.35355338
      %v1835 = vmul.f32 %v1819, 0.35355338
      %v1836 = vmul.f32 %v1822, 0.35355338
      %v1837 = vsel %vm863, %v1825, -1e+30
      %v1838 = vsel %vm863, %v1826, -1e+30
      %v1839 = vsel %vm863, %v1827, -1e+30
      %v1840 = vsel %vm863, %v1828, -1e+30
      %v1841 = vsel %vm863, %v1829, -1e+30
      %v1842 = vsel %vm863, %v1830, -1e+30
      %v1843 = vsel %vm863, %v1831, -1e+30
      %v1844 = vsel %vm863, %v1832, -1e+30
      %v1845 = vsel %vm863, %v1833, -1e+30
      %v1846 = vsel %vm863, %v1834, -1e+30
      %v1847 = vsel %vm863, %v1835, -1e+30
      %v1848 = vsel %vm863, %v1836, -1e+30
      %v1849 = vsel %vm876, %v1837, -inf
      %1850 = vmax.xlane.f32.xlu0 %v1849
      %v1851 = vpop.xlane.xlu0 %1850
      %v1852 = vsel %vm876, %v1838, -inf
      %1853 = vmax.xlane.f32.xlu0 %v1852
      %v1854 = vpop.xlane.xlu0 %1853
      %v1855 = vsel %vm876, %v1839, -inf
      %1856 = vmax.xlane.f32.xlu0 %v1855
      %v1857 = vpop.xlane.xlu0 %1856
      %v1858 = vsel %vm876, %v1840, -inf
      %1859 = vmax.xlane.f32.xlu0 %v1858
      %v1860 = vpop.xlane.xlu0 %1859
      %v1861 = vsel %vm876, %v1841, -inf
      %1862 = vmax.xlane.f32.xlu0 %v1861
      %v1863 = vpop.xlane.xlu0 %1862
      %v1864 = vsel %vm876, %v1842, -inf
      %1865 = vmax.xlane.f32.xlu0 %v1864
      %v1866 = vpop.xlane.xlu0 %1865
      %v1867 = vsel %vm876, %v1843, -inf
      %1868 = vmax.xlane.f32.xlu0 %v1867
      %v1869 = vpop.xlane.xlu0 %1868
      %v1870 = vsel %vm876, %v1844, -inf
      %1871 = vmax.xlane.f32.xlu0 %v1870
      %v1872 = vpop.xlane.xlu0 %1871
      %v1873 = vsel %vm876, %v1845, -inf
      %1874 = vmax.xlane.f32.xlu0 %v1873
      %v1875 = vpop.xlane.xlu0 %1874
      %v1876 = vsel %vm876, %v1846, -inf
      %1877 = vmax.xlane.f32.xlu0 %v1876
      %v1878 = vpop.xlane.xlu0 %1877
      %v1879 = vsel %vm876, %v1847, -inf
      %1880 = vmax.xlane.f32.xlu0 %v1879
      %v1881 = vpop.xlane.xlu0 %1880
      %v1882 = vsel %vm876, %v1848, -inf
      %1883 = vmax.xlane.f32.xlu0 %v1882
      %v1884 = vpop.xlane.xlu0 %1883
      %v1885 = vsub.f32 %v1837, %v1851
      %v1886 = vsub.f32 %v1838, %v1854
      %v1887 = vsub.f32 %v1839, %v1857
      %v1888 = vsub.f32 %v1840, %v1860
      %v1889 = vsub.f32 %v1841, %v1863
      %v1890 = vsub.f32 %v1842, %v1866
      %v1891 = vsub.f32 %v1843, %v1869
      %v1892 = vsub.f32 %v1844, %v1872
      %v1893 = vsub.f32 %v1845, %v1875
      %v1894 = vsub.f32 %v1846, %v1878
      %v1895 = vsub.f32 %v1847, %v1881
      %v1896 = vsub.f32 %v1848, %v1884
      %v1897 = vmul.f32 %v1885, 1.442695
      %v1898 = vpow.pop %v1897
      %v1899 = vmul.f32 %v1886, 1.442695
      %v1900 = vpow.pop %v1899
      %v1901 = vmul.f32 %v1887, 1.442695
      %v1902 = vpow.pop %v1901
      %v1903 = vmul.f32 %v1888, 1.442695
      %v1904 = vpow.pop %v1903
      %v1905 = vmul.f32 %v1889, 1.442695
      %v1906 = vpow.pop %v1905
      %v1907 = vmul.f32 %v1890, 1.442695
      %v1908 = vpow.pop %v1907
      %v1909 = vmul.f32 %v1891, 1.442695
      %v1910 = vpow.pop %v1909
      %v1911 = vmul.f32 %v1892, 1.442695
      %v1912 = vpow.pop %v1911
      %v1913 = vmul.f32 %v1893, 1.442695
      %v1914 = vpow.pop %v1913
      %v1915 = vmul.f32 %v1894, 1.442695
      %v1916 = vpow.pop %v1915
      %v1917 = vmul.f32 %v1895, 1.442695
      %v1918 = vpow.pop %v1917
      %v1919 = vmul.f32 %v1896, 1.442695
      %v1920 = vpow.pop %v1919
      %v1921 = vsel %vm876, %v1898, 0.0
      %1922 = vadd.xlane.f32.xlu0 %v1921
      %v1923 = vpop.xlane.xlu0 %1922
      %v1924 = vsel %vm876, %v1900, 0.0
      %1925 = vadd.xlane.f32.xlu0 %v1924
      %v1926 = vpop.xlane.xlu0 %1925
      %v1927 = vsel %vm876, %v1902, 0.0
      %1928 = vadd.xlane.f32.xlu0 %v1927
      %v1929 = vpop.xlane.xlu0 %1928
      %v1930 = vsel %vm876, %v1904, 0.0
      %1931 = vadd.xlane.f32.xlu0 %v1930
      %v1932 = vpop.xlane.xlu0 %1931
      %v1933 = vsel %vm876, %v1906, 0.0
      %1934 = vadd.xlane.f32.xlu0 %v1933
      %v1935 = vpop.xlane.xlu0 %1934
      %v1936 = vsel %vm876, %v1908, 0.0
      %1937 = vadd.xlane.f32.xlu0 %v1936
      %v1938 = vpop.xlane.xlu0 %1937
      %v1939 = vsel %vm876, %v1910, 0.0
      %1940 = vadd.xlane.f32.xlu0 %v1939
      %v1941 = vpop.xlane.xlu0 %1940
      %v1942 = vsel %vm876, %v1912, 0.0
      %1943 = vadd.xlane.f32.xlu0 %v1942
      %v1944 = vpop.xlane.xlu0 %1943
      %v1945 = vsel %vm876, %v1914, 0.0
      %1946 = vadd.xlane.f32.xlu0 %v1945
      %v1947 = vpop.xlane.xlu0 %1946
      %v1948 = vsel %vm876, %v1916, 0.0
      %1949 = vadd.xlane.f32.xlu0 %v1948
      %v1950 = vpop.xlane.xlu0 %1949
      %v1951 = vsel %vm876, %v1918, 0.0
      %1952 = vadd.xlane.f32.xlu0 %v1951
      %v1953 = vpop.xlane.xlu0 %1952
      %v1954 = vsel %vm876, %v1920, 0.0
      %1955 = vadd.xlane.f32.xlu0 %v1954
      %v1956 = vpop.xlane.xlu0 %1955
      %v1957 = vrcp.pop %v1923
      %v1958 = vrcp.pop %v1926
      %v1959 = vrcp.pop %v1929
      %v1960 = vrcp.pop %v1932
      %v1961 = vrcp.pop %v1935
      %v1962 = vrcp.pop %v1938
      %v1963 = vrcp.pop %v1941
      %v1964 = vrcp.pop %v1944
      %v1965 = vrcp.pop %v1947
      %v1966 = vrcp.pop %v1950
      %v1967 = vrcp.pop %v1953
      %v1968 = vrcp.pop %v1956
      %v1969 = vmul.f32 %v1898, %v1957
      %v1970 = vmul.f32 %v1900, %v1958
      %v1971 = vmul.f32 %v1902, %v1959
      %v1972 = vmul.f32 %v1904, %v1960
      %v1973 = vmul.f32 %v1906, %v1961
      %v1974 = vmul.f32 %v1908, %v1962
      %v1975 = vmul.f32 %v1910, %v1963
      %v1976 = vmul.f32 %v1912, %v1964
      %v1977 = vmul.f32 %v1914, %v1965
      %v1978 = vmul.f32 %v1916, %v1966
      %v1979 = vmul.f32 %v1918, %v1967
      %v1980 = vmul.f32 %v1920, %v1968
      %v1981 = vpack.c.bf16 %v1970, %v1969
      %v1982 = vpack.c.bf16 %v1972, %v1971
      %v1983 = vpack.c.bf16 %v1974, %v1973
      %v1984 = vpack.c.bf16 %v1976, %v1975
      %v1985 = vpack.c.bf16 %v1978, %v1977
      %v1986 = vpack.c.bf16 %v1980, %v1979
      %1987 = vrot.lane.b32.xlu0 %v675, 48
      %v1988 = vpop.permute.xlu0 %1987
      %1989 = vrot.lane.b32.xlu0 %v676, 48
      %v1990 = vpop.permute.xlu0 %1989
      %1991 = vrot.lane.b32.xlu0 %v677, 48
      %v1992 = vpop.permute.xlu0 %1991
      %v1997 = vsel %vm876, %v1981, 0
      %v2000 = vsel %vm876, %v1982, 0
      %v2003 = vsel %vm876, %v1983, 0
      %2005 = vmatprep.subr.bf16.mxu0 0
      %2006 = vmatpush1.bf16.msra.mxu0 %v1988
      %2007 = vmatprep.subr.bf16.mxu0 0
      %2008 = vmatpush1.bf16.msra.mxu0 %v1990
      %2009 = vmatprep.subr.bf16.mxu0 0
      %2010 = vmatpush1.bf16.msra.mxu0 %v1992
      %2011 = vmatprep.subr.bf16.mxu0 0
      %2012 = vmatpush1.bf16.msra.mxu0 0
      %2013 = vmatprep.subr.bf16.mxu0 0
      %2014 = vmatpush1.bf16.msra.mxu0 0
      %2015 = vmatprep.subr.bf16.mxu0 0
      %2016 = vmatpush1.bf16.msra.mxu0 0
      %2017 = vmatprep.subr.bf16.mxu0 0
      %2018 = vmatpush1.bf16.msra.mxu0 0
      %2019 = vmatprep.subr.bf16.mxu0 0
      %2020 = vmatpush1.bf16.msra.mxu0 0
      %2021 = vmatprep.subr.bf16.mxu0 0
      %2022 = vmatpush1.bf16.msra.mxu0 0
      %2023 = vmatprep.subr.bf16.mxu0 0
      %2024 = vmatpush1.bf16.msra.mxu0 0
      %2025 = vmatprep.subr.bf16.mxu0 0
      %2026 = vmatpush1.bf16.msra.mxu0 0
      %2027 = vmatprep.subr.bf16.mxu0 0
      %2028 = vmatpush1.bf16.msra.mxu0 0
      %2029 = vmatprep.subr.bf16.mxu0 0
      %2030 = vmatpush1.bf16.msra.mxu0 0
      %2031 = vmatprep.subr.bf16.mxu0 0
      %2032 = vmatpush1.bf16.msra.mxu0 0
      %2033 = vmatprep.subr.bf16.mxu0 0
      %2034 = vmatpush1.bf16.msra.mxu0 0
      %2035 = vmatprep.subr.bf16.mxu0 0
      %2036 = vmatpush1.bf16.msra.mxu0 0
      %2037 = vmatprep.mubr.bf16.mxu0 0
      %2038 = vmatmul.mubr.bf16.gmra.mrb[0].mxu0 %v1997
      %v2039 = vpop.f32.mrb[0].mxu0
      %v2040 = vadd.f32 0.0, %v2039
      %v2041 = vpop.f32.mrb[0].mxu0
      %v2042 = vpop.f32.mrb[0].mxu0
      %v2043 = vadd.f32 0.0, %v2042
      %v2044 = vpop.f32.mrb[0].mxu0
      %2045 = vmatprep.mubr.bf16.mxu0 0
      %2046 = vmatmul.mubr.bf16.gmra.mrb[0].mxu0 %v2000
      %v2047 = vpop.f32.mrb[0].mxu0
      %v2048 = vadd.f32 0.0, %v2047
      %v2049 = vpop.f32.mrb[0].mxu0
      %v2050 = vpop.f32.mrb[0].mxu0
      %v2051 = vadd.f32 0.0, %v2050
      %v2052 = vpop.f32.mrb[0].mxu0
      %2053 = vmatprep.mubr.bf16.mxu0 0
      %2054 = vmatmul.mubr.bf16.gmra.mrb[0].mxu0 %v2003
      %v2055 = vpop.f32.mrb[0].mxu0
      %v2056 = vadd.f32 0.0, %v2055
      %v2057 = vpop.f32.mrb[0].mxu0
      %v2058 = vpop.f32.mrb[0].mxu0
      %v2059 = vadd.f32 0.0, %v2058
      %v2060 = vpop.f32.mrb[0].mxu0
      %2061 = vdwg.mxu0
      %2062 = vrot.lane.b32.xlu0 %v678, 48
      %v2063 = vpop.permute.xlu0 %2062
      %2064 = vrot.lane.b32.xlu0 %v679, 48
      %v2065 = vpop.permute.xlu0 %2064
      %2066 = vrot.lane.b32.xlu0 %v680, 48
      %v2067 = vpop.permute.xlu0 %2066
      %v2072 = vsel %vm876, %v1984, 0
      %v2075 = vsel %vm876, %v1985, 0
      %v2078 = vsel %vm876, %v1986, 0
      %2080 = vmatprep.subr.bf16.mxu0 0
      %2081 = vmatpush1.bf16.msra.mxu0 %v2063
      %2082 = vmatprep.subr.bf16.mxu0 0
      %2083 = vmatpush1.bf16.msra.mxu0 %v2065
      %2084 = vmatprep.subr.bf16.mxu0 0
      %2085 = vmatpush1.bf16.msra.mxu0 %v2067
      %2086 = vmatprep.subr.bf16.mxu0 0
      %2087 = vmatpush1.bf16.msra.mxu0 0
      %2088 = vmatprep.subr.bf16.mxu0 0
      %2089 = vmatpush1.bf16.msra.mxu0 0
      %2090 = vmatprep.subr.bf16.mxu0 0
      %2091 = vmatpush1.bf16.msra.mxu0 0
      %2092 = vmatprep.subr.bf16.mxu0 0
      %2093 = vmatpush1.bf16.msra.mxu0 0
      %2094 = vmatprep.subr.bf16.mxu0 0
      %2095 = vmatpush1.bf16.msra.mxu0 0
      %2096 = vmatprep.subr.bf16.mxu0 0
      %2097 = vmatpush1.bf16.msra.mxu0 0
      %2098 = vmatprep.subr.bf16.mxu0 0
      %2099 = vmatpush1.bf16.msra.mxu0 0
      %2100 = vmatprep.subr.bf16.mxu0 0
      %2101 = vmatpush1.bf16.msra.mxu0 0
      %2102 = vmatprep.subr.bf16.mxu0 0
      %2103 = vmatpush1.bf16.msra.mxu0 0
      %2104 = vmatprep.subr.bf16.mxu0 0
      %2105 = vmatpush1.bf16.msra.mxu0 0
      %2106 = vmatprep.subr.bf16.mxu0 0
      %2107 = vmatpush1.bf16.msra.mxu0 0
      %2108 = vmatprep.subr.bf16.mxu0 0
      %2109 = vmatpush1.bf16.msra.mxu0 0
      %2110 = vmatprep.subr.bf16.mxu0 0
      %2111 = vmatpush1.bf16.msra.mxu0 0
      %2112 = vmatprep.mubr.bf16.mxu0 0
      %2113 = vmatmul.mubr.bf16.gmra.mrb[0].mxu0 %v2072
      %v2114 = vpop.f32.mrb[0].mxu0
      %v2115 = vadd.f32 0.0, %v2114
      %v2116 = vpop.f32.mrb[0].mxu0
      %v2117 = vpop.f32.mrb[0].mxu0
      %v2118 = vadd.f32 0.0, %v2117
      %v2119 = vpop.f32.mrb[0].mxu0
      %2120 = vmatprep.mubr.bf16.mxu0 0
      %2121 = vmatmul.mubr.bf16.gmra.mrb[0].mxu0 %v2075
      %v2122 = vpop.f32.mrb[0].mxu0
      %v2123 = vadd.f32 0.0, %v2122
      %v2124 = vpop.f32.mrb[0].mxu0
      %v2125 = vpop.f32.mrb[0].mxu0
      %v2126 = vadd.f32 0.0, %v2125
      %v2127 = vpop.f32.mrb[0].mxu0
      %2128 = vmatprep.mubr.bf16.mxu0 0
      %2129 = vmatmul.mubr.bf16.gmra.mrb[0].mxu0 %v2078
      %v2130 = vpop.f32.mrb[0].mxu0
      %v2131 = vadd.f32 0.0, %v2130
      %v2132 = vpop.f32.mrb[0].mxu0
      %v2133 = vpop.f32.mrb[0].mxu0
      %v2134 = vadd.f32 0.0, %v2133
      %v2135 = vpop.f32.mrb[0].mxu0
      %2136 = vdwg.mxu0
      %2137 = vrot.lane.b32.xlu0 %v675, 104
      %v2138 = vpop.permute.xlu0 %2137
      %2139 = vrot.lane.b32.xlu0 %v676, 104
      %v2140 = vpop.permute.xlu0 %2139
      %2141 = vrot.lane.b32.xlu0 %v677, 104
      %v2142 = vpop.permute.xlu0 %2141
      %2143 = vrot.lane.b32.xlu0 %v675, 72
      %v2144 = vpop.permute.xlu0 %2143
      %2145 = vrot.lane.b32.xlu0 %v676, 72
      %v2146 = vpop.permute.xlu0 %2145
      %2147 = vrot.lane.b32.xlu0 %v677, 72
      %v2148 = vpop.permute.xlu0 %2147
      %v2150 = vsel %vm690, %v2138, 0
      %v2153 = vsel %vm690, %v2140, 0
      %v2156 = vsel %vm690, %v2142, 0
      %v2159 = vsel %vm690, %v2144, 0
      %v2162 = vsel %vm690, %v2146, 0
      %v2165 = vsel %vm690, %v2148, 0
      %2167 = vmatprep.subr.bf16.mxu0 0
      %2168 = vmatpush1.bf16.xpose.msra.mxu0 %v2159
      %2169 = vmatprep.subr.bf16.mxu0 0
      %2170 = vmatpush1.bf16.xpose.msra.mxu0 %v2162
      %2171 = vmatprep.subr.bf16.mxu0 0
      %2172 = vmatpush1.bf16.xpose.msra.mxu0 %v2165
      %2173 = vmatprep.subr.bf16.mxu0 0
      %2174 = vmatpush1.bf16.xpose.msra.mxu0 0
      %2175 = vmatprep.subr.bf16.mxu0 0
      %2176 = vmatpush1.bf16.xpose.msra.mxu0 0
      %2177 = vmatprep.subr.bf16.mxu0 0
      %2178 = vmatpush1.bf16.xpose.msra.mxu0 0
      %2179 = vmatprep.subr.bf16.mxu0 0
      %2180 = vmatpush1.bf16.xpose.msra.mxu0 0
      %2181 = vmatprep.subr.bf16.mxu0 0
      %2182 = vmatpush1.bf16.xpose.msra.mxu0 0
      %2183 = vmatprep.subr.bf16.mxu0 0
      %2184 = vmatpush1.bf16.xpose.msra.mxu0 0
      %2185 = vmatprep.subr.bf16.mxu0 0
      %2186 = vmatpush1.bf16.xpose.msra.mxu0 0
      %2187 = vmatprep.subr.bf16.mxu0 0
      %2188 = vmatpush1.bf16.xpose.msra.mxu0 0
      %2189 = vmatprep.subr.bf16.mxu0 0
      %2190 = vmatpush1.bf16.xpose.msra.mxu0 0
      %2191 = vmatprep.subr.bf16.mxu0 0
      %2192 = vmatpush1.bf16.xpose.msra.mxu0 0
      %2193 = vmatprep.subr.bf16.mxu0 0
      %2194 = vmatpush1.bf16.xpose.msra.mxu0 0
      %2195 = vmatprep.subr.bf16.mxu0 0
      %2196 = vmatpush1.bf16.xpose.msra.mxu0 0
      %2197 = vmatprep.subr.bf16.mxu0 0
      %2198 = vmatpush1.bf16.xpose.msra.mxu0 0
      %2199 = vmatprep.mubr.bf16.mxu0 0
      %2200 = vmatmul.mubr.bf16.gmra.mrb[0].mxu0 %v2150
      %v2201 = vpop.f32.mrb[0].mxu0
      %v2202 = vadd.f32 0.0, %v2201
      %v2203 = vpop.f32.mrb[0].mxu0
      %v2204 = vpop.f32.mrb[0].mxu0
      %v2205 = vadd.f32 0.0, %v2204
      %v2206 = vpop.f32.mrb[0].mxu0
      %2207 = vmatprep.mubr.bf16.mxu0 0
      %2208 = vmatmul.mubr.bf16.gmra.mrb[0].mxu0 %v2153
      %v2209 = vpop.f32.mrb[0].mxu0
      %v2210 = vadd.f32 0.0, %v2209
      %v2211 = vpop.f32.mrb[0].mxu0
      %v2212 = vpop.f32.mrb[0].mxu0
      %v2213 = vadd.f32 0.0, %v2212
      %v2214 = vpop.f32.mrb[0].mxu0
      %2215 = vmatprep.mubr.bf16.mxu0 0
      %2216 = vmatmul.mubr.bf16.gmra.mrb[0].mxu0 %v2156
      %v2217 = vpop.f32.mrb[0].mxu0
      %v2218 = vadd.f32 0.0, %v2217
      %v2219 = vpop.f32.mrb[0].mxu0
      %v2220 = vpop.f32.mrb[0].mxu0
      %v2221 = vadd.f32 0.0, %v2220
      %v2222 = vpop.f32.mrb[0].mxu0
      %2223 = vdwg.mxu0
      %2224 = vrot.lane.b32.xlu0 %v678, 104
      %v2225 = vpop.permute.xlu0 %2224
      %2226 = vrot.lane.b32.xlu0 %v679, 104
      %v2227 = vpop.permute.xlu0 %2226
      %2228 = vrot.lane.b32.xlu0 %v680, 104
      %v2229 = vpop.permute.xlu0 %2228
      %2230 = vrot.lane.b32.xlu0 %v678, 72
      %v2231 = vpop.permute.xlu0 %2230
      %2232 = vrot.lane.b32.xlu0 %v679, 72
      %v2233 = vpop.permute.xlu0 %2232
      %2234 = vrot.lane.b32.xlu0 %v680, 72
      %v2235 = vpop.permute.xlu0 %2234
      %v2237 = vsel %vm690, %v2225, 0
      %v2240 = vsel %vm690, %v2227, 0
      %v2243 = vsel %vm690, %v2229, 0
      %v2246 = vsel %vm690, %v2231, 0
      %v2249 = vsel %vm690, %v2233, 0
      %v2252 = vsel %vm690, %v2235, 0
      %2254 = vmatprep.subr.bf16.mxu0 0
      %2255 = vmatpush1.bf16.xpose.msra.mxu0 %v2246
      %2256 = vmatprep.subr.bf16.mxu0 0
      %2257 = vmatpush1.bf16.xpose.msra.mxu0 %v2249
      %2258 = vmatprep.subr.bf16.mxu0 0
      %2259 = vmatpush1.bf16.xpose.msra.mxu0 %v2252
      %2260 = vmatprep.subr.bf16.mxu0 0
      %2261 = vmatpush1.bf16.xpose.msra.mxu0 0
      %2262 = vmatprep.subr.bf16.mxu0 0
      %2263 = vmatpush1.bf16.xpose.msra.mxu0 0
      %2264 = vmatprep.subr.bf16.mxu0 0
      %2265 = vmatpush1.bf16.xpose.msra.mxu0 0
      %2266 = vmatprep.subr.bf16.mxu0 0
      %2267 = vmatpush1.bf16.xpose.msra.mxu0 0
      %2268 = vmatprep.subr.bf16.mxu0 0
      %2269 = vmatpush1.bf16.xpose.msra.mxu0 0
      %2270 = vmatprep.subr.bf16.mxu0 0
      %2271 = vmatpush1.bf16.xpose.msra.mxu0 0
      %2272 = vmatprep.subr.bf16.mxu0 0
      %2273 = vmatpush1.bf16.xpose.msra.mxu0 0
      %2274 = vmatprep.subr.bf16.mxu0 0
      %2275 = vmatpush1.bf16.xpose.msra.mxu0 0
      %2276 = vmatprep.subr.bf16.mxu0 0
      %2277 = vmatpush1.bf16.xpose.msra.mxu0 0
      %2278 = vmatprep.subr.bf16.mxu0 0
      %2279 = vmatpush1.bf16.xpose.msra.mxu0 0
      %2280 = vmatprep.subr.bf16.mxu0 0
      %2281 = vmatpush1.bf16.xpose.msra.mxu0 0
      %2282 = vmatprep.subr.bf16.mxu0 0
      %2283 = vmatpush1.bf16.xpose.msra.mxu0 0
      %2284 = vmatprep.subr.bf16.mxu0 0
      %2285 = vmatpush1.bf16.xpose.msra.mxu0 0
      %2286 = vmatprep.mubr.bf16.mxu0 0
      %2287 = vmatmul.mubr.bf16.gmra.mrb[0].mxu0 %v2237
      %v2288 = vpop.f32.mrb[0].mxu0
      %v2289 = vadd.f32 0.0, %v2288
      %v2290 = vpop.f32.mrb[0].mxu0
      %v2291 = vpop.f32.mrb[0].mxu0
      %v2292 = vadd.f32 0.0, %v2291
      %v2293 = vpop.f32.mrb[0].mxu0
      %2294 = vmatprep.mubr.bf16.mxu0 0
      %2295 = vmatmul.mubr.bf16.gmra.mrb[0].mxu0 %v2240
      %v2296 = vpop.f32.mrb[0].mxu0
      %v2297 = vadd.f32 0.0, %v2296
      %v2298 = vpop.f32.mrb[0].mxu0
      %v2299 = vpop.f32.mrb[0].mxu0
      %v2300 = vadd.f32 0.0, %v2299
      %v2301 = vpop.f32.mrb[0].mxu0
      %2302 = vmatprep.mubr.bf16.mxu0 0
      %2303 = vmatmul.mubr.bf16.gmra.mrb[0].mxu0 %v2243
      %v2304 = vpop.f32.mrb[0].mxu0
      %v2305 = vadd.f32 0.0, %v2304
      %v2306 = vpop.f32.mrb[0].mxu0
      %v2307 = vpop.f32.mrb[0].mxu0
      %v2308 = vadd.f32 0.0, %v2307
      %v2309 = vpop.f32.mrb[0].mxu0
      %2310 = vdwg.mxu0
      %v2311 = vmul.f32 %v2202, 0.35355338
      %v2312 = vmul.f32 %v2205, 0.35355338
      %v2313 = vmul.f32 %v2210, 0.35355338
      %v2314 = vmul.f32 %v2213, 0.35355338
      %v2315 = vmul.f32 %v2218, 0.35355338
      %v2316 = vmul.f32 %v2221, 0.35355338
      %v2317 = vmul.f32 %v2289, 0.35355338
      %v2318 = vmul.f32 %v2292, 0.35355338
      %v2319 = vmul.f32 %v2297, 0.35355338
      %v2320 = vmul.f32 %v2300, 0.35355338
      %v2321 = vmul.f32 %v2305, 0.35355338
      %v2322 = vmul.f32 %v2308, 0.35355338
      %v2323 = vsel %vm863, %v2311, -1e+30
      %v2324 = vsel %vm863, %v2312, -1e+30
      %v2325 = vsel %vm863, %v2313, -1e+30
      %v2326 = vsel %vm863, %v2314, -1e+30
      %v2327 = vsel %vm863, %v2315, -1e+30
      %v2328 = vsel %vm863, %v2316, -1e+30
      %v2329 = vsel %vm863, %v2317, -1e+30
      %v2330 = vsel %vm863, %v2318, -1e+30
      %v2331 = vsel %vm863, %v2319, -1e+30
      %v2332 = vsel %vm863, %v2320, -1e+30
      %v2333 = vsel %vm863, %v2321, -1e+30
      %v2334 = vsel %vm863, %v2322, -1e+30
      %v2335 = vsel %vm876, %v2323, -inf
      %2336 = vmax.xlane.f32.xlu0 %v2335
      %v2337 = vpop.xlane.xlu0 %2336
      %v2338 = vsel %vm876, %v2324, -inf
      %2339 = vmax.xlane.f32.xlu0 %v2338
      %v2340 = vpop.xlane.xlu0 %2339
      %v2341 = vsel %vm876, %v2325, -inf
      %2342 = vmax.xlane.f32.xlu0 %v2341
      %v2343 = vpop.xlane.xlu0 %2342
      %v2344 = vsel %vm876, %v2326, -inf
      %2345 = vmax.xlane.f32.xlu0 %v2344
      %v2346 = vpop.xlane.xlu0 %2345
      %v2347 = vsel %vm876, %v2327, -inf
      %2348 = vmax.xlane.f32.xlu0 %v2347
      %v2349 = vpop.xlane.xlu0 %2348
      %v2350 = vsel %vm876, %v2328, -inf
      %2351 = vmax.xlane.f32.xlu0 %v2350
      %v2352 = vpop.xlane.xlu0 %2351
      %v2353 = vsel %vm876, %v2329, -inf
      %2354 = vmax.xlane.f32.xlu0 %v2353
      %v2355 = vpop.xlane.xlu0 %2354
      %v2356 = vsel %vm876, %v2330, -inf
      %2357 = vmax.xlane.f32.xlu0 %v2356
      %v2358 = vpop.xlane.xlu0 %2357
      %v2359 = vsel %vm876, %v2331, -inf
      %2360 = vmax.xlane.f32.xlu0 %v2359
      %v2361 = vpop.xlane.xlu0 %2360
      %v2362 = vsel %vm876, %v2332, -inf
      %2363 = vmax.xlane.f32.xlu0 %v2362
      %v2364 = vpop.xlane.xlu0 %2363
      %v2365 = vsel %vm876, %v2333, -inf
      %2366 = vmax.xlane.f32.xlu0 %v2365
      %v2367 = vpop.xlane.xlu0 %2366
      %v2368 = vsel %vm876, %v2334, -inf
      %2369 = vmax.xlane.f32.xlu0 %v2368
      %v2370 = vpop.xlane.xlu0 %2369
      %v2371 = vsub.f32 %v2323, %v2337
      %v2372 = vsub.f32 %v2324, %v2340
      %v2373 = vsub.f32 %v2325, %v2343
      %v2374 = vsub.f32 %v2326, %v2346
      %v2375 = vsub.f32 %v2327, %v2349
      %v2376 = vsub.f32 %v2328, %v2352
      %v2377 = vsub.f32 %v2329, %v2355
      %v2378 = vsub.f32 %v2330, %v2358
      %v2379 = vsub.f32 %v2331, %v2361
      %v2380 = vsub.f32 %v2332, %v2364
      %v2381 = vsub.f32 %v2333, %v2367
      %v2382 = vsub.f32 %v2334, %v2370
      %v2383 = vmul.f32 %v2371, 1.442695
      %v2384 = vpow.pop %v2383
      %v2385 = vmul.f32 %v2372, 1.442695
      %v2386 = vpow.pop %v2385
      %v2387 = vmul.f32 %v2373, 1.442695
      %v2388 = vpow.pop %v2387
      %v2389 = vmul.f32 %v2374, 1.442695
      %v2390 = vpow.pop %v2389
      %v2391 = vmul.f32 %v2375, 1.442695
      %v2392 = vpow.pop %v2391
      %v2393 = vmul.f32 %v2376, 1.442695
      %v2394 = vpow.pop %v2393
      %v2395 = vmul.f32 %v2377, 1.442695
      %v2396 = vpow.pop %v2395
      %v2397 = vmul.f32 %v2378, 1.442695
      %v2398 = vpow.pop %v2397
      %v2399 = vmul.f32 %v2379, 1.442695
      %v2400 = vpow.pop %v2399
      %v2401 = vmul.f32 %v2380, 1.442695
      %v2402 = vpow.pop %v2401
      %v2403 = vmul.f32 %v2381, 1.442695
      %v2404 = vpow.pop %v2403
      %v2405 = vmul.f32 %v2382, 1.442695
      %v2406 = vpow.pop %v2405
      %v2407 = vsel %vm876, %v2384, 0.0
      %2408 = vadd.xlane.f32.xlu0 %v2407
      %v2409 = vpop.xlane.xlu0 %2408
      %v2410 = vsel %vm876, %v2386, 0.0
      %2411 = vadd.xlane.f32.xlu0 %v2410
      %v2412 = vpop.xlane.xlu0 %2411
      %v2413 = vsel %vm876, %v2388, 0.0
      %2414 = vadd.xlane.f32.xlu0 %v2413
      %v2415 = vpop.xlane.xlu0 %2414
      %v2416 = vsel %vm876, %v2390, 0.0
      %2417 = vadd.xlane.f32.xlu0 %v2416
      %v2418 = vpop.xlane.xlu0 %2417
      %v2419 = vsel %vm876, %v2392, 0.0
      %2420 = vadd.xlane.f32.xlu0 %v2419
      %v2421 = vpop.xlane.xlu0 %2420
      %v2422 = vsel %vm876, %v2394, 0.0
      %2423 = vadd.xlane.f32.xlu0 %v2422
      %v2424 = vpop.xlane.xlu0 %2423
      %v2425 = vsel %vm876, %v2396, 0.0
      %2426 = vadd.xlane.f32.xlu0 %v2425
      %v2427 = vpop.xlane.xlu0 %2426
      %v2428 = vsel %vm876, %v2398, 0.0
      %2429 = vadd.xlane.f32.xlu0 %v2428
      %v2430 = vpop.xlane.xlu0 %2429
      %v2431 = vsel %vm876, %v2400, 0.0
      %2432 = vadd.xlane.f32.xlu0 %v2431
      %v2433 = vpop.xlane.xlu0 %2432
      %v2434 = vsel %vm876, %v2402, 0.0
      %2435 = vadd.xlane.f32.xlu0 %v2434
      %v2436 = vpop.xlane.xlu0 %2435
      %v2437 = vsel %vm876, %v2404, 0.0
      %2438 = vadd.xlane.f32.xlu0 %v2437
      %v2439 = vpop.xlane.xlu0 %2438
      %v2440 = vsel %vm876, %v2406, 0.0
      %2441 = vadd.xlane.f32.xlu0 %v2440
      %v2442 = vpop.xlane.xlu0 %2441
      %v2443 = vrcp.pop %v2409
      %v2444 = vrcp.pop %v2412
      %v2445 = vrcp.pop %v2415
      %v2446 = vrcp.pop %v2418
      %v2447 = vrcp.pop %v2421
      %v2448 = vrcp.pop %v2424
      %v2449 = vrcp.pop %v2427
      %v2450 = vrcp.pop %v2430
      %v2451 = vrcp.pop %v2433
      %v2452 = vrcp.pop %v2436
      %v2453 = vrcp.pop %v2439
      %v2454 = vrcp.pop %v2442
      %v2455 = vmul.f32 %v2384, %v2443
      %v2456 = vmul.f32 %v2386, %v2444
      %v2457 = vmul.f32 %v2388, %v2445
      %v2458 = vmul.f32 %v2390, %v2446
      %v2459 = vmul.f32 %v2392, %v2447
      %v2460 = vmul.f32 %v2394, %v2448
      %v2461 = vmul.f32 %v2396, %v2449
      %v2462 = vmul.f32 %v2398, %v2450
      %v2463 = vmul.f32 %v2400, %v2451
      %v2464 = vmul.f32 %v2402, %v2452
      %v2465 = vmul.f32 %v2404, %v2453
      %v2466 = vmul.f32 %v2406, %v2454
      %v2467 = vpack.c.bf16 %v2456, %v2455
      %v2468 = vpack.c.bf16 %v2458, %v2457
      %v2469 = vpack.c.bf16 %v2460, %v2459
      %v2470 = vpack.c.bf16 %v2462, %v2461
      %v2471 = vpack.c.bf16 %v2464, %v2463
      %v2472 = vpack.c.bf16 %v2466, %v2465
      %2473 = vrot.lane.b32.xlu0 %v675, 40
      %v2474 = vpop.permute.xlu0 %2473
      %2475 = vrot.lane.b32.xlu0 %v676, 40
      %v2476 = vpop.permute.xlu0 %2475
      %2477 = vrot.lane.b32.xlu0 %v677, 40
      %v2478 = vpop.permute.xlu0 %2477
      %v2483 = vsel %vm876, %v2467, 0
      %v2486 = vsel %vm876, %v2468, 0
      %v2489 = vsel %vm876, %v2469, 0
      %2491 = vmatprep.subr.bf16.mxu0 0
      %2492 = vmatpush1.bf16.msra.mxu0 %v2474
      %2493 = vmatprep.subr.bf16.mxu0 0
      %2494 = vmatpush1.bf16.msra.mxu0 %v2476
      %2495 = vmatprep.subr.bf16.mxu0 0
      %2496 = vmatpush1.bf16.msra.mxu0 %v2478
      %2497 = vmatprep.subr.bf16.mxu0 0
      %2498 = vmatpush1.bf16.msra.mxu0 0
      %2499 = vmatprep.subr.bf16.mxu0 0
      %2500 = vmatpush1.bf16.msra.mxu0 0
      %2501 = vmatprep.subr.bf16.mxu0 0
      %2502 = vmatpush1.bf16.msra.mxu0 0
      %2503 = vmatprep.subr.bf16.mxu0 0
      %2504 = vmatpush1.bf16.msra.mxu0 0
      %2505 = vmatprep.subr.bf16.mxu0 0
      %2506 = vmatpush1.bf16.msra.mxu0 0
      %2507 = vmatprep.subr.bf16.mxu0 0
      %2508 = vmatpush1.bf16.msra.mxu0 0
      %2509 = vmatprep.subr.bf16.mxu0 0
      %2510 = vmatpush1.bf16.msra.mxu0 0
      %2511 = vmatprep.subr.bf16.mxu0 0
      %2512 = vmatpush1.bf16.msra.mxu0 0
      %2513 = vmatprep.subr.bf16.mxu0 0
      %2514 = vmatpush1.bf16.msra.mxu0 0
      %2515 = vmatprep.subr.bf16.mxu0 0
      %2516 = vmatpush1.bf16.msra.mxu0 0
      %2517 = vmatprep.subr.bf16.mxu0 0
      %2518 = vmatpush1.bf16.msra.mxu0 0
      %2519 = vmatprep.subr.bf16.mxu0 0
      %2520 = vmatpush1.bf16.msra.mxu0 0
      %2521 = vmatprep.subr.bf16.mxu0 0
      %2522 = vmatpush1.bf16.msra.mxu0 0
      %2523 = vmatprep.mubr.bf16.mxu0 0
      %2524 = vmatmul.mubr.bf16.gmra.mrb[0].mxu0 %v2483
      %v2525 = vpop.f32.mrb[0].mxu0
      %v2526 = vadd.f32 0.0, %v2525
      %v2527 = vpop.f32.mrb[0].mxu0
      %v2528 = vpop.f32.mrb[0].mxu0
      %v2529 = vadd.f32 0.0, %v2528
      %v2530 = vpop.f32.mrb[0].mxu0
      %2531 = vmatprep.mubr.bf16.mxu0 0
      %2532 = vmatmul.mubr.bf16.gmra.mrb[0].mxu0 %v2486
      %v2533 = vpop.f32.mrb[0].mxu0
      %v2534 = vadd.f32 0.0, %v2533
      %v2535 = vpop.f32.mrb[0].mxu0
      %v2536 = vpop.f32.mrb[0].mxu0
      %v2537 = vadd.f32 0.0, %v2536
      %v2538 = vpop.f32.mrb[0].mxu0
      %2539 = vmatprep.mubr.bf16.mxu0 0
      %2540 = vmatmul.mubr.bf16.gmra.mrb[0].mxu0 %v2489
      %v2541 = vpop.f32.mrb[0].mxu0
      %v2542 = vadd.f32 0.0, %v2541
      %v2543 = vpop.f32.mrb[0].mxu0
      %v2544 = vpop.f32.mrb[0].mxu0
      %v2545 = vadd.f32 0.0, %v2544
      %v2546 = vpop.f32.mrb[0].mxu0
      %2547 = vdwg.mxu0
      %2548 = vrot.lane.b32.xlu0 %v678, 40
      %v2549 = vpop.permute.xlu0 %2548
      %2550 = vrot.lane.b32.xlu0 %v679, 40
      %v2551 = vpop.permute.xlu0 %2550
      %2552 = vrot.lane.b32.xlu0 %v680, 40
      %v2553 = vpop.permute.xlu0 %2552
      %v2558 = vsel %vm876, %v2470, 0
      %v2561 = vsel %vm876, %v2471, 0
      %v2564 = vsel %vm876, %v2472, 0
      %2566 = vmatprep.subr.bf16.mxu0 0
      %2567 = vmatpush1.bf16.msra.mxu0 %v2549
      %2568 = vmatprep.subr.bf16.mxu0 0
      %2569 = vmatpush1.bf16.msra.mxu0 %v2551
      %2570 = vmatprep.subr.bf16.mxu0 0
      %2571 = vmatpush1.bf16.msra.mxu0 %v2553
      %2572 = vmatprep.subr.bf16.mxu0 0
      %2573 = vmatpush1.bf16.msra.mxu0 0
      %2574 = vmatprep.subr.bf16.mxu0 0
      %2575 = vmatpush1.bf16.msra.mxu0 0
      %2576 = vmatprep.subr.bf16.mxu0 0
      %2577 = vmatpush1.bf16.msra.mxu0 0
      %2578 = vmatprep.subr.bf16.mxu0 0
      %2579 = vmatpush1.bf16.msra.mxu0 0
      %2580 = vmatprep.subr.bf16.mxu0 0
      %2581 = vmatpush1.bf16.msra.mxu0 0
      %2582 = vmatprep.subr.bf16.mxu0 0
      %2583 = vmatpush1.bf16.msra.mxu0 0
      %2584 = vmatprep.subr.bf16.mxu0 0
      %2585 = vmatpush1.bf16.msra.mxu0 0
      %2586 = vmatprep.subr.bf16.mxu0 0
      %2587 = vmatpush1.bf16.msra.mxu0 0
      %2588 = vmatprep.subr.bf16.mxu0 0
      %2589 = vmatpush1.bf16.msra.mxu0 0
      %2590 = vmatprep.subr.bf16.mxu0 0
      %2591 = vmatpush1.bf16.msra.mxu0 0
      %2592 = vmatprep.subr.bf16.mxu0 0
      %2593 = vmatpush1.bf16.msra.mxu0 0
      %2594 = vmatprep.subr.bf16.mxu0 0
      %2595 = vmatpush1.bf16.msra.mxu0 0
      %2596 = vmatprep.subr.bf16.mxu0 0
      %2597 = vmatpush1.bf16.msra.mxu0 0
      %2598 = vmatprep.mubr.bf16.mxu0 0
      %2599 = vmatmul.mubr.bf16.gmra.mrb[0].mxu0 %v2558
      %v2600 = vpop.f32.mrb[0].mxu0
      %v2601 = vadd.f32 0.0, %v2600
      %v2602 = vpop.f32.mrb[0].mxu0
      %v2603 = vpop.f32.mrb[0].mxu0
      %v2604 = vadd.f32 0.0, %v2603
      %v2605 = vpop.f32.mrb[0].mxu0
      %2606 = vmatprep.mubr.bf16.mxu0 0
      %2607 = vmatmul.mubr.bf16.gmra.mrb[0].mxu0 %v2561
      %v2608 = vpop.f32.mrb[0].mxu0
      %v2609 = vadd.f32 0.0, %v2608
      %v2610 = vpop.f32.mrb[0].mxu0
      %v2611 = vpop.f32.mrb[0].mxu0
      %v2612 = vadd.f32 0.0, %v2611
      %v2613 = vpop.f32.mrb[0].mxu0
      %2614 = vmatprep.mubr.bf16.mxu0 0
      %2615 = vmatmul.mubr.bf16.gmra.mrb[0].mxu0 %v2564
      %v2616 = vpop.f32.mrb[0].mxu0
      %v2617 = vadd.f32 0.0, %v2616
      %v2618 = vpop.f32.mrb[0].mxu0
      %v2619 = vpop.f32.mrb[0].mxu0
      %v2620 = vadd.f32 0.0, %v2619
      %v2621 = vpop.f32.mrb[0].mxu0
      %2622 = vdwg.mxu0
      %2635 = vrot.lane.b32.xlu0 %v1554, 8
      %v2636 = vpop.permute.xlu0 %2635
      %2637 = vrot.lane.b32.xlu0 %v1557, 8
      %v2638 = vpop.permute.xlu0 %2637
      %2639 = vrot.lane.b32.xlu0 %v1562, 8
      %v2640 = vpop.permute.xlu0 %2639
      %2641 = vrot.lane.b32.xlu0 %v1565, 8
      %v2642 = vpop.permute.xlu0 %2641
      %2643 = vrot.lane.b32.xlu0 %v1570, 8
      %v2644 = vpop.permute.xlu0 %2643
      %2645 = vrot.lane.b32.xlu0 %v1573, 8
      %v2646 = vpop.permute.xlu0 %2645
      %2647 = vrot.lane.b32.xlu0 %v1629, 8
      %v2648 = vpop.permute.xlu0 %2647
      %2649 = vrot.lane.b32.xlu0 %v1632, 8
      %v2650 = vpop.permute.xlu0 %2649
      %2651 = vrot.lane.b32.xlu0 %v1637, 8
      %v2652 = vpop.permute.xlu0 %2651
      %2653 = vrot.lane.b32.xlu0 %v1640, 8
      %v2654 = vpop.permute.xlu0 %2653
      %2655 = vrot.lane.b32.xlu0 %v1645, 8
      %v2656 = vpop.permute.xlu0 %2655
      %2657 = vrot.lane.b32.xlu0 %v1648, 8
      %v2658 = vpop.permute.xlu0 %2657
      %2683 = vrot.lane.b32.xlu0 %v2040, 16
      %v2684 = vpop.permute.xlu0 %2683
      %2685 = vrot.lane.b32.xlu0 %v2043, 16
      %v2686 = vpop.permute.xlu0 %2685
      %2687 = vrot.lane.b32.xlu0 %v2048, 16
      %v2688 = vpop.permute.xlu0 %2687
      %2689 = vrot.lane.b32.xlu0 %v2051, 16
      %v2690 = vpop.permute.xlu0 %2689
      %2691 = vrot.lane.b32.xlu0 %v2056, 16
      %v2692 = vpop.permute.xlu0 %2691
      %2693 = vrot.lane.b32.xlu0 %v2059, 16
      %v2694 = vpop.permute.xlu0 %2693
      %2695 = vrot.lane.b32.xlu0 %v2115, 16
      %v2696 = vpop.permute.xlu0 %2695
      %2697 = vrot.lane.b32.xlu0 %v2118, 16
      %v2698 = vpop.permute.xlu0 %2697
      %2699 = vrot.lane.b32.xlu0 %v2123, 16
      %v2700 = vpop.permute.xlu0 %2699
      %2701 = vrot.lane.b32.xlu0 %v2126, 16
      %v2702 = vpop.permute.xlu0 %2701
      %2703 = vrot.lane.b32.xlu0 %v2131, 16
      %v2704 = vpop.permute.xlu0 %2703
      %2705 = vrot.lane.b32.xlu0 %v2134, 16
      %v2706 = vpop.permute.xlu0 %2705
      %2731 = vrot.lane.b32.xlu0 %v2526, 24
      %v2732 = vpop.permute.xlu0 %2731
      %2733 = vrot.lane.b32.xlu0 %v2529, 24
      %v2734 = vpop.permute.xlu0 %2733
      %2735 = vrot.lane.b32.xlu0 %v2534, 24
      %v2736 = vpop.permute.xlu0 %2735
      %2737 = vrot.lane.b32.xlu0 %v2537, 24
      %v2738 = vpop.permute.xlu0 %2737
      %2739 = vrot.lane.b32.xlu0 %v2542, 24
      %v2740 = vpop.permute.xlu0 %2739
      %2741 = vrot.lane.b32.xlu0 %v2545, 24
      %v2742 = vpop.permute.xlu0 %2741
      %2743 = vrot.lane.b32.xlu0 %v2601, 24
      %v2744 = vpop.permute.xlu0 %2743
      %2745 = vrot.lane.b32.xlu0 %v2604, 24
      %v2746 = vpop.permute.xlu0 %2745
      %2747 = vrot.lane.b32.xlu0 %v2609, 24
      %v2748 = vpop.permute.xlu0 %2747
      %2749 = vrot.lane.b32.xlu0 %v2612, 24
      %v2750 = vpop.permute.xlu0 %2749
      %2751 = vrot.lane.b32.xlu0 %v2617, 24
      %v2752 = vpop.permute.xlu0 %2751
      %2753 = vrot.lane.b32.xlu0 %v2620, 24
      %v2754 = vpop.permute.xlu0 %2753
      %v2767 = vsel %vm690, %v1068, %v2636
      %v2768 = vsel %vm690, %v1071, %v2638
      %v2769 = vsel %vm690, %v1076, %v2640
      %v2770 = vsel %vm690, %v1079, %v2642
      %v2771 = vsel %vm690, %v1084, %v2644
      %v2772 = vsel %vm690, %v1087, %v2646
      %v2773 = vsel %vm690, %v1143, %v2648
      %v2774 = vsel %vm690, %v1146, %v2650
      %v2775 = vsel %vm690, %v1151, %v2652
      %v2776 = vsel %vm690, %v1154, %v2654
      %v2777 = vsel %vm690, %v1159, %v2656
      %v2778 = vsel %vm690, %v1162, %v2658
      %vm2779 = vcmask 130048
      %v2780 = vsel %vm2779, %v2767, %v2684
      %v2781 = vsel %vm2779, %v2768, %v2686
      %v2782 = vsel %vm2779, %v2769, %v2688
      %v2783 = vsel %vm2779, %v2770, %v2690
      %v2784 = vsel %vm2779, %v2771, %v2692
      %v2785 = vsel %vm2779, %v2772, %v2694
      %v2786 = vsel %vm2779, %v2773, %v2696
      %v2787 = vsel %vm2779, %v2774, %v2698
      %v2788 = vsel %vm2779, %v2775, %v2700
      %v2789 = vsel %vm2779, %v2776, %v2702
      %v2790 = vsel %vm2779, %v2777, %v2704
      %v2791 = vsel %vm2779, %v2778, %v2706
      %vm2792 = vcmask 195584
      %v2793 = vsel %vm2792, %v2780, %v2732
      %v2794 = vsel %vm2792, %v2781, %v2734
      %v2795 = vsel %vm2792, %v2782, %v2736
      %v2796 = vsel %vm2792, %v2783, %v2738
      %v2797 = vsel %vm2792, %v2784, %v2740
      %v2798 = vsel %vm2792, %v2785, %v2742
      %v2799 = vsel %vm2792, %v2786, %v2744
      %v2800 = vsel %vm2792, %v2787, %v2746
      %v2801 = vsel %vm2792, %v2788, %v2748
      %v2802 = vsel %vm2792, %v2789, %v2750
      %v2803 = vsel %vm2792, %v2790, %v2752
      %v2804 = vsel %vm2792, %v2791, %v2754
      %v2805 = vpack.c.bf16 %v2794, %v2793
      %v2806 = vpack.c.bf16 %v2796, %v2795
      %v2807 = vpack.c.bf16 %v2798, %v2797
      %v2808 = vpack.c.bf16 %v2800, %v2799
      %v2809 = vpack.c.bf16 %v2802, %v2801
      %v2810 = vpack.c.bf16 %v2804, %v2803
      %v2811 = vld [vmem:[%s299] sm:$0xf]
      %v2812 = vld [vmem:[%s299 + $0x4] sm:$0xf]
      %v2813 = vld [vmem:[%s299 + $0x8] sm:$0xf]
      %v2814 = vld [vmem:[%s299 + $0xc] sm:$0xf]
      %v2815 = vlaneseq
      %v2816 = vshrl.u32 %v2815, 7
      %v2817 = vsub.s32 3, %v2816
      %v2818 = vrot.slane %v356, %v2817
      %v2823 = vunpack.c.l.b16 %v2811
      %v2824 = vunpack.c.l.b16 %v2812
      %v2825 = vunpack.c.l.b16 %v2813
      %v2826 = vunpack.c.l.b16 %v2814
      %v2827 = vpack.c.b16 %v2824, %v2823
      %v2828 = vpack.c.b16 %v2826, %v2825
      %v2832 = vsel %vm357, %v2805, 0
      %v2835 = vsel %vm357, %v2806, 0
      %v2838 = vsel %vm357, %v2807, 0
      %v2841 = vsel %vm357, %v2808, 0
      %v2844 = vsel %vm357, %v2809, 0
      %v2847 = vsel %vm357, %v2810, 0
      %2849 = vmatprep.subr.bf16.mxu0 0
      %2850 = vmatpush1.bf16.msra.mxu0 %v2827
      %2851 = vmatprep.subr.bf16.mxu0 0
      %2852 = vmatpush1.bf16.msra.mxu0 %v2828
      %2853 = vmatprep.subr.bf16.mxu0 0
      %2854 = vmatpush1.bf16.msra.mxu0 0
      %2855 = vmatprep.subr.bf16.mxu0 0
      %2856 = vmatpush1.bf16.msra.mxu0 0
      %2857 = vmatprep.subr.bf16.mxu0 0
      %2858 = vmatpush1.bf16.msra.mxu0 0
      %2859 = vmatprep.subr.bf16.mxu0 0
      %2860 = vmatpush1.bf16.msra.mxu0 0
      %2861 = vmatprep.subr.bf16.mxu0 0
      %2862 = vmatpush1.bf16.msra.mxu0 0
      %2863 = vmatprep.subr.bf16.mxu0 0
      %2864 = vmatpush1.bf16.msra.mxu0 0
      %2865 = vmatprep.subr.bf16.mxu0 0
      %2866 = vmatpush1.bf16.msra.mxu0 0
      %2867 = vmatprep.subr.bf16.mxu0 0
      %2868 = vmatpush1.bf16.msra.mxu0 0
      %2869 = vmatprep.subr.bf16.mxu0 0
      %2870 = vmatpush1.bf16.msra.mxu0 0
      %2871 = vmatprep.subr.bf16.mxu0 0
      %2872 = vmatpush1.bf16.msra.mxu0 0
      %2873 = vmatprep.subr.bf16.mxu0 0
      %2874 = vmatpush1.bf16.msra.mxu0 0
      %2875 = vmatprep.subr.bf16.mxu0 0
      %2876 = vmatpush1.bf16.msra.mxu0 0
      %2877 = vmatprep.subr.bf16.mxu0 0
      %2878 = vmatpush1.bf16.msra.mxu0 0
      %2879 = vmatprep.subr.bf16.mxu0 0
      %2880 = vmatpush1.bf16.msra.mxu0 0
      %2881 = vmatprep.mubr.bf16.mxu0 0
      %2882 = vmatmul.mubr.bf16.gmra.mrb[0].mxu0 %v2832
      %v2883 = vpop.f32.mrb[0].mxu0
      %v2884 = vadd.f32 %v2818, %v2883
      %v2885 = vpop.f32.mrb[0].mxu0
      %v2886 = vpop.f32.mrb[0].mxu0
      %v2887 = vadd.f32 %v2818, %v2886
      %v2888 = vpop.f32.mrb[0].mxu0
      %2889 = vmatprep.mubr.bf16.mxu0 0
      %2890 = vmatmul.mubr.bf16.gmra.mrb[0].mxu0 %v2835
      %v2891 = vpop.f32.mrb[0].mxu0
      %v2892 = vadd.f32 %v2818, %v2891
      %v2893 = vpop.f32.mrb[0].mxu0
      %v2894 = vpop.f32.mrb[0].mxu0
      %v2895 = vadd.f32 %v2818, %v2894
      %v2896 = vpop.f32.mrb[0].mxu0
      %2897 = vmatprep.mubr.bf16.mxu0 0
      %2898 = vmatmul.mubr.bf16.gmra.mrb[0].mxu0 %v2838
      %v2899 = vpop.f32.mrb[0].mxu0
      %v2900 = vadd.f32 %v2818, %v2899
      %v2901 = vpop.f32.mrb[0].mxu0
      %v2902 = vpop.f32.mrb[0].mxu0
      %v2903 = vadd.f32 %v2818, %v2902
      %v2904 = vpop.f32.mrb[0].mxu0
      %2905 = vmatprep.mubr.bf16.mxu0 0
      %2906 = vmatmul.mubr.bf16.gmra.mrb[0].mxu0 %v2841
      %v2907 = vpop.f32.mrb[0].mxu0
      %v2908 = vadd.f32 %v2818, %v2907
      %v2909 = vpop.f32.mrb[0].mxu0
      %v2910 = vpop.f32.mrb[0].mxu0
      %v2911 = vadd.f32 %v2818, %v2910
      %v2912 = vpop.f32.mrb[0].mxu0
      %2913 = vmatprep.mubr.bf16.mxu0 0
      %2914 = vmatmul.mubr.bf16.gmra.mrb[0].mxu0 %v2844
      %v2915 = vpop.f32.mrb[0].mxu0
      %v2916 = vadd.f32 %v2818, %v2915
      %v2917 = vpop.f32.mrb[0].mxu0
      %v2918 = vpop.f32.mrb[0].mxu0
      %v2919 = vadd.f32 %v2818, %v2918
      %v2920 = vpop.f32.mrb[0].mxu0
      %2921 = vmatprep.mubr.bf16.mxu0 0
      %2922 = vmatmul.mubr.bf16.gmra.mrb[0].mxu0 %v2847
      %v2923 = vpop.f32.mrb[0].mxu0
      %v2924 = vadd.f32 %v2818, %v2923
      %v2925 = vpop.f32.mrb[0].mxu0
      %v2926 = vpop.f32.mrb[0].mxu0
      %v2927 = vadd.f32 %v2818, %v2926
      %v2928 = vpop.f32.mrb[0].mxu0
      %2929 = vdwg.mxu0
      %v2930 = vadd.f32 %v344, %v2884
      %v2931 = vadd.f32 %v345, %v2887
      %v2932 = vadd.f32 %v346, %v2892
      %v2933 = vadd.f32 %v347, %v2895
      %v2934 = vadd.f32 %v348, %v2900
      %v2935 = vadd.f32 %v349, %v2903
      %v2936 = vadd.f32 %v350, %v2908
      %v2937 = vadd.f32 %v351, %v2911
      %v2938 = vadd.f32 %v352, %v2916
      %v2939 = vadd.f32 %v353, %v2919
      %v2940 = vadd.f32 %v354, %v2924
      %v2941 = vadd.f32 %v355, %v2927
      %v2942 = vsel %vm357, %v2930, 0.0
      %2943 = vadd.xlane.f32.xlu0 %v2942
      %v2944 = vpop.xlane.xlu0 %2943
      %v2945 = vsel %vm357, %v2931, 0.0
      %2946 = vadd.xlane.f32.xlu0 %v2945
      %v2947 = vpop.xlane.xlu0 %2946
      %v2948 = vsel %vm357, %v2932, 0.0
      %2949 = vadd.xlane.f32.xlu0 %v2948
      %v2950 = vpop.xlane.xlu0 %2949
      %v2951 = vsel %vm357, %v2933, 0.0
      %2952 = vadd.xlane.f32.xlu0 %v2951
      %v2953 = vpop.xlane.xlu0 %2952
      %v2954 = vsel %vm357, %v2934, 0.0
      %2955 = vadd.xlane.f32.xlu0 %v2954
      %v2956 = vpop.xlane.xlu0 %2955
      %v2957 = vsel %vm357, %v2935, 0.0
      %2958 = vadd.xlane.f32.xlu0 %v2957
      %v2959 = vpop.xlane.xlu0 %2958
      %v2960 = vsel %vm357, %v2936, 0.0
      %2961 = vadd.xlane.f32.xlu0 %v2960
      %v2962 = vpop.xlane.xlu0 %2961
      %v2963 = vsel %vm357, %v2937, 0.0
      %2964 = vadd.xlane.f32.xlu0 %v2963
      %v2965 = vpop.xlane.xlu0 %2964
      %v2966 = vsel %vm357, %v2938, 0.0
      %2967 = vadd.xlane.f32.xlu0 %v2966
      %v2968 = vpop.xlane.xlu0 %2967
      %v2969 = vsel %vm357, %v2939, 0.0
      %2970 = vadd.xlane.f32.xlu0 %v2969
      %v2971 = vpop.xlane.xlu0 %2970
      %v2972 = vsel %vm357, %v2940, 0.0
      %2973 = vadd.xlane.f32.xlu0 %v2972
      %v2974 = vpop.xlane.xlu0 %2973
      %v2975 = vsel %vm357, %v2941, 0.0
      %2976 = vadd.xlane.f32.xlu0 %v2975
      %v2977 = vpop.xlane.xlu0 %2976
      %v2978 = vmul.f32 %v2944, %v394
      %v2979 = vmul.f32 %v2947, %v394
      %v2980 = vmul.f32 %v2950, %v394
      %v2981 = vmul.f32 %v2953, %v394
      %v2982 = vmul.f32 %v2956, %v394
      %v2983 = vmul.f32 %v2959, %v394
      %v2984 = vmul.f32 %v2962, %v394
      %v2985 = vmul.f32 %v2965, %v394
      %v2986 = vmul.f32 %v2968, %v394
      %v2987 = vmul.f32 %v2971, %v394
      %v2988 = vmul.f32 %v2974, %v394
      %v2989 = vmul.f32 %v2977, %v394
      %v2990 = vsub.f32 %v2930, %v2978
      %v2991 = vsub.f32 %v2931, %v2979
      %v2992 = vsub.f32 %v2932, %v2980
      %v2993 = vsub.f32 %v2933, %v2981
      %v2994 = vsub.f32 %v2934, %v2982
      %v2995 = vsub.f32 %v2935, %v2983
      %v2996 = vsub.f32 %v2936, %v2984
      %v2997 = vsub.f32 %v2937, %v2985
      %v2998 = vsub.f32 %v2938, %v2986
      %v2999 = vsub.f32 %v2939, %v2987
      %v3000 = vsub.f32 %v2940, %v2988
      %v3001 = vsub.f32 %v2941, %v2989
      %v3002 = vmul.f32 %v2990, %v2990
      %v3003 = vmul.f32 %v2991, %v2991
      %v3004 = vmul.f32 %v2992, %v2992
      %v3005 = vmul.f32 %v2993, %v2993
      %v3006 = vmul.f32 %v2994, %v2994
      %v3007 = vmul.f32 %v2995, %v2995
      %v3008 = vmul.f32 %v2996, %v2996
      %v3009 = vmul.f32 %v2997, %v2997
      %v3010 = vmul.f32 %v2998, %v2998
      %v3011 = vmul.f32 %v2999, %v2999
      %v3012 = vmul.f32 %v3000, %v3000
      %v3013 = vmul.f32 %v3001, %v3001
      %v3014 = vsel %vm357, %v3002, 0.0
      %3015 = vadd.xlane.f32.xlu0 %v3014
      %v3016 = vpop.xlane.xlu0 %3015
      %v3017 = vsel %vm357, %v3003, 0.0
      %3018 = vadd.xlane.f32.xlu0 %v3017
      %v3019 = vpop.xlane.xlu0 %3018
      %v3020 = vsel %vm357, %v3004, 0.0
      %3021 = vadd.xlane.f32.xlu0 %v3020
      %v3022 = vpop.xlane.xlu0 %3021
      %v3023 = vsel %vm357, %v3005, 0.0
      %3024 = vadd.xlane.f32.xlu0 %v3023
      %v3025 = vpop.xlane.xlu0 %3024
      %v3026 = vsel %vm357, %v3006, 0.0
      %3027 = vadd.xlane.f32.xlu0 %v3026
      %v3028 = vpop.xlane.xlu0 %3027
      %v3029 = vsel %vm357, %v3007, 0.0
      %3030 = vadd.xlane.f32.xlu0 %v3029
      %v3031 = vpop.xlane.xlu0 %3030
      %v3032 = vsel %vm357, %v3008, 0.0
      %3033 = vadd.xlane.f32.xlu0 %v3032
      %v3034 = vpop.xlane.xlu0 %3033
      %v3035 = vsel %vm357, %v3009, 0.0
      %3036 = vadd.xlane.f32.xlu0 %v3035
      %v3037 = vpop.xlane.xlu0 %3036
      %v3038 = vsel %vm357, %v3010, 0.0
      %3039 = vadd.xlane.f32.xlu0 %v3038
      %v3040 = vpop.xlane.xlu0 %3039
      %v3041 = vsel %vm357, %v3011, 0.0
      %3042 = vadd.xlane.f32.xlu0 %v3041
      %v3043 = vpop.xlane.xlu0 %3042
      %v3044 = vsel %vm357, %v3012, 0.0
      %3045 = vadd.xlane.f32.xlu0 %v3044
      %v3046 = vpop.xlane.xlu0 %3045
      %v3047 = vsel %vm357, %v3013, 0.0
      %3048 = vadd.xlane.f32.xlu0 %v3047
      %v3049 = vpop.xlane.xlu0 %3048
      %v3050 = vmul.f32 %v3016, %v394
      %v3051 = vmul.f32 %v3019, %v394
      %v3052 = vmul.f32 %v3022, %v394
      %v3053 = vmul.f32 %v3025, %v394
      %v3054 = vmul.f32 %v3028, %v394
      %v3055 = vmul.f32 %v3031, %v394
      %v3056 = vmul.f32 %v3034, %v394
      %v3057 = vmul.f32 %v3037, %v394
      %v3058 = vmul.f32 %v3040, %v394
      %v3059 = vmul.f32 %v3043, %v394
      %v3060 = vmul.f32 %v3046, %v394
      %v3061 = vmul.f32 %v3049, %v394
      %v3062 = vadd.f32 %v3050, 1e-05
      %v3063 = vadd.f32 %v3051, 1e-05
      %v3064 = vadd.f32 %v3052, 1e-05
      %v3065 = vadd.f32 %v3053, 1e-05
      %v3066 = vadd.f32 %v3054, 1e-05
      %v3067 = vadd.f32 %v3055, 1e-05
      %v3068 = vadd.f32 %v3056, 1e-05
      %v3069 = vadd.f32 %v3057, 1e-05
      %v3070 = vadd.f32 %v3058, 1e-05
      %v3071 = vadd.f32 %v3059, 1e-05
      %v3072 = vadd.f32 %v3060, 1e-05
      %v3073 = vadd.f32 %v3061, 1e-05
      %v3074 = vrsqrt.pop %v3062
      %v3075 = vrsqrt.pop %v3063
      %v3076 = vrsqrt.pop %v3064
      %v3077 = vrsqrt.pop %v3065
      %v3078 = vrsqrt.pop %v3066
      %v3079 = vrsqrt.pop %v3067
      %v3080 = vrsqrt.pop %v3068
      %v3081 = vrsqrt.pop %v3069
      %v3082 = vrsqrt.pop %v3070
      %v3083 = vrsqrt.pop %v3071
      %v3084 = vrsqrt.pop %v3072
      %v3085 = vrsqrt.pop %v3073
      %v3086 = vmul.f32 %v2990, %v3074
      %v3087 = vmul.f32 %v2991, %v3075
      %v3088 = vmul.f32 %v2992, %v3076
      %v3089 = vmul.f32 %v2993, %v3077
      %v3090 = vmul.f32 %v2994, %v3078
      %v3091 = vmul.f32 %v2995, %v3079
      %v3092 = vmul.f32 %v2996, %v3080
      %v3093 = vmul.f32 %v2997, %v3081
      %v3094 = vmul.f32 %v2998, %v3082
      %v3095 = vmul.f32 %v2999, %v3083
      %v3096 = vmul.f32 %v3000, %v3084
      %v3097 = vmul.f32 %v3001, %v3085
      %v3098 = vlaneseq
      %v3099 = vshrl.u32 %v3098, 7
      %v3100 = vsub.s32 4, %v3099
      %v3101 = vrot.slane %v356, %v3100
      %v3102 = vmul.f32 %v3086, %v3101
      %v3103 = vmul.f32 %v3087, %v3101
      %v3104 = vmul.f32 %v3088, %v3101
      %v3105 = vmul.f32 %v3089, %v3101
      %v3106 = vmul.f32 %v3090, %v3101
      %v3107 = vmul.f32 %v3091, %v3101
      %v3108 = vmul.f32 %v3092, %v3101
      %v3109 = vmul.f32 %v3093, %v3101
      %v3110 = vmul.f32 %v3094, %v3101
      %v3111 = vmul.f32 %v3095, %v3101
      %v3112 = vmul.f32 %v3096, %v3101
      %v3113 = vmul.f32 %v3097, %v3101
      %v3114 = vlaneseq
      %v3115 = vshrl.u32 %v3114, 7
      %v3116 = vsub.s32 5, %v3115
      %v3117 = vrot.slane %v356, %v3116
      %v3118 = vadd.f32 %v3102, %v3117
      %v3119 = vadd.f32 %v3103, %v3117
      %v3120 = vadd.f32 %v3104, %v3117
      %v3121 = vadd.f32 %v3105, %v3117
      %v3122 = vadd.f32 %v3106, %v3117
      %v3123 = vadd.f32 %v3107, %v3117
      %v3124 = vadd.f32 %v3108, %v3117
      %v3125 = vadd.f32 %v3109, %v3117
      %v3126 = vadd.f32 %v3110, %v3117
      %v3127 = vadd.f32 %v3111, %v3117
      %v3128 = vadd.f32 %v3112, %v3117
      %v3129 = vadd.f32 %v3113, %v3117
      %v3130 = vpack.c.bf16 %v3119, %v3118
      %v3131 = vpack.c.bf16 %v3121, %v3120
      %v3132 = vpack.c.bf16 %v3123, %v3122
      %v3133 = vpack.c.bf16 %v3125, %v3124
      %v3134 = vpack.c.bf16 %v3127, %v3126
      %v3135 = vpack.c.bf16 %v3129, %v3128
      %v3136 = vld [vmem:[%s304] sm:$0xf]
      %v3137 = vld [vmem:[%s304 + $0x4] sm:$0xf]
      %v3138 = vld [vmem:[%s304 + $0x8] sm:$0xf]
      %v3139 = vld [vmem:[%s304 + $0xc] sm:$0xf]
      %v3140 = vlaneseq
      %v3141 = vshrl.u32 %v3140, 7
      %v3142 = vsub.s32 6, %v3141
      %v3143 = vrot.slane %v356, %v3142
      %v3148 = vunpack.c.l.b16 %v3136
      %v3149 = vunpack.c.l.b16 %v3137
      %v3150 = vunpack.c.l.b16 %v3138
      %v3151 = vunpack.c.l.b16 %v3139
      %v3152 = vpack.c.b16 %v3149, %v3148
      %v3153 = vpack.c.b16 %v3151, %v3150
      %v3157 = vsel %vm357, %v3130, 0
      %v3160 = vsel %vm357, %v3131, 0
      %v3163 = vsel %vm357, %v3132, 0
      %v3166 = vsel %vm357, %v3133, 0
      %v3169 = vsel %vm357, %v3134, 0
      %v3172 = vsel %vm357, %v3135, 0
      %3174 = vmatprep.subr.bf16.mxu0 0
      %3175 = vmatpush1.bf16.msra.mxu0 %v3152
      %3176 = vmatprep.subr.bf16.mxu0 0
      %3177 = vmatpush1.bf16.msra.mxu0 %v3153
      %3178 = vmatprep.subr.bf16.mxu0 0
      %3179 = vmatpush1.bf16.msra.mxu0 0
      %3180 = vmatprep.subr.bf16.mxu0 0
      %3181 = vmatpush1.bf16.msra.mxu0 0
      %3182 = vmatprep.subr.bf16.mxu0 0
      %3183 = vmatpush1.bf16.msra.mxu0 0
      %3184 = vmatprep.subr.bf16.mxu0 0
      %3185 = vmatpush1.bf16.msra.mxu0 0
      %3186 = vmatprep.subr.bf16.mxu0 0
      %3187 = vmatpush1.bf16.msra.mxu0 0
      %3188 = vmatprep.subr.bf16.mxu0 0
      %3189 = vmatpush1.bf16.msra.mxu0 0
      %3190 = vmatprep.subr.bf16.mxu0 0
      %3191 = vmatpush1.bf16.msra.mxu0 0
      %3192 = vmatprep.subr.bf16.mxu0 0
      %3193 = vmatpush1.bf16.msra.mxu0 0
      %3194 = vmatprep.subr.bf16.mxu0 0
      %3195 = vmatpush1.bf16.msra.mxu0 0
      %3196 = vmatprep.subr.bf16.mxu0 0
      %3197 = vmatpush1.bf16.msra.mxu0 0
      %3198 = vmatprep.subr.bf16.mxu0 0
      %3199 = vmatpush1.bf16.msra.mxu0 0
      %3200 = vmatprep.subr.bf16.mxu0 0
      %3201 = vmatpush1.bf16.msra.mxu0 0
      %3202 = vmatprep.subr.bf16.mxu0 0
      %3203 = vmatpush1.bf16.msra.mxu0 0
      %3204 = vmatprep.subr.bf16.mxu0 0
      %3205 = vmatpush1.bf16.msra.mxu0 0
      %3206 = vmatprep.mubr.bf16.mxu0 0
      %3207 = vmatmul.mubr.bf16.gmra.mrb[0].mxu0 %v3157
      %v3208 = vpop.f32.mrb[0].mxu0
      %v3209 = vadd.f32 %v3143, %v3208
      %v3210 = vpop.f32.mrb[0].mxu0
      %v3211 = vpop.f32.mrb[0].mxu0
      %v3212 = vadd.f32 %v3143, %v3211
      %v3213 = vpop.f32.mrb[0].mxu0
      %3214 = vmatprep.mubr.bf16.mxu0 0
      %3215 = vmatmul.mubr.bf16.gmra.mrb[0].mxu0 %v3160
      %v3216 = vpop.f32.mrb[0].mxu0
      %v3217 = vadd.f32 %v3143, %v3216
      %v3218 = vpop.f32.mrb[0].mxu0
      %v3219 = vpop.f32.mrb[0].mxu0
      %v3220 = vadd.f32 %v3143, %v3219
      %v3221 = vpop.f32.mrb[0].mxu0
      %3222 = vmatprep.mubr.bf16.mxu0 0
      %3223 = vmatmul.mubr.bf16.gmra.mrb[0].mxu0 %v3163
      %v3224 = vpop.f32.mrb[0].mxu0
      %v3225 = vadd.f32 %v3143, %v3224
      %v3226 = vpop.f32.mrb[0].mxu0
      %v3227 = vpop.f32.mrb[0].mxu0
      %v3228 = vadd.f32 %v3143, %v3227
      %v3229 = vpop.f32.mrb[0].mxu0
      %3230 = vmatprep.mubr.bf16.mxu0 0
      %3231 = vmatmul.mubr.bf16.gmra.mrb[0].mxu0 %v3166
      %v3232 = vpop.f32.mrb[0].mxu0
      %v3233 = vadd.f32 %v3143, %v3232
      %v3234 = vpop.f32.mrb[0].mxu0
      %v3235 = vpop.f32.mrb[0].mxu0
      %v3236 = vadd.f32 %v3143, %v3235
      %v3237 = vpop.f32.mrb[0].mxu0
      %3238 = vmatprep.mubr.bf16.mxu0 0
      %3239 = vmatmul.mubr.bf16.gmra.mrb[0].mxu0 %v3169
      %v3240 = vpop.f32.mrb[0].mxu0
      %v3241 = vadd.f32 %v3143, %v3240
      %v3242 = vpop.f32.mrb[0].mxu0
      %v3243 = vpop.f32.mrb[0].mxu0
      %v3244 = vadd.f32 %v3143, %v3243
      %v3245 = vpop.f32.mrb[0].mxu0
      %3246 = vmatprep.mubr.bf16.mxu0 0
      %3247 = vmatmul.mubr.bf16.gmra.mrb[0].mxu0 %v3172
      %v3248 = vpop.f32.mrb[0].mxu0
      %v3249 = vadd.f32 %v3143, %v3248
      %v3250 = vpop.f32.mrb[0].mxu0
      %v3251 = vpop.f32.mrb[0].mxu0
      %v3252 = vadd.f32 %v3143, %v3251
      %v3253 = vpop.f32.mrb[0].mxu0
      %3254 = vdwg.mxu0
      %v3255 = vmul.f32 %v3209, 0.5
      %v3256 = vmul.f32 %v3212, 0.5
      %v3257 = vmul.f32 %v3217, 0.5
      %v3258 = vmul.f32 %v3220, 0.5
      %v3259 = vmul.f32 %v3225, 0.5
      %v3260 = vmul.f32 %v3228, 0.5
      %v3261 = vmul.f32 %v3233, 0.5
      %v3262 = vmul.f32 %v3236, 0.5
      %v3263 = vmul.f32 %v3241, 0.5
      %v3264 = vmul.f32 %v3244, 0.5
      %v3265 = vmul.f32 %v3249, 0.5
      %v3266 = vmul.f32 %v3252, 0.5
      %v3267 = vmul.f32 %v3209, 0.70710677
      %v3268 = vmul.f32 %v3212, 0.70710677
      %v3269 = vmul.f32 %v3217, 0.70710677
      %v3270 = vmul.f32 %v3220, 0.70710677
      %v3271 = vmul.f32 %v3225, 0.70710677
      %v3272 = vmul.f32 %v3228, 0.70710677
      %v3273 = vmul.f32 %v3233, 0.70710677
      %v3274 = vmul.f32 %v3236, 0.70710677
      %v3275 = vmul.f32 %v3241, 0.70710677
      %v3276 = vmul.f32 %v3244, 0.70710677
      %v3277 = vmul.f32 %v3249, 0.70710677
      %v3278 = vmul.f32 %v3252, 0.70710677
      %v3279 = verf.f32.pop %v3267
      %v3280 = verf.f32.pop %v3268
      %v3281 = verf.f32.pop %v3269
      %v3282 = verf.f32.pop %v3270
      %v3283 = verf.f32.pop %v3271
      %v3284 = verf.f32.pop %v3272
      %v3285 = verf.f32.pop %v3273
      %v3286 = verf.f32.pop %v3274
      %v3287 = verf.f32.pop %v3275
      %v3288 = verf.f32.pop %v3276
      %v3289 = verf.f32.pop %v3277
      %v3290 = verf.f32.pop %v3278
      %v3291 = vadd.f32 %v3279, 1.0
      %v3292 = vadd.f32 %v3280, 1.0
      %v3293 = vadd.f32 %v3281, 1.0
      %v3294 = vadd.f32 %v3282, 1.0
      %v3295 = vadd.f32 %v3283, 1.0
      %v3296 = vadd.f32 %v3284, 1.0
      %v3297 = vadd.f32 %v3285, 1.0
      %v3298 = vadd.f32 %v3286, 1.0
      %v3299 = vadd.f32 %v3287, 1.0
      %v3300 = vadd.f32 %v3288, 1.0
      %v3301 = vadd.f32 %v3289, 1.0
      %v3302 = vadd.f32 %v3290, 1.0
      %v3303 = vmul.f32 %v3255, %v3291
      %v3304 = vmul.f32 %v3256, %v3292
      %v3305 = vmul.f32 %v3257, %v3293
      %v3306 = vmul.f32 %v3258, %v3294
      %v3307 = vmul.f32 %v3259, %v3295
      %v3308 = vmul.f32 %v3260, %v3296
      %v3309 = vmul.f32 %v3261, %v3297
      %v3310 = vmul.f32 %v3262, %v3298
      %v3311 = vmul.f32 %v3263, %v3299
      %v3312 = vmul.f32 %v3264, %v3300
      %v3313 = vmul.f32 %v3265, %v3301
      %v3314 = vmul.f32 %v3266, %v3302
      %v3315 = vpack.c.bf16 %v3304, %v3303
      %v3316 = vpack.c.bf16 %v3306, %v3305
      %v3317 = vpack.c.bf16 %v3308, %v3307
      %v3318 = vpack.c.bf16 %v3310, %v3309
      %v3319 = vpack.c.bf16 %v3312, %v3311
      %v3320 = vpack.c.bf16 %v3314, %v3313
      %v3321 = vld [vmem:[%s309] sm:$0xf]
      %v3322 = vld [vmem:[%s309 + $0x4] sm:$0xf]
      %v3323 = vld [vmem:[%s309 + $0x8] sm:$0xf]
      %v3324 = vld [vmem:[%s309 + $0xc] sm:$0xf]
      %v3325 = vld [vmem:[%s309 + $0x10] sm:$0xf]
      %v3326 = vld [vmem:[%s309 + $0x14] sm:$0xf]
      %v3327 = vld [vmem:[%s309 + $0x18] sm:$0xf]
      %v3328 = vld [vmem:[%s309 + $0x1c] sm:$0xf]
      %v3329 = vld [vmem:[%s309 + $0x20] sm:$0xf]
      %v3330 = vld [vmem:[%s309 + $0x24] sm:$0xf]
      %v3331 = vld [vmem:[%s309 + $0x28] sm:$0xf]
      %v3332 = vld [vmem:[%s309 + $0x2c] sm:$0xf]
      %v3333 = vld [vmem:[%s309 + $0x30] sm:$0xf]
      %v3334 = vld [vmem:[%s309 + $0x34] sm:$0xf]
      %v3335 = vld [vmem:[%s309 + $0x38] sm:$0xf]
      %v3336 = vld [vmem:[%s309 + $0x3c] sm:$0xf]
      %v3337 = vlaneseq
      %v3338 = vshrl.u32 %v3337, 7
      %v3339 = vsub.s32 7, %v3338
      %v3340 = vrot.slane %v356, %v3339
      %v3357 = vunpack.c.l.b16 %v3321
      %v3358 = vunpack.c.l.b16 %v3322
      %v3359 = vunpack.c.l.b16 %v3323
      %v3360 = vunpack.c.l.b16 %v3324
      %v3361 = vunpack.c.l.b16 %v3325
      %v3362 = vunpack.c.l.b16 %v3326
      %v3363 = vunpack.c.l.b16 %v3327
      %v3364 = vunpack.c.l.b16 %v3328
      %v3365 = vunpack.c.l.b16 %v3329
      %v3366 = vunpack.c.l.b16 %v3330
      %v3367 = vunpack.c.l.b16 %v3331
      %v3368 = vunpack.c.l.b16 %v3332
      %v3369 = vunpack.c.l.b16 %v3333
      %v3370 = vunpack.c.l.b16 %v3334
      %v3371 = vunpack.c.l.b16 %v3335
      %v3372 = vunpack.c.l.b16 %v3336
      %v3373 = vpack.c.b16 %v3358, %v3357
      %v3374 = vpack.c.b16 %v3360, %v3359
      %v3375 = vpack.c.b16 %v3362, %v3361
      %v3376 = vpack.c.b16 %v3364, %v3363
      %v3377 = vpack.c.b16 %v3366, %v3365
      %v3378 = vpack.c.b16 %v3368, %v3367
      %v3379 = vpack.c.b16 %v3370, %v3369
      %v3380 = vpack.c.b16 %v3372, %v3371
      %3389 = vmatprep.subr.bf16.mxu0 0
      %3390 = vmatpush1.bf16.msra.mxu0 %v3373
      %3391 = vmatprep.subr.bf16.mxu0 0
      %3392 = vmatpush1.bf16.msra.mxu0 %v3374
      %3393 = vmatprep.subr.bf16.mxu0 0
      %3394 = vmatpush1.bf16.msra.mxu0 %v3375
      %3395 = vmatprep.subr.bf16.mxu0 0
      %3396 = vmatpush1.bf16.msra.mxu0 %v3376
      %3397 = vmatprep.subr.bf16.mxu0 0
      %3398 = vmatpush1.bf16.msra.mxu0 %v3377
      %3399 = vmatprep.subr.bf16.mxu0 0
      %3400 = vmatpush1.bf16.msra.mxu0 %v3378
      %3401 = vmatprep.subr.bf16.mxu0 0
      %3402 = vmatpush1.bf16.msra.mxu0 %v3379
      %3403 = vmatprep.subr.bf16.mxu0 0
      %3404 = vmatpush1.bf16.msra.mxu0 %v3380
      %3405 = vmatprep.subr.bf16.mxu0 0
      %3406 = vmatpush1.bf16.msra.mxu0 0
      %3407 = vmatprep.subr.bf16.mxu0 0
      %3408 = vmatpush1.bf16.msra.mxu0 0
      %3409 = vmatprep.subr.bf16.mxu0 0
      %3410 = vmatpush1.bf16.msra.mxu0 0
      %3411 = vmatprep.subr.bf16.mxu0 0
      %3412 = vmatpush1.bf16.msra.mxu0 0
      %3413 = vmatprep.subr.bf16.mxu0 0
      %3414 = vmatpush1.bf16.msra.mxu0 0
      %3415 = vmatprep.subr.bf16.mxu0 0
      %3416 = vmatpush1.bf16.msra.mxu0 0
      %3417 = vmatprep.subr.bf16.mxu0 0
      %3418 = vmatpush1.bf16.msra.mxu0 0
      %3419 = vmatprep.subr.bf16.mxu0 0
      %3420 = vmatpush1.bf16.msra.mxu0 0
      %3421 = vmatprep.mubr.bf16.mxu0 0
      %3422 = vmatmul.mubr.bf16.gmra.mrb[0].mxu0 %v3315
      %v3423 = vpop.f32.mrb[0].mxu0
      %v3424 = vadd.f32 %v3340, %v3423
      %v3425 = vpop.f32.mrb[0].mxu0
      %v3426 = vpop.f32.mrb[0].mxu0
      %v3427 = vadd.f32 %v3340, %v3426
      %v3428 = vpop.f32.mrb[0].mxu0
      %3429 = vmatprep.mubr.bf16.mxu0 0
      %3430 = vmatmul.mubr.bf16.gmra.mrb[0].mxu0 %v3316
      %v3431 = vpop.f32.mrb[0].mxu0
      %v3432 = vadd.f32 %v3340, %v3431
      %v3433 = vpop.f32.mrb[0].mxu0
      %v3434 = vpop.f32.mrb[0].mxu0
      %v3435 = vadd.f32 %v3340, %v3434
      %v3436 = vpop.f32.mrb[0].mxu0
      %3437 = vmatprep.mubr.bf16.mxu0 0
      %3438 = vmatmul.mubr.bf16.gmra.mrb[0].mxu0 %v3317
      %v3439 = vpop.f32.mrb[0].mxu0
      %v3440 = vadd.f32 %v3340, %v3439
      %v3441 = vpop.f32.mrb[0].mxu0
      %v3442 = vpop.f32.mrb[0].mxu0
      %v3443 = vadd.f32 %v3340, %v3442
      %v3444 = vpop.f32.mrb[0].mxu0
      %3445 = vmatprep.mubr.bf16.mxu0 0
      %3446 = vmatmul.mubr.bf16.gmra.mrb[0].mxu0 %v3318
      %v3447 = vpop.f32.mrb[0].mxu0
      %v3448 = vadd.f32 %v3340, %v3447
      %v3449 = vpop.f32.mrb[0].mxu0
      %v3450 = vpop.f32.mrb[0].mxu0
      %v3451 = vadd.f32 %v3340, %v3450
      %v3452 = vpop.f32.mrb[0].mxu0
      %3453 = vmatprep.mubr.bf16.mxu0 0
      %3454 = vmatmul.mubr.bf16.gmra.mrb[0].mxu0 %v3319
      %v3455 = vpop.f32.mrb[0].mxu0
      %v3456 = vadd.f32 %v3340, %v3455
      %v3457 = vpop.f32.mrb[0].mxu0
      %v3458 = vpop.f32.mrb[0].mxu0
      %v3459 = vadd.f32 %v3340, %v3458
      %v3460 = vpop.f32.mrb[0].mxu0
      %3461 = vmatprep.mubr.bf16.mxu0 0
      %3462 = vmatmul.mubr.bf16.gmra.mrb[0].mxu0 %v3320
      %v3463 = vpop.f32.mrb[0].mxu0
      %v3464 = vadd.f32 %v3340, %v3463
      %v3465 = vpop.f32.mrb[0].mxu0
      %v3466 = vpop.f32.mrb[0].mxu0
      %v3467 = vadd.f32 %v3340, %v3466
      %v3468 = vpop.f32.mrb[0].mxu0
      %3469 = vdwg.mxu0
      %v3470 = vadd.f32 %v2930, %v3424
      %v3471 = vadd.f32 %v2931, %v3427
      %v3472 = vadd.f32 %v2932, %v3432
      %v3473 = vadd.f32 %v2933, %v3435
      %v3474 = vadd.f32 %v2934, %v3440
      %v3475 = vadd.f32 %v2935, %v3443
      %v3476 = vadd.f32 %v2936, %v3448
      %v3477 = vadd.f32 %v2937, %v3451
      %v3478 = vadd.f32 %v2938, %v3456
      %v3479 = vadd.f32 %v2939, %v3459
      %v3480 = vadd.f32 %v2940, %v3464
      %v3481 = vadd.f32 %v2941, %v3467
      %3482 = vst.msk [vmem:[%s6] sm:$0xff] %vm357, %v3470
      %3483 = vst.msk [vmem:[%s6 + $0x8] sm:$0xff] %vm357, %v3471
      %3484 = vst.msk [vmem:[%s6 + $0x10] sm:$0xff] %vm357, %v3472
      %3485 = vst.msk [vmem:[%s6 + $0x18] sm:$0xff] %vm357, %v3473
      %3486 = vst.msk [vmem:[%s6 + $0x20] sm:$0xff] %vm357, %v3474
      %3487 = vst.msk [vmem:[%s6 + $0x28] sm:$0xff] %vm357, %v3475
      %3488 = vst.msk [vmem:[%s6 + $0x30] sm:$0xff] %vm357, %v3476
      %3489 = vst.msk [vmem:[%s6 + $0x38] sm:$0xff] %vm357, %v3477
      %3490 = vst.msk [vmem:[%s6 + $0x40] sm:$0xff] %vm357, %v3478
      %3491 = vst.msk [vmem:[%s6 + $0x48] sm:$0xff] %vm357, %v3479
      %3492 = vst.msk [vmem:[%s6 + $0x50] sm:$0xff] %vm357, %v3480
      %3493 = vst.msk [vmem:[%s6 + $0x58] sm:$0xff] %vm357, %v3481
      // Predicated region
      $region49: #{timesformer_forward.4} parent=43 // pred_check
        %p3494 = pneg %p181
      $region50: #{timesformer_forward.4} parent=43 // pred_check_branch
        %3496 = sbr.rel (%p3494) target = $region52
      $region51: #{timesformer_forward.4} parent=43 // pred_region
        _
      $region52: #{timesformer_forward.4} parent=43 // pred_fallthru
        _
      // Predicated region
      $region53: #{timesformer_forward.4} parent=43 // pred_check
        %p3497 = pneg %p181
      $region54: #{timesformer_forward.4} parent=43 // pred_check_branch
        %3499 = sbr.rel (%p3497) target = $region56
      $region55: #{timesformer_forward.4} parent=43 // pred_region
        _
      $region56: #{timesformer_forward.4} parent=43 // pred_fallthru
        _
    $region44: #{timesformer_forward.4} parent=5 // pred_fallthru
      _
    %p3500 = scmp.le.s32.totalorder 2, %s12
    // Predicated region
    $region57: #{timesformer_forward.4} parent=5 // pred_check
      %p3501 = pneg %p3500
    $region58: #{timesformer_forward.4} parent=5 // pred_check_branch
      %3503 = sbr.rel (%p3501) target = $region60
    $region59: #{timesformer_forward.4} parent=5 // pred_region
      %s3504 = ssub.s32 %s12, 2
    $region60: #{timesformer_forward.4} parent=5 // pred_fallthru
      _
  $region6: #{timesformer_forward.4} parent=0 // loop_footer
    %s16 = sadd.s32 1, %s12
  $region7: #{timesformer_forward.4} parent=0 // loop_footer_branch
    %11 = sbr.rel target = $region3
  $region8: #{timesformer_forward.4} parent=0 // loop_exit
    _

</llo_original>
